<compile_context>
chip_gen: v7x
topology: tpu7x:2x2x1
jax: 0.10.0
libtpu: 0.0.40
codegen_flags: <defaults>
</compile_context>

<pallas_src>
import functools  # noqa: F401

import numpy as np
import jax
import jax.numpy as jnp
from jax.experimental import pallas as pl
from jax.experimental.pallas import tpu as pltpu  # noqa: F401  (TPU backend)

NEG_SLOPE = 0.01       # nn.LeakyReLU default negative slope
N_CHANNELS = 64        # module's self.n_channels


def _leaky(y):
    return jnp.where(y >= 0.0, y, NEG_SLOPE * y)


# ------------------------------ Pallas kernel ------------------------------ #

def _fused_discriminator_kernel(p1_ref, w1_ref, b1_ref,
                                g2_ref, w2_ref, b2_ref,
                                g3_ref, w3_ref, b3_ref,
                                fcw_ref, fcb_ref, bsel_ref,
                                o_ref):
    """conv1 -> conv2 -> conv3 -> flatten -> linear, fully VMEM resident."""
    f32 = jnp.float32

    # ---- conv1 (im2col matmul) + LeakyReLU:  (N*64, 9) @ (9, 64) ----
    y1 = jnp.dot(p1_ref[...], w1_ref[...], preferred_element_type=f32)
    y1 = _leaky(y1 + b1_ref[...])                                    # (N*64, 64)

    # ---- conv2: 9 taps, each = (0/1 gather matmul) then (Cin->Cout matmul) ----
    acc2 = jnp.zeros((g2_ref.shape[1], w2_ref.shape[2]), f32)        # (N*16, 128)
    for t in range(9):                                               # unrolled
        tap = jnp.dot(g2_ref[t], y1, preferred_element_type=f32)     # (N*16, 64)
        acc2 = acc2 + jnp.dot(tap, w2_ref[t], preferred_element_type=f32)
    y2 = _leaky(acc2 + b2_ref[...])                                  # (N*16, 128)

    # ---- conv3 ----
    acc3 = jnp.zeros((g3_ref.shape[1], w3_ref.shape[2]), f32)        # (N*4, 256)
    for t in range(9):
        tap = jnp.dot(g3_ref[t], y2, preferred_element_type=f32)     # (N*4, 128)
        acc3 = acc3 + jnp.dot(tap, w3_ref[t], preferred_element_type=f32)
    y3 = _leaky(acc3 + b3_ref[...])                                  # (N*4, 256)

    # ---- Linear(1024 -> 1); PyTorch's NCHW .view() is folded into fcw layout ----
    prod = y3 * fcw_ref[...]                                         # (N*4, 256)
    per_n = jnp.dot(bsel_ref[...], prod, preferred_element_type=f32)  # (N, 256)
    out = jnp.sum(per_n, axis=-1, keepdims=True) + fcb_ref[...]      # (N, 1)
    o_ref[...] = out.astype(o_ref.dtype)


# ----------------------------- Host-side setup ------------------------------ #

def _out_hw(size):               # 3x3 conv, stride 2, padding 1
    return (size - 1) // 2 + 1


def _conv1_patches(x):
    """im2col of the raw (N,1,H,W) input -> (N*Ho*Wo, 9); tap order (ky,kx)."""
    n, _, h, w = x.shape
    ho, wo = _out_hw(h), _out_hw(w)
    xp = jnp.pad(x[:, 0], ((0, 0), (1, 1), (1, 1)))
    taps = [xp[:, ky:ky + 2 * ho:2, kx:kx + 2 * wo:2]
            for ky in range(3) for kx in range(3)]
    return jnp.stack(taps, axis=-1).reshape(n * ho * wo, 9), ho, wo


def _gather_mats(n, hi, wi):
    """0/1 tap-selection matrices: G[t] @ act_in gathers tap t of a 3x3/s2/p1
    conv for every output pixel. Rows = (n, i, j); block-diagonal over batch."""
    ho, wo = _out_hw(hi), _out_hw(wi)
    g = np.zeros((9, n * ho * wo, n * hi * wi), np.float32)
    for t in range(9):
        ky, kx = divmod(t, 3)
        for b in range(n):
            for i in range(ho):
                for j in range(wo):
                    si, sj = 2 * i + ky - 1, 2 * j + kx - 1
                    if 0 <= si < hi and 0 <= sj < wi:
                        g[t, b * ho * wo + i * wo + j,
                          b * hi * wi + si * wi + sj] = 1.0
    return g, ho, wo


def init_raw_params(key, n_channels=N_CHANNELS):
    """PyTorch-layout parameters (used by the pure-XLA reference check)."""
    ks = jax.random.split(key, 8)

    def normal(k, shape, scale=0.05):
        return (scale * jax.random.normal(k, shape)).astype(jnp.float32)

    return {
        "conv1_w": normal(ks[0], (n_channels, 1, 3, 3)),
        "conv1_b": normal(ks[1], (n_channels,)),
        "conv2_w": normal(ks[2], (2 * n_channels, n_channels, 3, 3)),
        "conv2_b": normal(ks[3], (2 * n_channels,)),
        "conv3_w": normal(ks[4], (4 * n_channels, 2 * n_channels, 3, 3)),
        "conv3_b": normal(ks[5], (4 * n_channels,)),
        "fc_w": normal(ks[6], (1, 4 * 2 * 2 * n_channels)),
        "fc_b": normal(ks[7], (1,)),
    }


def prepare_params(raw):
    """Fold all weight-layout transforms once, offline (no per-call transposes)."""
    def conv_taps(w):                        # (Cout, Cin, 3, 3) -> (9, Cin, Cout)
        co, ci, kh, kw = w.shape
        return jnp.transpose(w, (2, 3, 1, 0)).reshape(kh * kw, ci, co)

    cout3 = raw["conv3_b"].shape[0]                      # 256
    s3 = raw["fc_w"].shape[1] // cout3                   # 4 (= 2*2 spatial)
    return {
        "w1": conv_taps(raw["conv1_w"]).reshape(9, -1),  # (9, 64)   (Cin == 1)
        "b1": raw["conv1_b"].reshape(1, -1),
        "w2": conv_taps(raw["conv2_w"]),                 # (9, 64, 128)
        "b2": raw["conv2_b"].reshape(1, -1),
        "w3": conv_taps(raw["conv3_w"]),                 # (9, 128, 256)
        "b3": raw["conv3_b"].reshape(1, -1),
        # fc weight permuted so NHWC-ordered conv3 activations feed it directly
        # (folds PyTorch's channel-major .view into the weight, no runtime transpose).
        "fcw": raw["fc_w"].reshape(cout3, s3).T,         # (4, 256)
        "fcb": raw["fc_b"].reshape(1, 1),
    }


def conv_discriminator(prep, x, unused=None):
    """Pallas implementation of ConvDiscriminator.forward(x, _)."""
    del unused                                # second forward arg is ignored by spec
    n = x.shape[0]

    patches1, ho1, wo1 = _conv1_patches(x)    # (N*64, 9)   tiny plain-JAX glue
    g2, ho2, wo2 = _gather_mats(n, ho1, wo1)  # (9, N*16, N*64)  compile-time consts
    g3, ho3, wo3 = _gather_mats(n, ho2, wo2)  # (9, N*4,  N*16)
    s3 = ho3 * wo3
    assert prep["fcw"].shape[0] == s3         # flatten size matches Linear(1024, 1)

    fcw_tiled = jnp.tile(prep["fcw"], (n, 1))                        # (N*4, 256)
    # batch-segment selector: bsel[b, b*s3 + s] = 1
    bsel = np.kron(np.eye(n, dtype=np.float32), np.ones((1, s3), np.float32))

    # NOTE: for large batches, add a 'parallel' grid axis over batch rows so
    # v7x's two TensorCores split the work; at N=2 one fused invocation is best.
    return pl.pallas_call(
        _fused_discriminator_kernel,
        out_shape=jax.ShapeDtypeStruct((n, 1), jnp.float32),
    )(patches1, prep["w1"], prep["b1"],
      g2, prep["w2"], prep["b2"],
      g3, prep["w3"], prep["b3"],
      fcw_tiled, prep["fcb"], bsel)


def reference_forward(raw, x):
    """Plain-XLA reference with exact PyTorch semantics (self-check only)."""
    act = x
    for i in (1, 2, 3):
        act = jax.lax.conv_general_dilated(
            act, raw[f"conv{i}_w"], window_strides=(2, 2),
            padding=((1, 1), (1, 1)),
            dimension_numbers=("NCHW", "OIHW", "NCHW"),
            precision=jax.lax.Precision.HIGHEST)
        act = _leaky(act + raw[f"conv{i}_b"].reshape(1, -1, 1, 1))
    flat = act.reshape(act.shape[0], -1)                  # NCHW .view(-1, 1024)
    return jnp.dot(flat, raw["fc_w"].T,
                   precision=jax.lax.Precision.HIGHEST) + raw["fc_b"]


if __name__ == "__main__":
    key = jax.random.PRNGKey(0)
    k_params, k_x = jax.random.split(key)
    raw = init_raw_params(k_params)
    prep = prepare_params(raw)

    # 16x16 input: 16 -> 8 -> 4 -> 2 spatially, matching the 4*2*2*64 flatten.
    x = jax.random.normal(k_x, (2, 1, 16, 16), dtype=jnp.float32)

    forward = jax.jit(conv_discriminator)
    out = jax.block_until_ready(forward(prep, x))
    assert out.shape == (2, 1)
    assert bool(jnp.all(jnp.isfinite(out)))

    ref = jax.block_until_ready(reference_forward(raw, x))
    assert bool(jnp.allclose(out, ref, rtol=1e-2, atol=1e-3))
    print("KERNEL_OK")
</pallas_src>

<mosaic_0001>
module attributes {stable_mosaic.version = 11 : i64} {
  func.func @_fused_discriminator_kernel(%arg0: memref<128x9xf32, #tpu.memory_space<vmem>>, %arg1: memref<9x64xf32, #tpu.memory_space<vmem>>, %arg2: memref<1x64xf32, #tpu.memory_space<vmem>>, %arg3: memref<9x32x128xf32, #tpu.memory_space<vmem>>, %arg4: memref<9x64x128xf32, #tpu.memory_space<vmem>>, %arg5: memref<1x128xf32, #tpu.memory_space<vmem>>, %arg6: memref<9x8x32xf32, #tpu.memory_space<vmem>>, %arg7: memref<9x128x256xf32, #tpu.memory_space<vmem>>, %arg8: memref<1x256xf32, #tpu.memory_space<vmem>>, %arg9: memref<8x256xf32, #tpu.memory_space<vmem>>, %arg10: memref<1x1xf32, #tpu.memory_space<vmem>>, %arg11: memref<2x8xf32, #tpu.memory_space<vmem>>, %arg12: memref<2x1xf32, #tpu.memory_space<vmem>>) attributes {dimension_semantics = [], scalar_prefetch = 0 : i64, scratch_operands = 0 : i64, tpu.core_type = #tpu.core_type<tc>} {
    %c0 = arith.constant 0 : index
    %c0_0 = arith.constant 0 : index
    %0 = vector.load %arg0[%c0, %c0_0] : memref<128x9xf32, #tpu.memory_space<vmem>>, vector<128x9xf32>
    %c0_1 = arith.constant 0 : index
    %c0_2 = arith.constant 0 : index
    %1 = vector.load %arg1[%c0_1, %c0_2] : memref<9x64xf32, #tpu.memory_space<vmem>>, vector<9x64xf32>
    %cst = arith.constant dense<0.000000e+00> : vector<128x64xf32>
    %2 = tpu.matmul %0, %1, %cst {dimension_numbers = #tpu.dot_dimension_numbers<[1], [0], [0], [1], [0, 0, 1, 1], [], []>} : vector<128x9xf32>, vector<9x64xf32>, vector<128x64xf32> -> vector<128x64xf32>
    %c0_3 = arith.constant 0 : index
    %c0_4 = arith.constant 0 : index
    %3 = vector.load %arg2[%c0_3, %c0_4] : memref<1x64xf32, #tpu.memory_space<vmem>>, vector<1x64xf32>
    %4 = vector.broadcast %3 : vector<1x64xf32> to vector<128x64xf32>
    %5 = arith.addf %2, %4 : vector<128x64xf32>
    %cst_5 = arith.constant 0.000000e+00 : f32
    %6 = vector.broadcast %cst_5 : f32 to vector<128x64xf32>
    %7 = arith.cmpf oge, %5, %6 : vector<128x64xf32>
    %cst_6 = arith.constant 0.00999999977 : f32
    %8 = vector.broadcast %cst_6 : f32 to vector<128x64xf32>
    %9 = arith.mulf %8, %5 : vector<128x64xf32>
    %10 = arith.select %7, %5, %9 : vector<128x64xi1>, vector<128x64xf32>
    %cst_7 = arith.constant 0.000000e+00 : f32
    %11 = vector.broadcast %cst_7 : f32 to vector<32x128xf32>
    %c0_8 = arith.constant 0 : index
    %c0_9 = arith.constant 0 : index
    %c0_10 = arith.constant 0 : index
    %12 = vector.load %arg3[%c0_8, %c0_9, %c0_10] : memref<9x32x128xf32, #tpu.memory_space<vmem>>, vector<1x32x128xf32>
    %13 = vector.shape_cast %12 : vector<1x32x128xf32> to vector<32x128xf32>
    %cst_11 = arith.constant dense<0.000000e+00> : vector<32x64xf32>
    %14 = tpu.matmul %13, %10, %cst_11 {dimension_numbers = #tpu.dot_dimension_numbers<[1], [0], [0], [1], [0, 0, 1, 1], [], []>} : vector<32x128xf32>, vector<128x64xf32>, vector<32x64xf32> -> vector<32x64xf32>
    %c0_12 = arith.constant 0 : index
    %c0_13 = arith.constant 0 : index
    %c0_14 = arith.constant 0 : index
    %15 = vector.load %arg4[%c0_12, %c0_13, %c0_14] : memref<9x64x128xf32, #tpu.memory_space<vmem>>, vector<1x64x128xf32>
    %16 = vector.shape_cast %15 : vector<1x64x128xf32> to vector<64x128xf32>
    %cst_15 = arith.constant dense<0.000000e+00> : vector<32x128xf32>
    %17 = tpu.matmul %14, %16, %cst_15 {dimension_numbers = #tpu.dot_dimension_numbers<[1], [0], [0], [1], [0, 0, 1, 1], [], []>} : vector<32x64xf32>, vector<64x128xf32>, vector<32x128xf32> -> vector<32x128xf32>
    %18 = arith.addf %11, %17 : vector<32x128xf32>
    %c1 = arith.constant 1 : index
    %c0_16 = arith.constant 0 : index
    %c0_17 = arith.constant 0 : index
    %19 = vector.load %arg3[%c1, %c0_16, %c0_17] : memref<9x32x128xf32, #tpu.memory_space<vmem>>, vector<1x32x128xf32>
    %20 = vector.shape_cast %19 : vector<1x32x128xf32> to vector<32x128xf32>
    %cst_18 = arith.constant dense<0.000000e+00> : vector<32x64xf32>
    %21 = tpu.matmul %20, %10, %cst_18 {dimension_numbers = #tpu.dot_dimension_numbers<[1], [0], [0], [1], [0, 0, 1, 1], [], []>} : vector<32x128xf32>, vector<128x64xf32>, vector<32x64xf32> -> vector<32x64xf32>
    %c1_19 = arith.constant 1 : index
    %c0_20 = arith.constant 0 : index
    %c0_21 = arith.constant 0 : index
    %22 = vector.load %arg4[%c1_19, %c0_20, %c0_21] : memref<9x64x128xf32, #tpu.memory_space<vmem>>, vector<1x64x128xf32>
    %23 = vector.shape_cast %22 : vector<1x64x128xf32> to vector<64x128xf32>
    %cst_22 = arith.constant dense<0.000000e+00> : vector<32x128xf32>
    %24 = tpu.matmul %21, %23, %cst_22 {dimension_numbers = #tpu.dot_dimension_numbers<[1], [0], [0], [1], [0, 0, 1, 1], [], []>} : vector<32x64xf32>, vector<64x128xf32>, vector<32x128xf32> -> vector<32x128xf32>
    %25 = arith.addf %18, %24 : vector<32x128xf32>
    %c2 = arith.constant 2 : index
    %c0_23 = arith.constant 0 : index
    %c0_24 = arith.constant 0 : index
    %26 = vector.load %arg3[%c2, %c0_23, %c0_24] : memref<9x32x128xf32, #tpu.memory_space<vmem>>, vector<1x32x128xf32>
    %27 = vector.shape_cast %26 : vector<1x32x128xf32> to vector<32x128xf32>
    %cst_25 = arith.constant dense<0.000000e+00> : vector<32x64xf32>
    %28 = tpu.matmul %27, %10, %cst_25 {dimension_numbers = #tpu.dot_dimension_numbers<[1], [0], [0], [1], [0, 0, 1, 1], [], []>} : vector<32x128xf32>, vector<128x64xf32>, vector<32x64xf32> -> vector<32x64xf32>
    %c2_26 = arith.constant 2 : index
    %c0_27 = arith.constant 0 : index
    %c0_28 = arith.constant 0 : index
    %29 = vector.load %arg4[%c2_26, %c0_27, %c0_28] : memref<9x64x128xf32, #tpu.memory_space<vmem>>, vector<1x64x128xf32>
    %30 = vector.shape_cast %29 : vector<1x64x128xf32> to vector<64x128xf32>
    %cst_29 = arith.constant dense<0.000000e+00> : vector<32x128xf32>
    %31 = tpu.matmul %28, %30, %cst_29 {dimension_numbers = #tpu.dot_dimension_numbers<[1], [0], [0], [1], [0, 0, 1, 1], [], []>} : vector<32x64xf32>, vector<64x128xf32>, vector<32x128xf32> -> vector<32x128xf32>
    %32 = arith.addf %25, %31 : vector<32x128xf32>
    %c3 = arith.constant 3 : index
    %c0_30 = arith.constant 0 : index
    %c0_31 = arith.constant 0 : index
    %33 = vector.load %arg3[%c3, %c0_30, %c0_31] : memref<9x32x128xf32, #tpu.memory_space<vmem>>, vector<1x32x128xf32>
    %34 = vector.shape_cast %33 : vector<1x32x128xf32> to vector<32x128xf32>
    %cst_32 = arith.constant dense<0.000000e+00> : vector<32x64xf32>
    %35 = tpu.matmul %34, %10, %cst_32 {dimension_numbers = #tpu.dot_dimension_numbers<[1], [0], [0], [1], [0, 0, 1, 1], [], []>} : vector<32x128xf32>, vector<128x64xf32>, vector<32x64xf32> -> vector<32x64xf32>
    %c3_33 = arith.constant 3 : index
    %c0_34 = arith.constant 0 : index
    %c0_35 = arith.constant 0 : index
    %36 = vector.load %arg4[%c3_33, %c0_34, %c0_35] : memref<9x64x128xf32, #tpu.memory_space<vmem>>, vector<1x64x128xf32>
    %37 = vector.shape_cast %36 : vector<1x64x128xf32> to vector<64x128xf32>
    %cst_36 = arith.constant dense<0.000000e+00> : vector<32x128xf32>
    %38 = tpu.matmul %35, %37, %cst_36 {dimension_numbers = #tpu.dot_dimension_numbers<[1], [0], [0], [1], [0, 0, 1, 1], [], []>} : vector<32x64xf32>, vector<64x128xf32>, vector<32x128xf32> -> vector<32x128xf32>
    %39 = arith.addf %32, %38 : vector<32x128xf32>
    %c4 = arith.constant 4 : index
    %c0_37 = arith.constant 0 : index
    %c0_38 = arith.constant 0 : index
    %40 = vector.load %arg3[%c4, %c0_37, %c0_38] : memref<9x32x128xf32, #tpu.memory_space<vmem>>, vector<1x32x128xf32>
    %41 = vector.shape_cast %40 : vector<1x32x128xf32> to vector<32x128xf32>
    %cst_39 = arith.constant dense<0.000000e+00> : vector<32x64xf32>
    %42 = tpu.matmul %41, %10, %cst_39 {dimension_numbers = #tpu.dot_dimension_numbers<[1], [0], [0], [1], [0, 0, 1, 1], [], []>} : vector<32x128xf32>, vector<128x64xf32>, vector<32x64xf32> -> vector<32x64xf32>
    %c4_40 = arith.constant 4 : index
    %c0_41 = arith.constant 0 : index
    %c0_42 = arith.constant 0 : index
    %43 = vector.load %arg4[%c4_40, %c0_41, %c0_42] : memref<9x64x128xf32, #tpu.memory_space<vmem>>, vector<1x64x128xf32>
    %44 = vector.shape_cast %43 : vector<1x64x128xf32> to vector<64x128xf32>
    %cst_43 = arith.constant dense<0.000000e+00> : vector<32x128xf32>
    %45 = tpu.matmul %42, %44, %cst_43 {dimension_numbers = #tpu.dot_dimension_numbers<[1], [0], [0], [1], [0, 0, 1, 1], [], []>} : vector<32x64xf32>, vector<64x128xf32>, vector<32x128xf32> -> vector<32x128xf32>
    %46 = arith.addf %39, %45 : vector<32x128xf32>
    %c5 = arith.constant 5 : index
    %c0_44 = arith.constant 0 : index
    %c0_45 = arith.constant 0 : index
    %47 = vector.load %arg3[%c5, %c0_44, %c0_45] : memref<9x32x128xf32, #tpu.memory_space<vmem>>, vector<1x32x128xf32>
    %48 = vector.shape_cast %47 : vector<1x32x128xf32> to vector<32x128xf32>
    %cst_46 = arith.constant dense<0.000000e+00> : vector<32x64xf32>
    %49 = tpu.matmul %48, %10, %cst_46 {dimension_numbers = #tpu.dot_dimension_numbers<[1], [0], [0], [1], [0, 0, 1, 1], [], []>} : vector<32x128xf32>, vector<128x64xf32>, vector<32x64xf32> -> vector<32x64xf32>
    %c5_47 = arith.constant 5 : index
    %c0_48 = arith.constant 0 : index
    %c0_49 = arith.constant 0 : index
    %50 = vector.load %arg4[%c5_47, %c0_48, %c0_49] : memref<9x64x128xf32, #tpu.memory_space<vmem>>, vector<1x64x128xf32>
    %51 = vector.shape_cast %50 : vector<1x64x128xf32> to vector<64x128xf32>
    %cst_50 = arith.constant dense<0.000000e+00> : vector<32x128xf32>
    %52 = tpu.matmul %49, %51, %cst_50 {dimension_numbers = #tpu.dot_dimension_numbers<[1], [0], [0], [1], [0, 0, 1, 1], [], []>} : vector<32x64xf32>, vector<64x128xf32>, vector<32x128xf32> -> vector<32x128xf32>
    %53 = arith.addf %46, %52 : vector<32x128xf32>
    %c6 = arith.constant 6 : index
    %c0_51 = arith.constant 0 : index
    %c0_52 = arith.constant 0 : index
    %54 = vector.load %arg3[%c6, %c0_51, %c0_52] : memref<9x32x128xf32, #tpu.memory_space<vmem>>, vector<1x32x128xf32>
    %55 = vector.shape_cast %54 : vector<1x32x128xf32> to vector<32x128xf32>
    %cst_53 = arith.constant dense<0.000000e+00> : vector<32x64xf32>
    %56 = tpu.matmul %55, %10, %cst_53 {dimension_numbers = #tpu.dot_dimension_numbers<[1], [0], [0], [1], [0, 0, 1, 1], [], []>} : vector<32x128xf32>, vector<128x64xf32>, vector<32x64xf32> -> vector<32x64xf32>
    %c6_54 = arith.constant 6 : index
    %c0_55 = arith.constant 0 : index
    %c0_56 = arith.constant 0 : index
    %57 = vector.load %arg4[%c6_54, %c0_55, %c0_56] : memref<9x64x128xf32, #tpu.memory_space<vmem>>, vector<1x64x128xf32>
    %58 = vector.shape_cast %57 : vector<1x64x128xf32> to vector<64x128xf32>
    %cst_57 = arith.constant dense<0.000000e+00> : vector<32x128xf32>
    %59 = tpu.matmul %56, %58, %cst_57 {dimension_numbers = #tpu.dot_dimension_numbers<[1], [0], [0], [1], [0, 0, 1, 1], [], []>} : vector<32x64xf32>, vector<64x128xf32>, vector<32x128xf32> -> vector<32x128xf32>
    %60 = arith.addf %53, %59 : vector<32x128xf32>
    %c7 = arith.constant 7 : index
    %c0_58 = arith.constant 0 : index
    %c0_59 = arith.constant 0 : index
    %61 = vector.load %arg3[%c7, %c0_58, %c0_59] : memref<9x32x128xf32, #tpu.memory_space<vmem>>, vector<1x32x128xf32>
    %62 = vector.shape_cast %61 : vector<1x32x128xf32> to vector<32x128xf32>
    %cst_60 = arith.constant dense<0.000000e+00> : vector<32x64xf32>
    %63 = tpu.matmul %62, %10, %cst_60 {dimension_numbers = #tpu.dot_dimension_numbers<[1], [0], [0], [1], [0, 0, 1, 1], [], []>} : vector<32x128xf32>, vector<128x64xf32>, vector<32x64xf32> -> vector<32x64xf32>
    %c7_61 = arith.constant 7 : index
    %c0_62 = arith.constant 0 : index
    %c0_63 = arith.constant 0 : index
    %64 = vector.load %arg4[%c7_61, %c0_62, %c0_63] : memref<9x64x128xf32, #tpu.memory_space<vmem>>, vector<1x64x128xf32>
    %65 = vector.shape_cast %64 : vector<1x64x128xf32> to vector<64x128xf32>
    %cst_64 = arith.constant dense<0.000000e+00> : vector<32x128xf32>
    %66 = tpu.matmul %63, %65, %cst_64 {dimension_numbers = #tpu.dot_dimension_numbers<[1], [0], [0], [1], [0, 0, 1, 1], [], []>} : vector<32x64xf32>, vector<64x128xf32>, vector<32x128xf32> -> vector<32x128xf32>
    %67 = arith.addf %60, %66 : vector<32x128xf32>
    %c8 = arith.constant 8 : index
    %c0_65 = arith.constant 0 : index
    %c0_66 = arith.constant 0 : index
    %68 = vector.load %arg3[%c8, %c0_65, %c0_66] : memref<9x32x128xf32, #tpu.memory_space<vmem>>, vector<1x32x128xf32>
    %69 = vector.shape_cast %68 : vector<1x32x128xf32> to vector<32x128xf32>
    %cst_67 = arith.constant dense<0.000000e+00> : vector<32x64xf32>
    %70 = tpu.matmul %69, %10, %cst_67 {dimension_numbers = #tpu.dot_dimension_numbers<[1], [0], [0], [1], [0, 0, 1, 1], [], []>} : vector<32x128xf32>, vector<128x64xf32>, vector<32x64xf32> -> vector<32x64xf32>
    %c8_68 = arith.constant 8 : index
    %c0_69 = arith.constant 0 : index
    %c0_70 = arith.constant 0 : index
    %71 = vector.load %arg4[%c8_68, %c0_69, %c0_70] : memref<9x64x128xf32, #tpu.memory_space<vmem>>, vector<1x64x128xf32>
    %72 = vector.shape_cast %71 : vector<1x64x128xf32> to vector<64x128xf32>
    %cst_71 = arith.constant dense<0.000000e+00> : vector<32x128xf32>
    %73 = tpu.matmul %70, %72, %cst_71 {dimension_numbers = #tpu.dot_dimension_numbers<[1], [0], [0], [1], [0, 0, 1, 1], [], []>} : vector<32x64xf32>, vector<64x128xf32>, vector<32x128xf32> -> vector<32x128xf32>
    %74 = arith.addf %67, %73 : vector<32x128xf32>
    %c0_72 = arith.constant 0 : index
    %c0_73 = arith.constant 0 : index
    %75 = vector.load %arg5[%c0_72, %c0_73] : memref<1x128xf32, #tpu.memory_space<vmem>>, vector<1x128xf32>
    %76 = vector.broadcast %75 : vector<1x128xf32> to vector<32x128xf32>
    %77 = arith.addf %74, %76 : vector<32x128xf32>
    %cst_74 = arith.constant 0.000000e+00 : f32
    %78 = vector.broadcast %cst_74 : f32 to vector<32x128xf32>
    %79 = arith.cmpf oge, %77, %78 : vector<32x128xf32>
    %cst_75 = arith.constant 0.00999999977 : f32
    %80 = vector.broadcast %cst_75 : f32 to vector<32x128xf32>
    %81 = arith.mulf %80, %77 : vector<32x128xf32>
    %82 = arith.select %79, %77, %81 : vector<32x128xi1>, vector<32x128xf32>
    %cst_76 = arith.constant 0.000000e+00 : f32
    %83 = vector.broadcast %cst_76 : f32 to vector<8x256xf32>
    %c0_77 = arith.constant 0 : index
    %c0_78 = arith.constant 0 : index
    %c0_79 = arith.constant 0 : index
    %84 = vector.load %arg6[%c0_77, %c0_78, %c0_79] : memref<9x8x32xf32, #tpu.memory_space<vmem>>, vector<1x8x32xf32>
    %85 = vector.shape_cast %84 : vector<1x8x32xf32> to vector<8x32xf32>
    %cst_80 = arith.constant dense<0.000000e+00> : vector<8x128xf32>
    %86 = tpu.matmul %85, %82, %cst_80 {dimension_numbers = #tpu.dot_dimension_numbers<[1], [0], [0], [1], [0, 0, 1, 1], [], []>} : vector<8x32xf32>, vector<32x128xf32>, vector<8x128xf32> -> vector<8x128xf32>
    %c0_81 = arith.constant 0 : index
    %c0_82 = arith.constant 0 : index
    %c0_83 = arith.constant 0 : index
    %87 = vector.load %arg7[%c0_81, %c0_82, %c0_83] : memref<9x128x256xf32, #tpu.memory_space<vmem>>, vector<1x128x256xf32>
    %88 = vector.shape_cast %87 : vector<1x128x256xf32> to vector<128x256xf32>
    %cst_84 = arith.constant dense<0.000000e+00> : vector<8x256xf32>
    %89 = tpu.matmul %86, %88, %cst_84 {dimension_numbers = #tpu.dot_dimension_numbers<[1], [0], [0], [1], [0, 0, 1, 1], [], []>} : vector<8x128xf32>, vector<128x256xf32>, vector<8x256xf32> -> vector<8x256xf32>
    %90 = arith.addf %83, %89 : vector<8x256xf32>
    %c1_85 = arith.constant 1 : index
    %c0_86 = arith.constant 0 : index
    %c0_87 = arith.constant 0 : index
    %91 = vector.load %arg6[%c1_85, %c0_86, %c0_87] : memref<9x8x32xf32, #tpu.memory_space<vmem>>, vector<1x8x32xf32>
    %92 = vector.shape_cast %91 : vector<1x8x32xf32> to vector<8x32xf32>
    %cst_88 = arith.constant dense<0.000000e+00> : vector<8x128xf32>
    %93 = tpu.matmul %92, %82, %cst_88 {dimension_numbers = #tpu.dot_dimension_numbers<[1], [0], [0], [1], [0, 0, 1, 1], [], []>} : vector<8x32xf32>, vector<32x128xf32>, vector<8x128xf32> -> vector<8x128xf32>
    %c1_89 = arith.constant 1 : index
    %c0_90 = arith.constant 0 : index
    %c0_91 = arith.constant 0 : index
    %94 = vector.load %arg7[%c1_89, %c0_90, %c0_91] : memref<9x128x256xf32, #tpu.memory_space<vmem>>, vector<1x128x256xf32>
    %95 = vector.shape_cast %94 : vector<1x128x256xf32> to vector<128x256xf32>
    %cst_92 = arith.constant dense<0.000000e+00> : vector<8x256xf32>
    %96 = tpu.matmul %93, %95, %cst_92 {dimension_numbers = #tpu.dot_dimension_numbers<[1], [0], [0], [1], [0, 0, 1, 1], [], []>} : vector<8x128xf32>, vector<128x256xf32>, vector<8x256xf32> -> vector<8x256xf32>
    %97 = arith.addf %90, %96 : vector<8x256xf32>
    %c2_93 = arith.constant 2 : index
    %c0_94 = arith.constant 0 : index
    %c0_95 = arith.constant 0 : index
    %98 = vector.load %arg6[%c2_93, %c0_94, %c0_95] : memref<9x8x32xf32, #tpu.memory_space<vmem>>, vector<1x8x32xf32>
    %99 = vector.shape_cast %98 : vector<1x8x32xf32> to vector<8x32xf32>
    %cst_96 = arith.constant dense<0.000000e+00> : vector<8x128xf32>
    %100 = tpu.matmul %99, %82, %cst_96 {dimension_numbers = #tpu.dot_dimension_numbers<[1], [0], [0], [1], [0, 0, 1, 1], [], []>} : vector<8x32xf32>, vector<32x128xf32>, vector<8x128xf32> -> vector<8x128xf32>
    %c2_97 = arith.constant 2 : index
    %c0_98 = arith.constant 0 : index
    %c0_99 = arith.constant 0 : index
    %101 = vector.load %arg7[%c2_97, %c0_98, %c0_99] : memref<9x128x256xf32, #tpu.memory_space<vmem>>, vector<1x128x256xf32>
    %102 = vector.shape_cast %101 : vector<1x128x256xf32> to vector<128x256xf32>
    %cst_100 = arith.constant dense<0.000000e+00> : vector<8x256xf32>
    %103 = tpu.matmul %100, %102, %cst_100 {dimension_numbers = #tpu.dot_dimension_numbers<[1], [0], [0], [1], [0, 0, 1, 1], [], []>} : vector<8x128xf32>, vector<128x256xf32>, vector<8x256xf32> -> vector<8x256xf32>
    %104 = arith.addf %97, %103 : vector<8x256xf32>
    %c3_101 = arith.constant 3 : index
    %c0_102 = arith.constant 0 : index
    %c0_103 = arith.constant 0 : index
    %105 = vector.load %arg6[%c3_101, %c0_102, %c0_103] : memref<9x8x32xf32, #tpu.memory_space<vmem>>, vector<1x8x32xf32>
    %106 = vector.shape_cast %105 : vector<1x8x32xf32> to vector<8x32xf32>
    %cst_104 = arith.constant dense<0.000000e+00> : vector<8x128xf32>
    %107 = tpu.matmul %106, %82, %cst_104 {dimension_numbers = #tpu.dot_dimension_numbers<[1], [0], [0], [1], [0, 0, 1, 1], [], []>} : vector<8x32xf32>, vector<32x128xf32>, vector<8x128xf32> -> vector<8x128xf32>
    %c3_105 = arith.constant 3 : index
    %c0_106 = arith.constant 0 : index
    %c0_107 = arith.constant 0 : index
    %108 = vector.load %arg7[%c3_105, %c0_106, %c0_107] : memref<9x128x256xf32, #tpu.memory_space<vmem>>, vector<1x128x256xf32>
    %109 = vector.shape_cast %108 : vector<1x128x256xf32> to vector<128x256xf32>
    %cst_108 = arith.constant dense<0.000000e+00> : vector<8x256xf32>
    %110 = tpu.matmul %107, %109, %cst_108 {dimension_numbers = #tpu.dot_dimension_numbers<[1], [0], [0], [1], [0, 0, 1, 1], [], []>} : vector<8x128xf32>, vector<128x256xf32>, vector<8x256xf32> -> vector<8x256xf32>
    %111 = arith.addf %104, %110 : vector<8x256xf32>
    %c4_109 = arith.constant 4 : index
    %c0_110 = arith.constant 0 : index
    %c0_111 = arith.constant 0 : index
    %112 = vector.load %arg6[%c4_109, %c0_110, %c0_111] : memref<9x8x32xf32, #tpu.memory_space<vmem>>, vector<1x8x32xf32>
    %113 = vector.shape_cast %112 : vector<1x8x32xf32> to vector<8x32xf32>
    %cst_112 = arith.constant dense<0.000000e+00> : vector<8x128xf32>
    %114 = tpu.matmul %113, %82, %cst_112 {dimension_numbers = #tpu.dot_dimension_numbers<[1], [0], [0], [1], [0, 0, 1, 1], [], []>} : vector<8x32xf32>, vector<32x128xf32>, vector<8x128xf32> -> vector<8x128xf32>
    %c4_113 = arith.constant 4 : index
    %c0_114 = arith.constant 0 : index
    %c0_115 = arith.constant 0 : index
    %115 = vector.load %arg7[%c4_113, %c0_114, %c0_115] : memref<9x128x256xf32, #tpu.memory_space<vmem>>, vector<1x128x256xf32>
    %116 = vector.shape_cast %115 : vector<1x128x256xf32> to vector<128x256xf32>
    %cst_116 = arith.constant dense<0.000000e+00> : vector<8x256xf32>
    %117 = tpu.matmul %114, %116, %cst_116 {dimension_numbers = #tpu.dot_dimension_numbers<[1], [0], [0], [1], [0, 0, 1, 1], [], []>} : vector<8x128xf32>, vector<128x256xf32>, vector<8x256xf32> -> vector<8x256xf32>
    %118 = arith.addf %111, %117 : vector<8x256xf32>
    %c5_117 = arith.constant 5 : index
    %c0_118 = arith.constant 0 : index
    %c0_119 = arith.constant 0 : index
    %119 = vector.load %arg6[%c5_117, %c0_118, %c0_119] : memref<9x8x32xf32, #tpu.memory_space<vmem>>, vector<1x8x32xf32>
    %120 = vector.shape_cast %119 : vector<1x8x32xf32> to vector<8x32xf32>
    %cst_120 = arith.constant dense<0.000000e+00> : vector<8x128xf32>
    %121 = tpu.matmul %120, %82, %cst_120 {dimension_numbers = #tpu.dot_dimension_numbers<[1], [0], [0], [1], [0, 0, 1, 1], [], []>} : vector<8x32xf32>, vector<32x128xf32>, vector<8x128xf32> -> vector<8x128xf32>
    %c5_121 = arith.constant 5 : index
    %c0_122 = arith.constant 0 : index
    %c0_123 = arith.constant 0 : index
    %122 = vector.load %arg7[%c5_121, %c0_122, %c0_123] : memref<9x128x256xf32, #tpu.memory_space<vmem>>, vector<1x128x256xf32>
    %123 = vector.shape_cast %122 : vector<1x128x256xf32> to vector<128x256xf32>
    %cst_124 = arith.constant dense<0.000000e+00> : vector<8x256xf32>
    %124 = tpu.matmul %121, %123, %cst_124 {dimension_numbers = #tpu.dot_dimension_numbers<[1], [0], [0], [1], [0, 0, 1, 1], [], []>} : vector<8x128xf32>, vector<128x256xf32>, vector<8x256xf32> -> vector<8x256xf32>
    %125 = arith.addf %118, %124 : vector<8x256xf32>
    %c6_125 = arith.constant 6 : index
    %c0_126 = arith.constant 0 : index
    %c0_127 = arith.constant 0 : index
    %126 = vector.load %arg6[%c6_125, %c0_126, %c0_127] : memref<9x8x32xf32, #tpu.memory_space<vmem>>, vector<1x8x32xf32>
    %127 = vector.shape_cast %126 : vector<1x8x32xf32> to vector<8x32xf32>
    %cst_128 = arith.constant dense<0.000000e+00> : vector<8x128xf32>
    %128 = tpu.matmul %127, %82, %cst_128 {dimension_numbers = #tpu.dot_dimension_numbers<[1], [0], [0], [1], [0, 0, 1, 1], [], []>} : vector<8x32xf32>, vector<32x128xf32>, vector<8x128xf32> -> vector<8x128xf32>
    %c6_129 = arith.constant 6 : index
    %c0_130 = arith.constant 0 : index
    %c0_131 = arith.constant 0 : index
    %129 = vector.load %arg7[%c6_129, %c0_130, %c0_131] : memref<9x128x256xf32, #tpu.memory_space<vmem>>, vector<1x128x256xf32>
    %130 = vector.shape_cast %129 : vector<1x128x256xf32> to vector<128x256xf32>
    %cst_132 = arith.constant dense<0.000000e+00> : vector<8x256xf32>
    %131 = tpu.matmul %128, %130, %cst_132 {dimension_numbers = #tpu.dot_dimension_numbers<[1], [0], [0], [1], [0, 0, 1, 1], [], []>} : vector<8x128xf32>, vector<128x256xf32>, vector<8x256xf32> -> vector<8x256xf32>
    %132 = arith.addf %125, %131 : vector<8x256xf32>
    %c7_133 = arith.constant 7 : index
    %c0_134 = arith.constant 0 : index
    %c0_135 = arith.constant 0 : index
    %133 = vector.load %arg6[%c7_133, %c0_134, %c0_135] : memref<9x8x32xf32, #tpu.memory_space<vmem>>, vector<1x8x32xf32>
    %134 = vector.shape_cast %133 : vector<1x8x32xf32> to vector<8x32xf32>
    %cst_136 = arith.constant dense<0.000000e+00> : vector<8x128xf32>
    %135 = tpu.matmul %134, %82, %cst_136 {dimension_numbers = #tpu.dot_dimension_numbers<[1], [0], [0], [1], [0, 0, 1, 1], [], []>} : vector<8x32xf32>, vector<32x128xf32>, vector<8x128xf32> -> vector<8x128xf32>
    %c7_137 = arith.constant 7 : index
    %c0_138 = arith.constant 0 : index
    %c0_139 = arith.constant 0 : index
    %136 = vector.load %arg7[%c7_137, %c0_138, %c0_139] : memref<9x128x256xf32, #tpu.memory_space<vmem>>, vector<1x128x256xf32>
    %137 = vector.shape_cast %136 : vector<1x128x256xf32> to vector<128x256xf32>
    %cst_140 = arith.constant dense<0.000000e+00> : vector<8x256xf32>
    %138 = tpu.matmul %135, %137, %cst_140 {dimension_numbers = #tpu.dot_dimension_numbers<[1], [0], [0], [1], [0, 0, 1, 1], [], []>} : vector<8x128xf32>, vector<128x256xf32>, vector<8x256xf32> -> vector<8x256xf32>
    %139 = arith.addf %132, %138 : vector<8x256xf32>
    %c8_141 = arith.constant 8 : index
    %c0_142 = arith.constant 0 : index
    %c0_143 = arith.constant 0 : index
    %140 = vector.load %arg6[%c8_141, %c0_142, %c0_143] : memref<9x8x32xf32, #tpu.memory_space<vmem>>, vector<1x8x32xf32>
    %141 = vector.shape_cast %140 : vector<1x8x32xf32> to vector<8x32xf32>
    %cst_144 = arith.constant dense<0.000000e+00> : vector<8x128xf32>
    %142 = tpu.matmul %141, %82, %cst_144 {dimension_numbers = #tpu.dot_dimension_numbers<[1], [0], [0], [1], [0, 0, 1, 1], [], []>} : vector<8x32xf32>, vector<32x128xf32>, vector<8x128xf32> -> vector<8x128xf32>
    %c8_145 = arith.constant 8 : index
    %c0_146 = arith.constant 0 : index
    %c0_147 = arith.constant 0 : index
    %143 = vector.load %arg7[%c8_145, %c0_146, %c0_147] : memref<9x128x256xf32, #tpu.memory_space<vmem>>, vector<1x128x256xf32>
    %144 = vector.shape_cast %143 : vector<1x128x256xf32> to vector<128x256xf32>
    %cst_148 = arith.constant dense<0.000000e+00> : vector<8x256xf32>
    %145 = tpu.matmul %142, %144, %cst_148 {dimension_numbers = #tpu.dot_dimension_numbers<[1], [0], [0], [1], [0, 0, 1, 1], [], []>} : vector<8x128xf32>, vector<128x256xf32>, vector<8x256xf32> -> vector<8x256xf32>
    %146 = arith.addf %139, %145 : vector<8x256xf32>
    %c0_149 = arith.constant 0 : index
    %c0_150 = arith.constant 0 : index
    %147 = vector.load %arg8[%c0_149, %c0_150] : memref<1x256xf32, #tpu.memory_space<vmem>>, vector<1x256xf32>
    %148 = vector.broadcast %147 : vector<1x256xf32> to vector<8x256xf32>
    %149 = arith.addf %146, %148 : vector<8x256xf32>
    %cst_151 = arith.constant 0.000000e+00 : f32
    %150 = vector.broadcast %cst_151 : f32 to vector<8x256xf32>
    %151 = arith.cmpf oge, %149, %150 : vector<8x256xf32>
    %cst_152 = arith.constant 0.00999999977 : f32
    %152 = vector.broadcast %cst_152 : f32 to vector<8x256xf32>
    %153 = arith.mulf %152, %149 : vector<8x256xf32>
    %154 = arith.select %151, %149, %153 : vector<8x256xi1>, vector<8x256xf32>
    %c0_153 = arith.constant 0 : index
    %c0_154 = arith.constant 0 : index
    %155 = vector.load %arg9[%c0_153, %c0_154] : memref<8x256xf32, #tpu.memory_space<vmem>>, vector<8x256xf32>
    %156 = arith.mulf %154, %155 : vector<8x256xf32>
    %c0_155 = arith.constant 0 : index
    %c0_156 = arith.constant 0 : index
    %157 = vector.load %arg11[%c0_155, %c0_156] : memref<2x8xf32, #tpu.memory_space<vmem>>, vector<2x8xf32>
    %cst_157 = arith.constant dense<0.000000e+00> : vector<2x256xf32>
    %158 = tpu.matmul %157, %156, %cst_157 {dimension_numbers = #tpu.dot_dimension_numbers<[1], [0], [0], [1], [0, 0, 1, 1], [], []>} : vector<2x8xf32>, vector<8x256xf32>, vector<2x256xf32> -> vector<2x256xf32>
    %cst_158 = arith.constant dense<0.000000e+00> : vector<2xf32>
    %159 = vector.multi_reduction <add>, %158, %cst_158 [1] : vector<2x256xf32> to vector<2xf32>
    %160 = vector.shape_cast %159 : vector<2xf32> to vector<2x1xf32>
    %c0_159 = arith.constant 0 : index
    %c0_160 = arith.constant 0 : index
    %161 = vector.load %arg10[%c0_159, %c0_160] : memref<1x1xf32, #tpu.memory_space<vmem>>, vector<1x1xf32>
    %162 = vector.broadcast %161 : vector<1x1xf32> to vector<2x1xf32>
    %163 = arith.addf %160, %162 : vector<2x1xf32>
    %c0_161 = arith.constant 0 : index
    %c0_162 = arith.constant 0 : index
    %164 = vector.load %arg12[%c0_161, %c0_162] : memref<2x1xf32, #tpu.memory_space<vmem>>, vector<2x1xf32>
    tpu.vector_store %arg12[%c0_161, %c0_162], %163 {strides = array<i32>} : memref<2x1xf32, #tpu.memory_space<vmem>>, vector<2x1xf32>,
    return
  }
}

</mosaic_0001>

<llo_original>
// kernel: tile.9
$region0: #{tile.9}
  %s0 = inlined_call_operand.vmem [shape: f32[2,4,256], index: 0, kind: input, shape index: {}]
  %s1 = inlined_call_operand.vmem [shape: f32[8,256], index: 1, kind: output, shape index: {}]
  $region1: #{tile.9} parent=0
    #allocation0 [shape = 'u8[16384]{0}', space=vmem, size = 0x4000, scoped, tag = 'scoped mem for input reshape']
    %s3 = sshllo.u32 0, 4
    %s4 = smul.addr 4, 3
    %s5 = scalar_lea.vmem %s0, %s4
    %v6 = vld [vmem:[%s5] sm:%s3]
    %s7 = scalar_lea.vmem [#allocation0], 24
    %8 = vst [vmem:[%s7] sm:%s3] %v6
    %s9 = smul.addr 4, 2
    %s10 = scalar_lea.vmem %s0, %s9
    %v11 = vld [vmem:[%s10] sm:%s3]
    %s12 = scalar_lea.vmem [#allocation0], 16
    %13 = vst [vmem:[%s12] sm:%s3] %v11
    %s14 = scalar_lea.vmem %s0, 4
    %v15 = vld [vmem:[%s14] sm:%s3]
    %s16 = scalar_lea.vmem [#allocation0], 8
    %17 = vst [vmem:[%s16] sm:%s3] %v15
    %v18 = vld [vmem:[%s0] sm:%s3]
    %19 = vst [vmem:[#allocation0] sm:%s3] %v18
    %v20 = vld [vmem:[#allocation0] sm:$0xf]
    %21 = vst [vmem:[%s1] sm:$0xf] %v20
    %s22 = scalar_lea.vmem [#allocation0], 8
    %v23 = vld [vmem:[%s22] sm:$0xf]
    %s24 = scalar_lea.vmem %s1, 8
    %25 = vst [vmem:[%s24] sm:$0xf] %v23
    %s26 = scalar_lea.vmem [#allocation0], 16
    %v27 = vld [vmem:[%s26] sm:$0xf]
    %s28 = scalar_lea.vmem %s1, 4
    %29 = vst [vmem:[%s28] sm:$0xf] %v27
    %s30 = scalar_lea.vmem [#allocation0], 24
    %v31 = vld [vmem:[%s30] sm:$0xf]
    %s32 = scalar_lea.vmem %s1, 12
    %33 = vst [vmem:[%s32] sm:$0xf] %v31

// kernel: conv_discriminator.1
$region0: #{conv_discriminator.1}
  #allocation0 [shape = 'u32[]', space=smem, size = 0x4, offset = 0x4, fixed_abs, tag = 'smem constant byte address 0x4 - core index']
  #allocation1 [shape = 'u32[144,128]{1,0:T(1,128)}', space=vmem, size = 0x12000, scoped, tag = 'internal scratch']
  #allocation2 [shape = 'f32[1,1]{1,0:T(1,128)S(1)}', space=vmem, size = 0x200, scoped, tag = 'scoped memory for conv_discriminator.1']
  %s0 = inlined_call_operand.vmem [shape: f32[128,9], index: 0, kind: input, shape index: {}]
  %s1 = inlined_call_operand.hbm [shape: f32[9,64], index: 1, kind: input, shape index: {}]
  %s2 = inlined_call_operand.hbm [shape: f32[1,64], index: 2, kind: input, shape index: {}]
  %s3 = inlined_call_operand.hbm [shape: f32[9,32,128], index: 3, kind: input, shape index: {}]
  %s4 = inlined_call_operand.hbm [shape: f32[9,64,128], index: 4, kind: input, shape index: {}]
  %s5 = inlined_call_operand.hbm [shape: f32[1,128], index: 5, kind: input, shape index: {}]
  %s6 = inlined_call_operand.hbm [shape: f32[9,8,32], index: 6, kind: input, shape index: {}]
  %s7 = inlined_call_operand.hbm [shape: f32[9,128,256], index: 7, kind: input, shape index: {}]
  %s8 = inlined_call_operand.hbm [shape: f32[1,256], index: 8, kind: input, shape index: {}]
  %s9 = inlined_call_operand.vmem [shape: f32[8,256], index: 9, kind: input, shape index: {}]
  %s10 = inlined_call_operand.<no memory space> [shape: f32[1,1], index: 10, kind: input, shape index: {}]
  %s11 = inlined_call_operand.hbm [shape: f32[2,8], index: 11, kind: input, shape index: {}]
  %s12 = inlined_call_operand.vmem [shape: f32[2,1], index: 12, kind: output, shape index: {}]
  %s13 = sld [smem:[#allocation0]]
  $region94: #{conv_discriminator.1} parent=0
    _
  %s15 = ssub.s32 1, %s13
  %s16 = scalar_select 0, %s15, %s13
  %v17 = vstv %s10
  %18 = vst [vmem:[#allocation2] sm:$0x1] %v17
  $region1: #{conv_discriminator.1} parent=0
    #allocation3 [shape = 'u8[8192]{0}', space=vmem, size = 0x2000, scoped, tag = 'input window, operand 1, single buffered']
    #allocation4 [shape = 's32[1]{0}', space=sflag, size = 0x4, scoped, tag = 'scoped memory for conv_discriminator.1']
    #allocation5 [shape = 'u8[512]{0}', space=vmem, size = 0x400, scoped, tag = 'input window, operand 2, single buffered']
    #allocation6 [shape = 's32[1]{0}', space=sflag, size = 0x4, scoped, tag = 'scoped memory for conv_discriminator.1']
    #allocation7 [shape = 'u8[147456]{0}', space=vmem, size = 0x24000, scoped, tag = 'input window, operand 3, single buffered']
    #allocation8 [shape = 'u8[294912]{0}', space=vmem, size = 0x48000, scoped, tag = 'input window, operand 4, single buffered']
    #allocation9 [shape = 's32[1]{0}', space=sflag, size = 0x4, scoped, tag = 'scoped memory for conv_discriminator.1']
    #allocation10 [shape = 'u8[512]{0}', space=vmem, size = 0x400, scoped, tag = 'input window, operand 5, single buffered']
    #allocation11 [shape = 'u8[36864]{0}', space=vmem, size = 0x9000, scoped, tag = 'input window, operand 6, single buffered']
    #allocation12 [shape = 's32[1]{0}', space=sflag, size = 0x4, scoped, tag = 'scoped memory for conv_discriminator.1']
    #allocation13 [shape = 'u8[1179648]{0}', space=vmem, size = 0x120000, scoped, tag = 'input window, operand 7, single buffered']
    #allocation14 [shape = 'u8[1024]{0}', space=vmem, size = 0x400, scoped, tag = 'input window, operand 8, single buffered']
    #allocation15 [shape = 's32[1]{0}', space=sflag, size = 0x4, scoped, tag = 'scoped memory for conv_discriminator.1']
    #allocation16 [shape = 'u8[1024]{0}', space=vmem, size = 0x400, scoped, tag = 'input window, operand 11, single buffered']
    %19 = vsyncpa [#allocation4], 0
    %20 = vsyncpa [#allocation6], 0
    %21 = vsyncpa [#allocation9], 0
    %22 = vsyncpa [#allocation12], 0
    %23 = vsyncpa [#allocation15], 0
    // Predicated region
    $region2: #{conv_discriminator.1} parent=1 // pred_check
      _
    $region3: #{conv_discriminator.1} parent=1 // pred_check_branch
      %25 = sbr.rel (0) target = $region5
    $region4: #{conv_discriminator.1} parent=1 // pred_region
      _
    $region5: #{conv_discriminator.1} parent=1 // pred_fallthru
      _
    // Predicated region
    $region6: #{conv_discriminator.1} parent=1 // pred_check
      _
    $region7: #{conv_discriminator.1} parent=1 // pred_check_branch
      %27 = sbr.rel (0) target = $region9
    $region8: #{conv_discriminator.1} parent=1 // pred_region
      %s29 = ssub.s32 256, 256
      %30 = vsyncadd [#allocation4], %s29
      %s31 = sshll.u32 [#allocation3], 4
      %s32 = int_to_ptr.vmem [resolvable:$true] %s31
      %37 = dma.hbm_to_vmem [thread:$0]  %s1, 256, %s32, [#allocation4], 128, 128, 8
    $region9: #{conv_discriminator.1} parent=1 // pred_fallthru
      _
    // Predicated region
    $region10: #{conv_discriminator.1} parent=1 // pred_check
      _
    $region11: #{conv_discriminator.1} parent=1 // pred_check_branch
      %39 = sbr.rel (0) target = $region13
    $region12: #{conv_discriminator.1} parent=1 // pred_region
      %s41 = ssub.s32 16, 16
      %42 = vsyncadd [#allocation6], %s41
      %s44 = sshll.u32 [#allocation5], 4
      %s45 = int_to_ptr.vmem [resolvable:$true] %s44
      %47 = dma.hbm_to_vmem [thread:$0]  %s2, 16, %s45, [#allocation6]
    $region13: #{conv_discriminator.1} parent=1 // pred_fallthru
      _
    // Predicated region
    $region14: #{conv_discriminator.1} parent=1 // pred_check
      _
    $region15: #{conv_discriminator.1} parent=1 // pred_check_branch
      %49 = sbr.rel (0) target = $region17
    $region16: #{conv_discriminator.1} parent=1 // pred_region
      %s51 = ssub.s32 4608, 4608
      %52 = vsyncadd [#allocation6], %s51
      %s53 = sshll.u32 [#allocation7], 4
      %s54 = int_to_ptr.vmem [resolvable:$true] %s53
      %59 = dma.hbm_to_vmem [thread:$0]  %s3, 4608, %s54, [#allocation6], 128, 128, 8
    $region17: #{conv_discriminator.1} parent=1 // pred_fallthru
      _
    // Predicated region
    $region18: #{conv_discriminator.1} parent=1 // pred_check
      _
    $region19: #{conv_discriminator.1} parent=1 // pred_check_branch
      %61 = sbr.rel (0) target = $region21
    $region20: #{conv_discriminator.1} parent=1 // pred_region
      %s63 = ssub.s32 9216, 9216
      %64 = vsyncadd [#allocation9], %s63
      %s65 = sshll.u32 [#allocation8], 4
      %s66 = int_to_ptr.vmem [resolvable:$true] %s65
      %71 = dma.hbm_to_vmem [thread:$0]  %s4, 9216, %s66, [#allocation9], 128, 128, 8
    $region21: #{conv_discriminator.1} parent=1 // pred_fallthru
      _
    // Predicated region
    $region22: #{conv_discriminator.1} parent=1 // pred_check
      _
    $region23: #{conv_discriminator.1} parent=1 // pred_check_branch
      %73 = sbr.rel (0) target = $region25
    $region24: #{conv_discriminator.1} parent=1 // pred_region
      %s75 = ssub.s32 16, 16
      %76 = vsyncadd [#allocation9], %s75
      %s78 = sshll.u32 [#allocation10], 4
      %s79 = int_to_ptr.vmem [resolvable:$true] %s78
      %81 = dma.hbm_to_vmem [thread:$0]  %s5, 16, %s79, [#allocation9]
    $region25: #{conv_discriminator.1} parent=1 // pred_fallthru
      _
    // Predicated region
    $region26: #{conv_discriminator.1} parent=1 // pred_check
      _
    $region27: #{conv_discriminator.1} parent=1 // pred_check_branch
      %83 = sbr.rel (0) target = $region29
    $region28: #{conv_discriminator.1} parent=1 // pred_region
      %s85 = ssub.s32 1152, 1152
      %86 = vsyncadd [#allocation12], %s85
      %s87 = sshll.u32 [#allocation11], 4
      %s88 = int_to_ptr.vmem [resolvable:$true] %s87
      %93 = dma.hbm_to_vmem [thread:$0]  %s6, 1152, %s88, [#allocation12], 128, 128, 8
    $region29: #{conv_discriminator.1} parent=1 // pred_fallthru
      _
    // Predicated region
    $region30: #{conv_discriminator.1} parent=1 // pred_check
      _
    $region31: #{conv_discriminator.1} parent=1 // pred_check_branch
      %95 = sbr.rel (0) target = $region33
    $region32: #{conv_discriminator.1} parent=1 // pred_region
      %s97 = ssub.s32 36864, 36864
      %98 = vsyncadd [#allocation12], %s97
      %s99 = sshll.u32 [#allocation13], 4
      %s100 = int_to_ptr.vmem [resolvable:$true] %s99
      %105 = dma.hbm_to_vmem [thread:$0]  %s7, 36864, %s100, [#allocation12], 256, 256, 16
    $region33: #{conv_discriminator.1} parent=1 // pred_fallthru
      _
    // Predicated region
    $region34: #{conv_discriminator.1} parent=1 // pred_check
      _
    $region35: #{conv_discriminator.1} parent=1 // pred_check_branch
      %107 = sbr.rel (0) target = $region37
    $region36: #{conv_discriminator.1} parent=1 // pred_region
      %s109 = ssub.s32 32, 32
      %110 = vsyncadd [#allocation15], %s109
      %s112 = sshll.u32 [#allocation14], 4
      %s113 = int_to_ptr.vmem [resolvable:$true] %s112
      %115 = dma.hbm_to_vmem [thread:$0]  %s8, 32, %s113, [#allocation15]
    $region37: #{conv_discriminator.1} parent=1 // pred_fallthru
      _
    // Predicated region
    $region38: #{conv_discriminator.1} parent=1 // pred_check
      _
    $region39: #{conv_discriminator.1} parent=1 // pred_check_branch
      %117 = sbr.rel (0) target = $region41
    $region40: #{conv_discriminator.1} parent=1 // pred_region
      _
    $region41: #{conv_discriminator.1} parent=1 // pred_fallthru
      _
    // Predicated region
    $region42: #{conv_discriminator.1} parent=1 // pred_check
      _
    $region43: #{conv_discriminator.1} parent=1 // pred_check_branch
      %119 = sbr.rel (0) target = $region45
    $region44: #{conv_discriminator.1} parent=1 // pred_region
      _
    $region45: #{conv_discriminator.1} parent=1 // pred_fallthru
      _
    // Predicated region
    $region46: #{conv_discriminator.1} parent=1 // pred_check
      _
    $region47: #{conv_discriminator.1} parent=1 // pred_check_branch
      %121 = sbr.rel (0) target = $region49
    $region48: #{conv_discriminator.1} parent=1 // pred_region
      %s123 = ssub.s32 32, 32
      %124 = vsyncadd [#allocation15], %s123
      %s126 = sshll.u32 [#allocation16], 4
      %s127 = int_to_ptr.vmem [resolvable:$true] %s126
      %129 = dma.hbm_to_vmem [thread:$0]  %s11, 32, %s127, [#allocation15]
    $region49: #{conv_discriminator.1} parent=1 // pred_fallthru
      _
    // Predicated region
    $region50: #{conv_discriminator.1} parent=1 // pred_check
      _
    $region51: #{conv_discriminator.1} parent=1 // pred_check_branch
      %131 = sbr.rel (0) target = $region53
    $region52: #{conv_discriminator.1} parent=1 // pred_region
      %132 = dma.done [#allocation4], 256
    $region53: #{conv_discriminator.1} parent=1 // pred_fallthru
      _
    // Predicated region
    $region54: #{conv_discriminator.1} parent=1 // pred_check
      _
    $region55: #{conv_discriminator.1} parent=1 // pred_check_branch
      %134 = sbr.rel (0) target = $region57
    $region56: #{conv_discriminator.1} parent=1 // pred_region
      %135 = dma.done [#allocation6], 16
    $region57: #{conv_discriminator.1} parent=1 // pred_fallthru
      _
    // Predicated region
    $region58: #{conv_discriminator.1} parent=1 // pred_check
      _
    $region59: #{conv_discriminator.1} parent=1 // pred_check_branch
      %137 = sbr.rel (0) target = $region61
    $region60: #{conv_discriminator.1} parent=1 // pred_region
      %138 = dma.done [#allocation6], 4608
    $region61: #{conv_discriminator.1} parent=1 // pred_fallthru
      _
    // Predicated region
    $region62: #{conv_discriminator.1} parent=1 // pred_check
      _
    $region63: #{conv_discriminator.1} parent=1 // pred_check_branch
      %140 = sbr.rel (0) target = $region65
    $region64: #{conv_discriminator.1} parent=1 // pred_region
      %141 = dma.done [#allocation9], 9216
    $region65: #{conv_discriminator.1} parent=1 // pred_fallthru
      _
    // Predicated region
    $region66: #{conv_discriminator.1} parent=1 // pred_check
      _
    $region67: #{conv_discriminator.1} parent=1 // pred_check_branch
      %143 = sbr.rel (0) target = $region69
    $region68: #{conv_discriminator.1} parent=1 // pred_region
      %144 = dma.done [#allocation9], 16
    $region69: #{conv_discriminator.1} parent=1 // pred_fallthru
      _
    // Predicated region
    $region70: #{conv_discriminator.1} parent=1 // pred_check
      _
    $region71: #{conv_discriminator.1} parent=1 // pred_check_branch
      %146 = sbr.rel (0) target = $region73
    $region72: #{conv_discriminator.1} parent=1 // pred_region
      %147 = dma.done [#allocation12], 1152
    $region73: #{conv_discriminator.1} parent=1 // pred_fallthru
      _
    // Predicated region
    $region74: #{conv_discriminator.1} parent=1 // pred_check
      _
    $region75: #{conv_discriminator.1} parent=1 // pred_check_branch
      %149 = sbr.rel (0) target = $region77
    $region76: #{conv_discriminator.1} parent=1 // pred_region
      %150 = dma.done [#allocation12], 36864
    $region77: #{conv_discriminator.1} parent=1 // pred_fallthru
      _
    // Predicated region
    $region78: #{conv_discriminator.1} parent=1 // pred_check
      _
    $region79: #{conv_discriminator.1} parent=1 // pred_check_branch
      %152 = sbr.rel (0) target = $region81
    $region80: #{conv_discriminator.1} parent=1 // pred_region
      %153 = dma.done [#allocation15], 32
    $region81: #{conv_discriminator.1} parent=1 // pred_fallthru
      _
    // Predicated region
    $region82: #{conv_discriminator.1} parent=1 // pred_check
      _
    $region83: #{conv_discriminator.1} parent=1 // pred_check_branch
      %155 = sbr.rel (0) target = $region85
    $region84: #{conv_discriminator.1} parent=1 // pred_region
      %156 = dma.done [#allocation15], 32
    $region85: #{conv_discriminator.1} parent=1 // pred_fallthru
      _
    %v157 = vld [vmem:[%s0] sm:$0xff]
    %v158 = vld [vmem:[%s0 + $0x8] sm:$0xff]
    %v159 = vld [vmem:[%s0 + $0x10] sm:$0xff]
    %v160 = vld [vmem:[%s0 + $0x18] sm:$0xff]
    %v161 = vld [vmem:[%s0 + $0x20] sm:$0xff]
    %v162 = vld [vmem:[%s0 + $0x28] sm:$0xff]
    %v163 = vld [vmem:[%s0 + $0x30] sm:$0xff]
    %v164 = vld [vmem:[%s0 + $0x38] sm:$0xff]
    %v165 = vld [vmem:[%s0 + $0x40] sm:$0xff]
    %v166 = vld [vmem:[%s0 + $0x48] sm:$0xff]
    %v167 = vld [vmem:[%s0 + $0x50] sm:$0xff]
    %v168 = vld [vmem:[%s0 + $0x58] sm:$0xff]
    %v169 = vld [vmem:[%s0 + $0x60] sm:$0xff]
    %v170 = vld [vmem:[%s0 + $0x68] sm:$0xff]
    %v171 = vld [vmem:[%s0 + $0x70] sm:$0xff]
    %v172 = vld [vmem:[%s0 + $0x78] sm:$0xff]
    %v173 = vld [vmem:[#allocation3] sm:$0xff]
    %v174 = vld [vmem:[#allocation3 + $0x8] sm:$0x1]
    %v175 = vld [vmem:[#allocation5] sm:$0x1]
    %v177 = vlaneseq
    %v178 = vshrl.u32 %v177, 7
    %v179 = vsub.s32 0, %v178
    %v180 = vrot.slane %v175, %v179
    %vm182 = vcmask 72704
    %v184 = vsel %vm182, %v157, 0
    %v187 = vsel %vm182, %v158, 0
    %v190 = vsel %vm182, %v159, 0
    %v193 = vsel %vm182, %v160, 0
    %v196 = vsel %vm182, %v161, 0
    %v199 = vsel %vm182, %v162, 0
    %v202 = vsel %vm182, %v163, 0
    %v205 = vsel %vm182, %v164, 0
    %v208 = vsel %vm182, %v165, 0
    %v211 = vsel %vm182, %v166, 0
    %v214 = vsel %vm182, %v167, 0
    %v217 = vsel %vm182, %v168, 0
    %v220 = vsel %vm182, %v169, 0
    %v223 = vsel %vm182, %v170, 0
    %v226 = vsel %vm182, %v171, 0
    %v229 = vsel %vm182, %v172, 0
    %vm231 = vcmask 1040384
    %v233 = vsel %vm231, %v174, 0
    %235 = vmatprep.subr.mxu0 0.0
    %236 = vmatpush1.msra.mxu0 %v173
    %237 = vmatprep.subr.mxu0 0.0
    %238 = vmatpush1.msra.mxu0 %v233
    %239 = vmatprep.subr.mxu0 0.0
    %240 = vmatpush1.msra.mxu0 0.0
    %241 = vmatprep.subr.mxu0 0.0
    %242 = vmatpush1.msra.mxu0 0.0
    %243 = vmatprep.subr.mxu0 0.0
    %244 = vmatpush1.msra.mxu0 0.0
    %245 = vmatprep.subr.mxu0 0.0
    %246 = vmatpush1.msra.mxu0 0.0
    %247 = vmatprep.subr.mxu0 0.0
    %248 = vmatpush1.msra.mxu0 0.0
    %249 = vmatprep.subr.mxu0 0.0
    %250 = vmatpush1.msra.mxu0 0.0
    %251 = vmatprep.subr.mxu0 0.0
    %252 = vmatpush1.msra.mxu0 0.0
    %253 = vmatprep.subr.mxu0 0.0
    %254 = vmatpush1.msra.mxu0 0.0
    %255 = vmatprep.subr.mxu0 0.0
    %256 = vmatpush1.msra.mxu0 0.0
    %257 = vmatprep.subr.mxu0 0.0
    %258 = vmatpush1.msra.mxu0 0.0
    %259 = vmatprep.subr.mxu0 0.0
    %260 = vmatpush1.msra.mxu0 0.0
    %261 = vmatprep.subr.mxu0 0.0
    %262 = vmatpush1.msra.mxu0 0.0
    %263 = vmatprep.subr.mxu0 0.0
    %264 = vmatpush1.msra.mxu0 0.0
    %265 = vmatprep.subr.mxu0 0.0
    %266 = vmatpush1.msra.mxu0 0.0
    %267 = vmatprep.subr.mxu0 0.0
    %268 = vmatpush1.msra.mxu0 0.0
    %269 = vmatprep.subr.mxu0 0.0
    %270 = vmatpush1.msra.mxu0 0.0
    %271 = vmatprep.subr.mxu0 0.0
    %272 = vmatpush1.msra.mxu0 0.0
    %273 = vmatprep.subr.mxu0 0.0
    %274 = vmatpush1.msra.mxu0 0.0
    %275 = vmatprep.subr.mxu0 0.0
    %276 = vmatpush1.msra.mxu0 0.0
    %277 = vmatprep.subr.mxu0 0.0
    %278 = vmatpush1.msra.mxu0 0.0
    %279 = vmatprep.subr.mxu0 0.0
    %280 = vmatpush1.msra.mxu0 0.0
    %281 = vmatprep.subr.mxu0 0.0
    %282 = vmatpush1.msra.mxu0 0.0
    %283 = vmatprep.subr.mxu0 0.0
    %284 = vmatpush1.msra.mxu0 0.0
    %285 = vmatprep.subr.mxu0 0.0
    %286 = vmatpush1.msra.mxu0 0.0
    %287 = vmatprep.subr.mxu0 0.0
    %288 = vmatpush1.msra.mxu0 0.0
    %289 = vmatprep.subr.mxu0 0.0
    %290 = vmatpush1.msra.mxu0 0.0
    %291 = vmatprep.subr.mxu0 0.0
    %292 = vmatpush1.msra.mxu0 0.0
    %293 = vmatprep.subr.mxu0 0.0
    %294 = vmatpush1.msra.mxu0 0.0
    %295 = vmatprep.subr.mxu0 0.0
    %296 = vmatpush1.msra.mxu0 0.0
    %297 = vmatprep.subr.mxu0 0.0
    %298 = vmatpush1.msra.mxu0 0.0
    %299 = vmatprep.mubr.f32.mxu0 0.0
    %300 = vmatmul.mubr.f32.gmra.mrb[0].mxu0 %v184
    %v301 = vpop.f32.mrb[0].mxu0
    %v302 = vadd.f32 %v180, %v301
    %v303 = vpop.f32.mrb[0].mxu0
    %304 = vmatprep.mubr.f32.mxu0 0.0
    %305 = vmatmul.mubr.f32.gmra.mrb[0].mxu0 %v187
    %v306 = vpop.f32.mrb[0].mxu0
    %v307 = vadd.f32 %v180, %v306
    %v308 = vpop.f32.mrb[0].mxu0
    %309 = vmatprep.mubr.f32.mxu0 0.0
    %310 = vmatmul.mubr.f32.gmra.mrb[0].mxu0 %v190
    %v311 = vpop.f32.mrb[0].mxu0
    %v312 = vadd.f32 %v180, %v311
    %v313 = vpop.f32.mrb[0].mxu0
    %314 = vmatprep.mubr.f32.mxu0 0.0
    %315 = vmatmul.mubr.f32.gmra.mrb[0].mxu0 %v193
    %v316 = vpop.f32.mrb[0].mxu0
    %v317 = vadd.f32 %v180, %v316
    %v318 = vpop.f32.mrb[0].mxu0
    %319 = vmatprep.mubr.f32.mxu0 0.0
    %320 = vmatmul.mubr.f32.gmra.mrb[0].mxu0 %v196
    %v321 = vpop.f32.mrb[0].mxu0
    %v322 = vadd.f32 %v180, %v321
    %v323 = vpop.f32.mrb[0].mxu0
    %324 = vmatprep.mubr.f32.mxu0 0.0
    %325 = vmatmul.mubr.f32.gmra.mrb[0].mxu0 %v199
    %v326 = vpop.f32.mrb[0].mxu0
    %v327 = vadd.f32 %v180, %v326
    %v328 = vpop.f32.mrb[0].mxu0
    %329 = vmatprep.mubr.f32.mxu0 0.0
    %330 = vmatmul.mubr.f32.gmra.mrb[0].mxu0 %v202
    %v331 = vpop.f32.mrb[0].mxu0
    %v332 = vadd.f32 %v180, %v331
    %v333 = vpop.f32.mrb[0].mxu0
    %334 = vmatprep.mubr.f32.mxu0 0.0
    %335 = vmatmul.mubr.f32.gmra.mrb[0].mxu0 %v205
    %v336 = vpop.f32.mrb[0].mxu0
    %v337 = vadd.f32 %v180, %v336
    %v338 = vpop.f32.mrb[0].mxu0
    %339 = vmatprep.mubr.f32.mxu0 0.0
    %340 = vmatmul.mubr.f32.gmra.mrb[0].mxu0 %v208
    %v341 = vpop.f32.mrb[0].mxu0
    %v342 = vadd.f32 %v180, %v341
    %v343 = vpop.f32.mrb[0].mxu0
    %344 = vmatprep.mubr.f32.mxu0 0.0
    %345 = vmatmul.mubr.f32.gmra.mrb[0].mxu0 %v211
    %v346 = vpop.f32.mrb[0].mxu0
    %v347 = vadd.f32 %v180, %v346
    %v348 = vpop.f32.mrb[0].mxu0
    %349 = vmatprep.mubr.f32.mxu0 0.0
    %350 = vmatmul.mubr.f32.gmra.mrb[0].mxu0 %v214
    %v351 = vpop.f32.mrb[0].mxu0
    %v352 = vadd.f32 %v180, %v351
    %v353 = vpop.f32.mrb[0].mxu0
    %354 = vmatprep.mubr.f32.mxu0 0.0
    %355 = vmatmul.mubr.f32.gmra.mrb[0].mxu0 %v217
    %v356 = vpop.f32.mrb[0].mxu0
    %v357 = vadd.f32 %v180, %v356
    %v358 = vpop.f32.mrb[0].mxu0
    %359 = vmatprep.mubr.f32.mxu0 0.0
    %360 = vmatmul.mubr.f32.gmra.mrb[0].mxu0 %v220
    %v361 = vpop.f32.mrb[0].mxu0
    %v362 = vadd.f32 %v180, %v361
    %v363 = vpop.f32.mrb[0].mxu0
    %364 = vmatprep.mubr.f32.mxu0 0.0
    %365 = vmatmul.mubr.f32.gmra.mrb[0].mxu0 %v223
    %v366 = vpop.f32.mrb[0].mxu0
    %v367 = vadd.f32 %v180, %v366
    %v368 = vpop.f32.mrb[0].mxu0
    %369 = vmatprep.mubr.f32.mxu0 0.0
    %370 = vmatmul.mubr.f32.gmra.mrb[0].mxu0 %v226
    %v371 = vpop.f32.mrb[0].mxu0
    %v372 = vadd.f32 %v180, %v371
    %v373 = vpop.f32.mrb[0].mxu0
    %374 = vmatprep.mubr.f32.mxu0 0.0
    %375 = vmatmul.mubr.f32.gmra.mrb[0].mxu0 %v229
    %v376 = vpop.f32.mrb[0].mxu0
    %v377 = vadd.f32 %v180, %v376
    %v378 = vpop.f32.mrb[0].mxu0
    %379 = vdwg.mxu0
    %vm380 = vcmp.ge.f32.partialorder %v302, 0.0
    %vm381 = vcmp.ge.f32.partialorder %v307, 0.0
    %vm382 = vcmp.ge.f32.partialorder %v312, 0.0
    %vm383 = vcmp.ge.f32.partialorder %v317, 0.0
    %vm384 = vcmp.ge.f32.partialorder %v322, 0.0
    %vm385 = vcmp.ge.f32.partialorder %v327, 0.0
    %vm386 = vcmp.ge.f32.partialorder %v332, 0.0
    %vm387 = vcmp.ge.f32.partialorder %v337, 0.0
    %vm388 = vcmp.ge.f32.partialorder %v342, 0.0
    %vm389 = vcmp.ge.f32.partialorder %v347, 0.0
    %vm390 = vcmp.ge.f32.partialorder %v352, 0.0
    %vm391 = vcmp.ge.f32.partialorder %v357, 0.0
    %vm392 = vcmp.ge.f32.partialorder %v362, 0.0
    %vm393 = vcmp.ge.f32.partialorder %v367, 0.0
    %vm394 = vcmp.ge.f32.partialorder %v372, 0.0
    %vm395 = vcmp.ge.f32.partialorder %v377, 0.0
    %v396 = vmul.f32 %v302, 0.01
    %v397 = vmul.f32 %v307, 0.01
    %v398 = vmul.f32 %v312, 0.01
    %v399 = vmul.f32 %v317, 0.01
    %v400 = vmul.f32 %v322, 0.01
    %v401 = vmul.f32 %v327, 0.01
    %v402 = vmul.f32 %v332, 0.01
    %v403 = vmul.f32 %v337, 0.01
    %v404 = vmul.f32 %v342, 0.01
    %v405 = vmul.f32 %v347, 0.01
    %v406 = vmul.f32 %v352, 0.01
    %v407 = vmul.f32 %v357, 0.01
    %v408 = vmul.f32 %v362, 0.01
    %v409 = vmul.f32 %v367, 0.01
    %v410 = vmul.f32 %v372, 0.01
    %v411 = vmul.f32 %v377, 0.01
    %v412 = vsel %vm380, %v302, %v396
    %v413 = vsel %vm381, %v307, %v397
    %v414 = vsel %vm382, %v312, %v398
    %v415 = vsel %vm383, %v317, %v399
    %v416 = vsel %vm384, %v322, %v400
    %v417 = vsel %vm385, %v327, %v401
    %v418 = vsel %vm386, %v332, %v402
    %v419 = vsel %vm387, %v337, %v403
    %v420 = vsel %vm388, %v342, %v404
    %v421 = vsel %vm389, %v347, %v405
    %v422 = vsel %vm390, %v352, %v406
    %v423 = vsel %vm391, %v357, %v407
    %v424 = vsel %vm392, %v362, %v408
    %v425 = vsel %vm393, %v367, %v409
    %v426 = vsel %vm394, %v372, %v410
    %v427 = vsel %vm395, %v377, %v411
    %v428 = vld [vmem:[#allocation7] sm:$0xff]
    %v429 = vld [vmem:[#allocation7 + $0x8] sm:$0xff]
    %v430 = vld [vmem:[#allocation7 + $0x10] sm:$0xff]
    %v431 = vld [vmem:[#allocation7 + $0x18] sm:$0xff]
    %432 = vmatprep.subr.mxu0 0.0
    %433 = vmatpush1.msra.mxu0 %v412
    %434 = vmatprep.subr.mxu0 0.0
    %435 = vmatpush1.msra.mxu0 %v413
    %436 = vmatprep.subr.mxu0 0.0
    %437 = vmatpush1.msra.mxu0 %v414
    %438 = vmatprep.subr.mxu0 0.0
    %439 = vmatpush1.msra.mxu0 %v415
    %440 = vmatprep.subr.mxu0 0.0
    %441 = vmatpush1.msra.mxu0 %v416
    %442 = vmatprep.subr.mxu0 0.0
    %443 = vmatpush1.msra.mxu0 %v417
    %444 = vmatprep.subr.mxu0 0.0
    %445 = vmatpush1.msra.mxu0 %v418
    %446 = vmatprep.subr.mxu0 0.0
    %447 = vmatpush1.msra.mxu0 %v419
    %448 = vmatprep.subr.mxu0 0.0
    %449 = vmatpush1.msra.mxu0 %v420
    %450 = vmatprep.subr.mxu0 0.0
    %451 = vmatpush1.msra.mxu0 %v421
    %452 = vmatprep.subr.mxu0 0.0
    %453 = vmatpush1.msra.mxu0 %v422
    %454 = vmatprep.subr.mxu0 0.0
    %455 = vmatpush1.msra.mxu0 %v423
    %456 = vmatprep.subr.mxu0 0.0
    %457 = vmatpush1.msra.mxu0 %v424
    %458 = vmatprep.subr.mxu0 0.0
    %459 = vmatpush1.msra.mxu0 %v425
    %460 = vmatprep.subr.mxu0 0.0
    %461 = vmatpush1.msra.mxu0 %v426
    %462 = vmatprep.subr.mxu0 0.0
    %463 = vmatpush1.msra.mxu0 %v427
    %464 = vmatprep.subr.mxu0 0.0
    %465 = vmatpush1.msra.mxu0 0.0
    %466 = vmatprep.subr.mxu0 0.0
    %467 = vmatpush1.msra.mxu0 0.0
    %468 = vmatprep.subr.mxu0 0.0
    %469 = vmatpush1.msra.mxu0 0.0
    %470 = vmatprep.subr.mxu0 0.0
    %471 = vmatpush1.msra.mxu0 0.0
    %472 = vmatprep.subr.mxu0 0.0
    %473 = vmatpush1.msra.mxu0 0.0
    %474 = vmatprep.subr.mxu0 0.0
    %475 = vmatpush1.msra.mxu0 0.0
    %476 = vmatprep.subr.mxu0 0.0
    %477 = vmatpush1.msra.mxu0 0.0
    %478 = vmatprep.subr.mxu0 0.0
    %479 = vmatpush1.msra.mxu0 0.0
    %480 = vmatprep.subr.mxu0 0.0
    %481 = vmatpush1.msra.mxu0 0.0
    %482 = vmatprep.subr.mxu0 0.0
    %483 = vmatpush1.msra.mxu0 0.0
    %484 = vmatprep.subr.mxu0 0.0
    %485 = vmatpush1.msra.mxu0 0.0
    %486 = vmatprep.subr.mxu0 0.0
    %487 = vmatpush1.msra.mxu0 0.0
    %488 = vmatprep.subr.mxu0 0.0
    %489 = vmatpush1.msra.mxu0 0.0
    %490 = vmatprep.subr.mxu0 0.0
    %491 = vmatpush1.msra.mxu0 0.0
    %492 = vmatprep.subr.mxu0 0.0
    %493 = vmatpush1.msra.mxu0 0.0
    %494 = vmatprep.subr.mxu0 0.0
    %495 = vmatpush1.msra.mxu0 0.0
    %496 = vmatprep.mubr.f32.mxu0 0.0
    %497 = vmatmul.mubr.f32.gmra.mrb[0].mxu0 %v428
    %v498 = vpop.f32.mrb[0].mxu0
    %v499 = vadd.f32 0.0, %v498
    %v500 = vpop.f32.mrb[0].mxu0
    %501 = vmatprep.mubr.f32.mxu0 0.0
    %502 = vmatmul.mubr.f32.gmra.mrb[0].mxu0 %v429
    %v503 = vpop.f32.mrb[0].mxu0
    %v504 = vadd.f32 0.0, %v503
    %v505 = vpop.f32.mrb[0].mxu0
    %506 = vmatprep.mubr.f32.mxu0 0.0
    %507 = vmatmul.mubr.f32.gmra.mrb[0].mxu0 %v430
    %v508 = vpop.f32.mrb[0].mxu0
    %v509 = vadd.f32 0.0, %v508
    %v510 = vpop.f32.mrb[0].mxu0
    %511 = vmatprep.mubr.f32.mxu0 0.0
    %512 = vmatmul.mubr.f32.gmra.mrb[0].mxu0 %v431
    %v513 = vpop.f32.mrb[0].mxu0
    %v514 = vadd.f32 0.0, %v513
    %v515 = vpop.f32.mrb[0].mxu0
    %516 = vdwg.mxu0
    %v517 = vld [vmem:[#allocation8] sm:$0xff]
    %v518 = vld [vmem:[#allocation8 + $0x8] sm:$0xff]
    %v519 = vld [vmem:[#allocation8 + $0x10] sm:$0xff]
    %v520 = vld [vmem:[#allocation8 + $0x18] sm:$0xff]
    %v521 = vld [vmem:[#allocation8 + $0x20] sm:$0xff]
    %v522 = vld [vmem:[#allocation8 + $0x28] sm:$0xff]
    %v523 = vld [vmem:[#allocation8 + $0x30] sm:$0xff]
    %v524 = vld [vmem:[#allocation8 + $0x38] sm:$0xff]
    %s525 = scalar_lea.vmem [#allocation7], 32
    %v526 = vld [vmem:[%s525] sm:$0xff]
    %v527 = vld [vmem:[%s525 + $0x8] sm:$0xff]
    %v528 = vld [vmem:[%s525 + $0x10] sm:$0xff]
    %v529 = vld [vmem:[%s525 + $0x18] sm:$0xff]
    %530 = vmatprep.subr.mxu0 0.0
    %531 = vmatpush1.msra.mxu0 %v412
    %532 = vmatprep.subr.mxu0 0.0
    %533 = vmatpush1.msra.mxu0 %v413
    %534 = vmatprep.subr.mxu0 0.0
    %535 = vmatpush1.msra.mxu0 %v414
    %536 = vmatprep.subr.mxu0 0.0
    %537 = vmatpush1.msra.mxu0 %v415
    %538 = vmatprep.subr.mxu0 0.0
    %539 = vmatpush1.msra.mxu0 %v416
    %540 = vmatprep.subr.mxu0 0.0
    %541 = vmatpush1.msra.mxu0 %v417
    %542 = vmatprep.subr.mxu0 0.0
    %543 = vmatpush1.msra.mxu0 %v418
    %544 = vmatprep.subr.mxu0 0.0
    %545 = vmatpush1.msra.mxu0 %v419
    %546 = vmatprep.subr.mxu0 0.0
    %547 = vmatpush1.msra.mxu0 %v420
    %548 = vmatprep.subr.mxu0 0.0
    %549 = vmatpush1.msra.mxu0 %v421
    %550 = vmatprep.subr.mxu0 0.0
    %551 = vmatpush1.msra.mxu0 %v422
    %552 = vmatprep.subr.mxu0 0.0
    %553 = vmatpush1.msra.mxu0 %v423
    %554 = vmatprep.subr.mxu0 0.0
    %555 = vmatpush1.msra.mxu0 %v424
    %556 = vmatprep.subr.mxu0 0.0
    %557 = vmatpush1.msra.mxu0 %v425
    %558 = vmatprep.subr.mxu0 0.0
    %559 = vmatpush1.msra.mxu0 %v426
    %560 = vmatprep.subr.mxu0 0.0
    %561 = vmatpush1.msra.mxu0 %v427
    %562 = vmatprep.subr.mxu0 0.0
    %563 = vmatpush1.msra.mxu0 0.0
    %564 = vmatprep.subr.mxu0 0.0
    %565 = vmatpush1.msra.mxu0 0.0
    %566 = vmatprep.subr.mxu0 0.0
    %567 = vmatpush1.msra.mxu0 0.0
    %568 = vmatprep.subr.mxu0 0.0
    %569 = vmatpush1.msra.mxu0 0.0
    %570 = vmatprep.subr.mxu0 0.0
    %571 = vmatpush1.msra.mxu0 0.0
    %572 = vmatprep.subr.mxu0 0.0
    %573 = vmatpush1.msra.mxu0 0.0
    %574 = vmatprep.subr.mxu0 0.0
    %575 = vmatpush1.msra.mxu0 0.0
    %576 = vmatprep.subr.mxu0 0.0
    %577 = vmatpush1.msra.mxu0 0.0
    %578 = vmatprep.subr.mxu0 0.0
    %579 = vmatpush1.msra.mxu0 0.0
    %580 = vmatprep.subr.mxu0 0.0
    %581 = vmatpush1.msra.mxu0 0.0
    %582 = vmatprep.subr.mxu0 0.0
    %583 = vmatpush1.msra.mxu0 0.0
    %584 = vmatprep.subr.mxu0 0.0
    %585 = vmatpush1.msra.mxu0 0.0
    %586 = vmatprep.subr.mxu0 0.0
    %587 = vmatpush1.msra.mxu0 0.0
    %588 = vmatprep.subr.mxu0 0.0
    %589 = vmatpush1.msra.mxu0 0.0
    %590 = vmatprep.subr.mxu0 0.0
    %591 = vmatpush1.msra.mxu0 0.0
    %592 = vmatprep.subr.mxu0 0.0
    %593 = vmatpush1.msra.mxu0 0.0
    %594 = vmatprep.mubr.f32.mxu0 0.0
    %595 = vmatmul.mubr.f32.gmra.mrb[0].mxu0 %v526
    %v596 = vpop.f32.mrb[0].mxu0
    %v597 = vadd.f32 0.0, %v596
    %v598 = vpop.f32.mrb[0].mxu0
    %599 = vmatprep.mubr.f32.mxu0 0.0
    %600 = vmatmul.mubr.f32.gmra.mrb[0].mxu0 %v527
    %v601 = vpop.f32.mrb[0].mxu0
    %v602 = vadd.f32 0.0, %v601
    %v603 = vpop.f32.mrb[0].mxu0
    %604 = vmatprep.mubr.f32.mxu0 0.0
    %605 = vmatmul.mubr.f32.gmra.mrb[0].mxu0 %v528
    %v606 = vpop.f32.mrb[0].mxu0
    %v607 = vadd.f32 0.0, %v606
    %v608 = vpop.f32.mrb[0].mxu0
    %609 = vmatprep.mubr.f32.mxu0 0.0
    %610 = vmatmul.mubr.f32.gmra.mrb[0].mxu0 %v529
    %v611 = vpop.f32.mrb[0].mxu0
    %v612 = vadd.f32 0.0, %v611
    %v613 = vpop.f32.mrb[0].mxu0
    %614 = vdwg.mxu0
    %s615 = scalar_lea.vmem [#allocation8], 64
    %v616 = vld [vmem:[%s615] sm:$0xff]
    %v617 = vld [vmem:[%s615 + $0x8] sm:$0xff]
    %v618 = vld [vmem:[%s615 + $0x10] sm:$0xff]
    %v619 = vld [vmem:[%s615 + $0x18] sm:$0xff]
    %v620 = vld [vmem:[%s615 + $0x20] sm:$0xff]
    %v621 = vld [vmem:[%s615 + $0x28] sm:$0xff]
    %v622 = vld [vmem:[%s615 + $0x30] sm:$0xff]
    %v623 = vld [vmem:[%s615 + $0x38] sm:$0xff]
    %vm624 = vcmask 523264
    %v626 = vsel %vm624, %v597, 0
    %v629 = vsel %vm624, %v602, 0
    %v632 = vsel %vm624, %v607, 0
    %v635 = vsel %vm624, %v612, 0
    %637 = vmatprep.subr.mxu0 0.0
    %638 = vmatpush1.msra.mxu0 %v616
    %639 = vmatprep.subr.mxu0 0.0
    %640 = vmatpush1.msra.mxu0 %v617
    %641 = vmatprep.subr.mxu0 0.0
    %642 = vmatpush1.msra.mxu0 %v618
    %643 = vmatprep.subr.mxu0 0.0
    %644 = vmatpush1.msra.mxu0 %v619
    %645 = vmatprep.subr.mxu0 0.0
    %646 = vmatpush1.msra.mxu0 %v620
    %647 = vmatprep.subr.mxu0 0.0
    %648 = vmatpush1.msra.mxu0 %v621
    %649 = vmatprep.subr.mxu0 0.0
    %650 = vmatpush1.msra.mxu0 %v622
    %651 = vmatprep.subr.mxu0 0.0
    %652 = vmatpush1.msra.mxu0 %v623
    %653 = vmatprep.subr.mxu0 0.0
    %654 = vmatpush1.msra.mxu0 0.0
    %655 = vmatprep.subr.mxu0 0.0
    %656 = vmatpush1.msra.mxu0 0.0
    %657 = vmatprep.subr.mxu0 0.0
    %658 = vmatpush1.msra.mxu0 0.0
    %659 = vmatprep.subr.mxu0 0.0
    %660 = vmatpush1.msra.mxu0 0.0
    %661 = vmatprep.subr.mxu0 0.0
    %662 = vmatpush1.msra.mxu0 0.0
    %663 = vmatprep.subr.mxu0 0.0
    %664 = vmatpush1.msra.mxu0 0.0
    %665 = vmatprep.subr.mxu0 0.0
    %666 = vmatpush1.msra.mxu0 0.0
    %667 = vmatprep.subr.mxu0 0.0
    %668 = vmatpush1.msra.mxu0 0.0
    %669 = vmatprep.subr.mxu0 0.0
    %670 = vmatpush1.msra.mxu0 0.0
    %671 = vmatprep.subr.mxu0 0.0
    %672 = vmatpush1.msra.mxu0 0.0
    %673 = vmatprep.subr.mxu0 0.0
    %674 = vmatpush1.msra.mxu0 0.0
    %675 = vmatprep.subr.mxu0 0.0
    %676 = vmatpush1.msra.mxu0 0.0
    %677 = vmatprep.subr.mxu0 0.0
    %678 = vmatpush1.msra.mxu0 0.0
    %679 = vmatprep.subr.mxu0 0.0
    %680 = vmatpush1.msra.mxu0 0.0
    %681 = vmatprep.subr.mxu0 0.0
    %682 = vmatpush1.msra.mxu0 0.0
    %683 = vmatprep.subr.mxu0 0.0
    %684 = vmatpush1.msra.mxu0 0.0
    %685 = vmatprep.subr.mxu0 0.0
    %686 = vmatpush1.msra.mxu0 0.0
    %687 = vmatprep.subr.mxu0 0.0
    %688 = vmatpush1.msra.mxu0 0.0
    %689 = vmatprep.subr.mxu0 0.0
    %690 = vmatpush1.msra.mxu0 0.0
    %691 = vmatprep.subr.mxu0 0.0
    %692 = vmatpush1.msra.mxu0 0.0
    %693 = vmatprep.subr.mxu0 0.0
    %694 = vmatpush1.msra.mxu0 0.0
    %695 = vmatprep.subr.mxu0 0.0
    %696 = vmatpush1.msra.mxu0 0.0
    %697 = vmatprep.subr.mxu0 0.0
    %698 = vmatpush1.msra.mxu0 0.0
    %699 = vmatprep.subr.mxu0 0.0
    %700 = vmatpush1.msra.mxu0 0.0
    %701 = vmatprep.mubr.f32.mxu0 0.0
    %702 = vmatmul.mubr.f32.gmra.mrb[0].mxu0 %v626
    %v703 = vpop.f32.mrb[0].mxu0
    %v704 = vadd.f32 0.0, %v703
    %v705 = vpop.f32.mrb[0].mxu0
    %706 = vmatprep.mubr.f32.mxu0 0.0
    %707 = vmatmul.mubr.f32.gmra.mrb[0].mxu0 %v629
    %v708 = vpop.f32.mrb[0].mxu0
    %v709 = vadd.f32 0.0, %v708
    %v710 = vpop.f32.mrb[0].mxu0
    %711 = vmatprep.mubr.f32.mxu0 0.0
    %712 = vmatmul.mubr.f32.gmra.mrb[0].mxu0 %v632
    %v713 = vpop.f32.mrb[0].mxu0
    %v714 = vadd.f32 0.0, %v713
    %v715 = vpop.f32.mrb[0].mxu0
    %716 = vmatprep.mubr.f32.mxu0 0.0
    %717 = vmatmul.mubr.f32.gmra.mrb[0].mxu0 %v635
    %v718 = vpop.f32.mrb[0].mxu0
    %v719 = vadd.f32 0.0, %v718
    %v720 = vpop.f32.mrb[0].mxu0
    %721 = vdwg.mxu0
    %v723 = vsel %vm624, %v499, 0
    %v726 = vsel %vm624, %v504, 0
    %v729 = vsel %vm624, %v509, 0
    %v732 = vsel %vm624, %v514, 0
    %734 = vmatprep.subr.mxu0 0.0
    %735 = vmatpush1.msra.mxu0 %v517
    %736 = vmatprep.subr.mxu0 0.0
    %737 = vmatpush1.msra.mxu0 %v518
    %738 = vmatprep.subr.mxu0 0.0
    %739 = vmatpush1.msra.mxu0 %v519
    %740 = vmatprep.subr.mxu0 0.0
    %741 = vmatpush1.msra.mxu0 %v520
    %742 = vmatprep.subr.mxu0 0.0
    %743 = vmatpush1.msra.mxu0 %v521
    %744 = vmatprep.subr.mxu0 0.0
    %745 = vmatpush1.msra.mxu0 %v522
    %746 = vmatprep.subr.mxu0 0.0
    %747 = vmatpush1.msra.mxu0 %v523
    %748 = vmatprep.subr.mxu0 0.0
    %749 = vmatpush1.msra.mxu0 %v524
    %750 = vmatprep.subr.mxu0 0.0
    %751 = vmatpush1.msra.mxu0 0.0
    %752 = vmatprep.subr.mxu0 0.0
    %753 = vmatpush1.msra.mxu0 0.0
    %754 = vmatprep.subr.mxu0 0.0
    %755 = vmatpush1.msra.mxu0 0.0
    %756 = vmatprep.subr.mxu0 0.0
    %757 = vmatpush1.msra.mxu0 0.0
    %758 = vmatprep.subr.mxu0 0.0
    %759 = vmatpush1.msra.mxu0 0.0
    %760 = vmatprep.subr.mxu0 0.0
    %761 = vmatpush1.msra.mxu0 0.0
    %762 = vmatprep.subr.mxu0 0.0
    %763 = vmatpush1.msra.mxu0 0.0
    %764 = vmatprep.subr.mxu0 0.0
    %765 = vmatpush1.msra.mxu0 0.0
    %766 = vmatprep.subr.mxu0 0.0
    %767 = vmatpush1.msra.mxu0 0.0
    %768 = vmatprep.subr.mxu0 0.0
    %769 = vmatpush1.msra.mxu0 0.0
    %770 = vmatprep.subr.mxu0 0.0
    %771 = vmatpush1.msra.mxu0 0.0
    %772 = vmatprep.subr.mxu0 0.0
    %773 = vmatpush1.msra.mxu0 0.0
    %774 = vmatprep.subr.mxu0 0.0
    %775 = vmatpush1.msra.mxu0 0.0
    %776 = vmatprep.subr.mxu0 0.0
    %777 = vmatpush1.msra.mxu0 0.0
    %778 = vmatprep.subr.mxu0 0.0
    %779 = vmatpush1.msra.mxu0 0.0
    %780 = vmatprep.subr.mxu0 0.0
    %781 = vmatpush1.msra.mxu0 0.0
    %782 = vmatprep.subr.mxu0 0.0
    %783 = vmatpush1.msra.mxu0 0.0
    %784 = vmatprep.subr.mxu0 0.0
    %785 = vmatpush1.msra.mxu0 0.0
    %786 = vmatprep.subr.mxu0 0.0
    %787 = vmatpush1.msra.mxu0 0.0
    %788 = vmatprep.subr.mxu0 0.0
    %789 = vmatpush1.msra.mxu0 0.0
    %790 = vmatprep.subr.mxu0 0.0
    %791 = vmatpush1.msra.mxu0 0.0
    %792 = vmatprep.subr.mxu0 0.0
    %793 = vmatpush1.msra.mxu0 0.0
    %794 = vmatprep.subr.mxu0 0.0
    %795 = vmatpush1.msra.mxu0 0.0
    %796 = vmatprep.subr.mxu0 0.0
    %797 = vmatpush1.msra.mxu0 0.0
    %798 = vmatprep.mubr.f32.mxu0 0.0
    %799 = vmatmul.mubr.f32.gmra.mrb[0].mxu0 %v723
    %v800 = vpop.f32.mrb[0].mxu0
    %v801 = vadd.f32 %v704, %v800
    %v802 = vpop.f32.mrb[0].mxu0
    %803 = vmatprep.mubr.f32.mxu0 0.0
    %804 = vmatmul.mubr.f32.gmra.mrb[0].mxu0 %v726
    %v805 = vpop.f32.mrb[0].mxu0
    %v806 = vadd.f32 %v709, %v805
    %v807 = vpop.f32.mrb[0].mxu0
    %808 = vmatprep.mubr.f32.mxu0 0.0
    %809 = vmatmul.mubr.f32.gmra.mrb[0].mxu0 %v729
    %v810 = vpop.f32.mrb[0].mxu0
    %v811 = vadd.f32 %v714, %v810
    %v812 = vpop.f32.mrb[0].mxu0
    %813 = vmatprep.mubr.f32.mxu0 0.0
    %814 = vmatmul.mubr.f32.gmra.mrb[0].mxu0 %v732
    %v815 = vpop.f32.mrb[0].mxu0
    %v816 = vadd.f32 %v719, %v815
    %v817 = vpop.f32.mrb[0].mxu0
    %818 = vdwg.mxu0
    %s819 = scalar_lea.vmem [#allocation7], 64
    %v820 = vld [vmem:[%s819] sm:$0xff]
    %v821 = vld [vmem:[%s819 + $0x8] sm:$0xff]
    %v822 = vld [vmem:[%s819 + $0x10] sm:$0xff]
    %v823 = vld [vmem:[%s819 + $0x18] sm:$0xff]
    %824 = vmatprep.subr.mxu0 0.0
    %825 = vmatpush1.msra.mxu0 %v412
    %826 = vmatprep.subr.mxu0 0.0
    %827 = vmatpush1.msra.mxu0 %v413
    %828 = vmatprep.subr.mxu0 0.0
    %829 = vmatpush1.msra.mxu0 %v414
    %830 = vmatprep.subr.mxu0 0.0
    %831 = vmatpush1.msra.mxu0 %v415
    %832 = vmatprep.subr.mxu0 0.0
    %833 = vmatpush1.msra.mxu0 %v416
    %834 = vmatprep.subr.mxu0 0.0
    %835 = vmatpush1.msra.mxu0 %v417
    %836 = vmatprep.subr.mxu0 0.0
    %837 = vmatpush1.msra.mxu0 %v418
    %838 = vmatprep.subr.mxu0 0.0
    %839 = vmatpush1.msra.mxu0 %v419
    %840 = vmatprep.subr.mxu0 0.0
    %841 = vmatpush1.msra.mxu0 %v420
    %842 = vmatprep.subr.mxu0 0.0
    %843 = vmatpush1.msra.mxu0 %v421
    %844 = vmatprep.subr.mxu0 0.0
    %845 = vmatpush1.msra.mxu0 %v422
    %846 = vmatprep.subr.mxu0 0.0
    %847 = vmatpush1.msra.mxu0 %v423
    %848 = vmatprep.subr.mxu0 0.0
    %849 = vmatpush1.msra.mxu0 %v424
    %850 = vmatprep.subr.mxu0 0.0
    %851 = vmatpush1.msra.mxu0 %v425
    %852 = vmatprep.subr.mxu0 0.0
    %853 = vmatpush1.msra.mxu0 %v426
    %854 = vmatprep.subr.mxu0 0.0
    %855 = vmatpush1.msra.mxu0 %v427
    %856 = vmatprep.subr.mxu0 0.0
    %857 = vmatpush1.msra.mxu0 0.0
    %858 = vmatprep.subr.mxu0 0.0
    %859 = vmatpush1.msra.mxu0 0.0
    %860 = vmatprep.subr.mxu0 0.0
    %861 = vmatpush1.msra.mxu0 0.0
    %862 = vmatprep.subr.mxu0 0.0
    %863 = vmatpush1.msra.mxu0 0.0
    %864 = vmatprep.subr.mxu0 0.0
    %865 = vmatpush1.msra.mxu0 0.0
    %866 = vmatprep.subr.mxu0 0.0
    %867 = vmatpush1.msra.mxu0 0.0
    %868 = vmatprep.subr.mxu0 0.0
    %869 = vmatpush1.msra.mxu0 0.0
    %870 = vmatprep.subr.mxu0 0.0
    %871 = vmatpush1.msra.mxu0 0.0
    %872 = vmatprep.subr.mxu0 0.0
    %873 = vmatpush1.msra.mxu0 0.0
    %874 = vmatprep.subr.mxu0 0.0
    %875 = vmatpush1.msra.mxu0 0.0
    %876 = vmatprep.subr.mxu0 0.0
    %877 = vmatpush1.msra.mxu0 0.0
    %878 = vmatprep.subr.mxu0 0.0
    %879 = vmatpush1.msra.mxu0 0.0
    %880 = vmatprep.subr.mxu0 0.0
    %881 = vmatpush1.msra.mxu0 0.0
    %882 = vmatprep.subr.mxu0 0.0
    %883 = vmatpush1.msra.mxu0 0.0
    %884 = vmatprep.subr.mxu0 0.0
    %885 = vmatpush1.msra.mxu0 0.0
    %886 = vmatprep.subr.mxu0 0.0
    %887 = vmatpush1.msra.mxu0 0.0
    %888 = vmatprep.mubr.f32.mxu0 0.0
    %889 = vmatmul.mubr.f32.gmra.mrb[0].mxu0 %v820
    %v890 = vpop.f32.mrb[0].mxu0
    %v891 = vadd.f32 0.0, %v890
    %v892 = vpop.f32.mrb[0].mxu0
    %893 = vmatprep.mubr.f32.mxu0 0.0
    %894 = vmatmul.mubr.f32.gmra.mrb[0].mxu0 %v821
    %v895 = vpop.f32.mrb[0].mxu0
    %v896 = vadd.f32 0.0, %v895
    %v897 = vpop.f32.mrb[0].mxu0
    %898 = vmatprep.mubr.f32.mxu0 0.0
    %899 = vmatmul.mubr.f32.gmra.mrb[0].mxu0 %v822
    %v900 = vpop.f32.mrb[0].mxu0
    %v901 = vadd.f32 0.0, %v900
    %v902 = vpop.f32.mrb[0].mxu0
    %903 = vmatprep.mubr.f32.mxu0 0.0
    %904 = vmatmul.mubr.f32.gmra.mrb[0].mxu0 %v823
    %v905 = vpop.f32.mrb[0].mxu0
    %v906 = vadd.f32 0.0, %v905
    %v907 = vpop.f32.mrb[0].mxu0
    %908 = vdwg.mxu0
    %s909 = scalar_lea.vmem [#allocation8], 128
    %v910 = vld [vmem:[%s909] sm:$0xff]
    %v911 = vld [vmem:[%s909 + $0x8] sm:$0xff]
    %v912 = vld [vmem:[%s909 + $0x10] sm:$0xff]
    %v913 = vld [vmem:[%s909 + $0x18] sm:$0xff]
    %v914 = vld [vmem:[%s909 + $0x20] sm:$0xff]
    %v915 = vld [vmem:[%s909 + $0x28] sm:$0xff]
    %v916 = vld [vmem:[%s909 + $0x30] sm:$0xff]
    %v917 = vld [vmem:[%s909 + $0x38] sm:$0xff]
    %v919 = vsel %vm624, %v891, 0
    %v922 = vsel %vm624, %v896, 0
    %v925 = vsel %vm624, %v901, 0
    %v928 = vsel %vm624, %v906, 0
    %930 = vmatprep.subr.mxu0 0.0
    %931 = vmatpush1.msra.mxu0 %v910
    %932 = vmatprep.subr.mxu0 0.0
    %933 = vmatpush1.msra.mxu0 %v911
    %934 = vmatprep.subr.mxu0 0.0
    %935 = vmatpush1.msra.mxu0 %v912
    %936 = vmatprep.subr.mxu0 0.0
    %937 = vmatpush1.msra.mxu0 %v913
    %938 = vmatprep.subr.mxu0 0.0
    %939 = vmatpush1.msra.mxu0 %v914
    %940 = vmatprep.subr.mxu0 0.0
    %941 = vmatpush1.msra.mxu0 %v915
    %942 = vmatprep.subr.mxu0 0.0
    %943 = vmatpush1.msra.mxu0 %v916
    %944 = vmatprep.subr.mxu0 0.0
    %945 = vmatpush1.msra.mxu0 %v917
    %946 = vmatprep.subr.mxu0 0.0
    %947 = vmatpush1.msra.mxu0 0.0
    %948 = vmatprep.subr.mxu0 0.0
    %949 = vmatpush1.msra.mxu0 0.0
    %950 = vmatprep.subr.mxu0 0.0
    %951 = vmatpush1.msra.mxu0 0.0
    %952 = vmatprep.subr.mxu0 0.0
    %953 = vmatpush1.msra.mxu0 0.0
    %954 = vmatprep.subr.mxu0 0.0
    %955 = vmatpush1.msra.mxu0 0.0
    %956 = vmatprep.subr.mxu0 0.0
    %957 = vmatpush1.msra.mxu0 0.0
    %958 = vmatprep.subr.mxu0 0.0
    %959 = vmatpush1.msra.mxu0 0.0
    %960 = vmatprep.subr.mxu0 0.0
    %961 = vmatpush1.msra.mxu0 0.0
    %962 = vmatprep.subr.mxu0 0.0
    %963 = vmatpush1.msra.mxu0 0.0
    %964 = vmatprep.subr.mxu0 0.0
    %965 = vmatpush1.msra.mxu0 0.0
    %966 = vmatprep.subr.mxu0 0.0
    %967 = vmatpush1.msra.mxu0 0.0
    %968 = vmatprep.subr.mxu0 0.0
    %969 = vmatpush1.msra.mxu0 0.0
    %970 = vmatprep.subr.mxu0 0.0
    %971 = vmatpush1.msra.mxu0 0.0
    %972 = vmatprep.subr.mxu0 0.0
    %973 = vmatpush1.msra.mxu0 0.0
    %974 = vmatprep.subr.mxu0 0.0
    %975 = vmatpush1.msra.mxu0 0.0
    %976 = vmatprep.subr.mxu0 0.0
    %977 = vmatpush1.msra.mxu0 0.0
    %978 = vmatprep.subr.mxu0 0.0
    %979 = vmatpush1.msra.mxu0 0.0
    %980 = vmatprep.subr.mxu0 0.0
    %981 = vmatpush1.msra.mxu0 0.0
    %982 = vmatprep.subr.mxu0 0.0
    %983 = vmatpush1.msra.mxu0 0.0
    %984 = vmatprep.subr.mxu0 0.0
    %985 = vmatpush1.msra.mxu0 0.0
    %986 = vmatprep.subr.mxu0 0.0
    %987 = vmatpush1.msra.mxu0 0.0
    %988 = vmatprep.subr.mxu0 0.0
    %989 = vmatpush1.msra.mxu0 0.0
    %990 = vmatprep.subr.mxu0 0.0
    %991 = vmatpush1.msra.mxu0 0.0
    %992 = vmatprep.subr.mxu0 0.0
    %993 = vmatpush1.msra.mxu0 0.0
    %994 = vmatprep.mubr.f32.mxu0 0.0
    %995 = vmatmul.mubr.f32.gmra.mrb[0].mxu0 %v919
    %v996 = vpop.f32.mrb[0].mxu0
    %v997 = vadd.f32 0.0, %v996
    %v998 = vpop.f32.mrb[0].mxu0
    %999 = vmatprep.mubr.f32.mxu0 0.0
    %1000 = vmatmul.mubr.f32.gmra.mrb[0].mxu0 %v922
    %v1001 = vpop.f32.mrb[0].mxu0
    %v1002 = vadd.f32 0.0, %v1001
    %v1003 = vpop.f32.mrb[0].mxu0
    %1004 = vmatprep.mubr.f32.mxu0 0.0
    %1005 = vmatmul.mubr.f32.gmra.mrb[0].mxu0 %v925
    %v1006 = vpop.f32.mrb[0].mxu0
    %v1007 = vadd.f32 0.0, %v1006
    %v1008 = vpop.f32.mrb[0].mxu0
    %1009 = vmatprep.mubr.f32.mxu0 0.0
    %1010 = vmatmul.mubr.f32.gmra.mrb[0].mxu0 %v928
    %v1011 = vpop.f32.mrb[0].mxu0
    %v1012 = vadd.f32 0.0, %v1011
    %v1013 = vpop.f32.mrb[0].mxu0
    %1014 = vdwg.mxu0
    %v1015 = vadd.f32 %v801, %v997
    %v1016 = vadd.f32 %v806, %v1002
    %v1017 = vadd.f32 %v811, %v1007
    %v1018 = vadd.f32 %v816, %v1012
    %s1019 = scalar_lea.vmem [#allocation7], 96
    %v1020 = vld [vmem:[%s1019] sm:$0xff]
    %v1021 = vld [vmem:[%s1019 + $0x8] sm:$0xff]
    %v1022 = vld [vmem:[%s1019 + $0x10] sm:$0xff]
    %v1023 = vld [vmem:[%s1019 + $0x18] sm:$0xff]
    %1024 = vmatprep.subr.mxu0 0.0
    %1025 = vmatpush1.msra.mxu0 %v412
    %1026 = vmatprep.subr.mxu0 0.0
    %1027 = vmatpush1.msra.mxu0 %v413
    %1028 = vmatprep.subr.mxu0 0.0
    %1029 = vmatpush1.msra.mxu0 %v414
    %1030 = vmatprep.subr.mxu0 0.0
    %1031 = vmatpush1.msra.mxu0 %v415
    %1032 = vmatprep.subr.mxu0 0.0
    %1033 = vmatpush1.msra.mxu0 %v416
    %1034 = vmatprep.subr.mxu0 0.0
    %1035 = vmatpush1.msra.mxu0 %v417
    %1036 = vmatprep.subr.mxu0 0.0
    %1037 = vmatpush1.msra.mxu0 %v418
    %1038 = vmatprep.subr.mxu0 0.0
    %1039 = vmatpush1.msra.mxu0 %v419
    %1040 = vmatprep.subr.mxu0 0.0
    %1041 = vmatpush1.msra.mxu0 %v420
    %1042 = vmatprep.subr.mxu0 0.0
    %1043 = vmatpush1.msra.mxu0 %v421
    %1044 = vmatprep.subr.mxu0 0.0
    %1045 = vmatpush1.msra.mxu0 %v422
    %1046 = vmatprep.subr.mxu0 0.0
    %1047 = vmatpush1.msra.mxu0 %v423
    %1048 = vmatprep.subr.mxu0 0.0
    %1049 = vmatpush1.msra.mxu0 %v424
    %1050 = vmatprep.subr.mxu0 0.0
    %1051 = vmatpush1.msra.mxu0 %v425
    %1052 = vmatprep.subr.mxu0 0.0
    %1053 = vmatpush1.msra.mxu0 %v426
    %1054 = vmatprep.subr.mxu0 0.0
    %1055 = vmatpush1.msra.mxu0 %v427
    %1056 = vmatprep.subr.mxu0 0.0
    %1057 = vmatpush1.msra.mxu0 0.0
    %1058 = vmatprep.subr.mxu0 0.0
    %1059 = vmatpush1.msra.mxu0 0.0
    %1060 = vmatprep.subr.mxu0 0.0
    %1061 = vmatpush1.msra.mxu0 0.0
    %1062 = vmatprep.subr.mxu0 0.0
    %1063 = vmatpush1.msra.mxu0 0.0
    %1064 = vmatprep.subr.mxu0 0.0
    %1065 = vmatpush1.msra.mxu0 0.0
    %1066 = vmatprep.subr.mxu0 0.0
    %1067 = vmatpush1.msra.mxu0 0.0
    %1068 = vmatprep.subr.mxu0 0.0
    %1069 = vmatpush1.msra.mxu0 0.0
    %1070 = vmatprep.subr.mxu0 0.0
    %1071 = vmatpush1.msra.mxu0 0.0
    %1072 = vmatprep.subr.mxu0 0.0
    %1073 = vmatpush1.msra.mxu0 0.0
    %1074 = vmatprep.subr.mxu0 0.0
    %1075 = vmatpush1.msra.mxu0 0.0
    %1076 = vmatprep.subr.mxu0 0.0
    %1077 = vmatpush1.msra.mxu0 0.0
    %1078 = vmatprep.subr.mxu0 0.0
    %1079 = vmatpush1.msra.mxu0 0.0
    %1080 = vmatprep.subr.mxu0 0.0
    %1081 = vmatpush1.msra.mxu0 0.0
    %1082 = vmatprep.subr.mxu0 0.0
    %1083 = vmatpush1.msra.mxu0 0.0
    %1084 = vmatprep.subr.mxu0 0.0
    %1085 = vmatpush1.msra.mxu0 0.0
    %1086 = vmatprep.subr.mxu0 0.0
    %1087 = vmatpush1.msra.mxu0 0.0
    %1088 = vmatprep.mubr.f32.mxu0 0.0
    %1089 = vmatmul.mubr.f32.gmra.mrb[0].mxu0 %v1020
    %v1090 = vpop.f32.mrb[0].mxu0
    %v1091 = vadd.f32 0.0, %v1090
    %v1092 = vpop.f32.mrb[0].mxu0
    %1093 = vmatprep.mubr.f32.mxu0 0.0
    %1094 = vmatmul.mubr.f32.gmra.mrb[0].mxu0 %v1021
    %v1095 = vpop.f32.mrb[0].mxu0
    %v1096 = vadd.f32 0.0, %v1095
    %v1097 = vpop.f32.mrb[0].mxu0
    %1098 = vmatprep.mubr.f32.mxu0 0.0
    %1099 = vmatmul.mubr.f32.gmra.mrb[0].mxu0 %v1022
    %v1100 = vpop.f32.mrb[0].mxu0
    %v1101 = vadd.f32 0.0, %v1100
    %v1102 = vpop.f32.mrb[0].mxu0
    %1103 = vmatprep.mubr.f32.mxu0 0.0
    %1104 = vmatmul.mubr.f32.gmra.mrb[0].mxu0 %v1023
    %v1105 = vpop.f32.mrb[0].mxu0
    %v1106 = vadd.f32 0.0, %v1105
    %v1107 = vpop.f32.mrb[0].mxu0
    %1108 = vdwg.mxu0
    %s1109 = scalar_lea.vmem [#allocation8], 192
    %v1110 = vld [vmem:[%s1109] sm:$0xff]
    %v1111 = vld [vmem:[%s1109 + $0x8] sm:$0xff]
    %v1112 = vld [vmem:[%s1109 + $0x10] sm:$0xff]
    %v1113 = vld [vmem:[%s1109 + $0x18] sm:$0xff]
    %v1114 = vld [vmem:[%s1109 + $0x20] sm:$0xff]
    %v1115 = vld [vmem:[%s1109 + $0x28] sm:$0xff]
    %v1116 = vld [vmem:[%s1109 + $0x30] sm:$0xff]
    %v1117 = vld [vmem:[%s1109 + $0x38] sm:$0xff]
    %v1119 = vsel %vm624, %v1091, 0
    %v1122 = vsel %vm624, %v1096, 0
    %v1125 = vsel %vm624, %v1101, 0
    %v1128 = vsel %vm624, %v1106, 0
    %1130 = vmatprep.subr.mxu0 0.0
    %1131 = vmatpush1.msra.mxu0 %v1110
    %1132 = vmatprep.subr.mxu0 0.0
    %1133 = vmatpush1.msra.mxu0 %v1111
    %1134 = vmatprep.subr.mxu0 0.0
    %1135 = vmatpush1.msra.mxu0 %v1112
    %1136 = vmatprep.subr.mxu0 0.0
    %1137 = vmatpush1.msra.mxu0 %v1113
    %1138 = vmatprep.subr.mxu0 0.0
    %1139 = vmatpush1.msra.mxu0 %v1114
    %1140 = vmatprep.subr.mxu0 0.0
    %1141 = vmatpush1.msra.mxu0 %v1115
    %1142 = vmatprep.subr.mxu0 0.0
    %1143 = vmatpush1.msra.mxu0 %v1116
    %1144 = vmatprep.subr.mxu0 0.0
    %1145 = vmatpush1.msra.mxu0 %v1117
    %1146 = vmatprep.subr.mxu0 0.0
    %1147 = vmatpush1.msra.mxu0 0.0
    %1148 = vmatprep.subr.mxu0 0.0
    %1149 = vmatpush1.msra.mxu0 0.0
    %1150 = vmatprep.subr.mxu0 0.0
    %1151 = vmatpush1.msra.mxu0 0.0
    %1152 = vmatprep.subr.mxu0 0.0
    %1153 = vmatpush1.msra.mxu0 0.0
    %1154 = vmatprep.subr.mxu0 0.0
    %1155 = vmatpush1.msra.mxu0 0.0
    %1156 = vmatprep.subr.mxu0 0.0
    %1157 = vmatpush1.msra.mxu0 0.0
    %1158 = vmatprep.subr.mxu0 0.0
    %1159 = vmatpush1.msra.mxu0 0.0
    %1160 = vmatprep.subr.mxu0 0.0
    %1161 = vmatpush1.msra.mxu0 0.0
    %1162 = vmatprep.subr.mxu0 0.0
    %1163 = vmatpush1.msra.mxu0 0.0
    %1164 = vmatprep.subr.mxu0 0.0
    %1165 = vmatpush1.msra.mxu0 0.0
    %1166 = vmatprep.subr.mxu0 0.0
    %1167 = vmatpush1.msra.mxu0 0.0
    %1168 = vmatprep.subr.mxu0 0.0
    %1169 = vmatpush1.msra.mxu0 0.0
    %1170 = vmatprep.subr.mxu0 0.0
    %1171 = vmatpush1.msra.mxu0 0.0
    %1172 = vmatprep.subr.mxu0 0.0
    %1173 = vmatpush1.msra.mxu0 0.0
    %1174 = vmatprep.subr.mxu0 0.0
    %1175 = vmatpush1.msra.mxu0 0.0
    %1176 = vmatprep.subr.mxu0 0.0
    %1177 = vmatpush1.msra.mxu0 0.0
    %1178 = vmatprep.subr.mxu0 0.0
    %1179 = vmatpush1.msra.mxu0 0.0
    %1180 = vmatprep.subr.mxu0 0.0
    %1181 = vmatpush1.msra.mxu0 0.0
    %1182 = vmatprep.subr.mxu0 0.0
    %1183 = vmatpush1.msra.mxu0 0.0
    %1184 = vmatprep.subr.mxu0 0.0
    %1185 = vmatpush1.msra.mxu0 0.0
    %1186 = vmatprep.subr.mxu0 0.0
    %1187 = vmatpush1.msra.mxu0 0.0
    %1188 = vmatprep.subr.mxu0 0.0
    %1189 = vmatpush1.msra.mxu0 0.0
    %1190 = vmatprep.subr.mxu0 0.0
    %1191 = vmatpush1.msra.mxu0 0.0
    %1192 = vmatprep.subr.mxu0 0.0
    %1193 = vmatpush1.msra.mxu0 0.0
    %1194 = vmatprep.mubr.f32.mxu0 0.0
    %1195 = vmatmul.mubr.f32.gmra.mrb[0].mxu0 %v1119
    %v1196 = vpop.f32.mrb[0].mxu0
    %v1197 = vadd.f32 0.0, %v1196
    %v1198 = vpop.f32.mrb[0].mxu0
    %1199 = vmatprep.mubr.f32.mxu0 0.0
    %1200 = vmatmul.mubr.f32.gmra.mrb[0].mxu0 %v1122
    %v1201 = vpop.f32.mrb[0].mxu0
    %v1202 = vadd.f32 0.0, %v1201
    %v1203 = vpop.f32.mrb[0].mxu0
    %1204 = vmatprep.mubr.f32.mxu0 0.0
    %1205 = vmatmul.mubr.f32.gmra.mrb[0].mxu0 %v1125
    %v1206 = vpop.f32.mrb[0].mxu0
    %v1207 = vadd.f32 0.0, %v1206
    %v1208 = vpop.f32.mrb[0].mxu0
    %1209 = vmatprep.mubr.f32.mxu0 0.0
    %1210 = vmatmul.mubr.f32.gmra.mrb[0].mxu0 %v1128
    %v1211 = vpop.f32.mrb[0].mxu0
    %v1212 = vadd.f32 0.0, %v1211
    %v1213 = vpop.f32.mrb[0].mxu0
    %1214 = vdwg.mxu0
    %v1215 = vadd.f32 %v1015, %v1197
    %v1216 = vadd.f32 %v1016, %v1202
    %v1217 = vadd.f32 %v1017, %v1207
    %v1218 = vadd.f32 %v1018, %v1212
    %s1219 = scalar_lea.vmem [#allocation7], 128
    %v1220 = vld [vmem:[%s1219] sm:$0xff]
    %v1221 = vld [vmem:[%s1219 + $0x8] sm:$0xff]
    %v1222 = vld [vmem:[%s1219 + $0x10] sm:$0xff]
    %v1223 = vld [vmem:[%s1219 + $0x18] sm:$0xff]
    %1224 = vmatprep.subr.mxu0 0.0
    %1225 = vmatpush1.msra.mxu0 %v412
    %1226 = vmatprep.subr.mxu0 0.0
    %1227 = vmatpush1.msra.mxu0 %v413
    %1228 = vmatprep.subr.mxu0 0.0
    %1229 = vmatpush1.msra.mxu0 %v414
    %1230 = vmatprep.subr.mxu0 0.0
    %1231 = vmatpush1.msra.mxu0 %v415
    %1232 = vmatprep.subr.mxu0 0.0
    %1233 = vmatpush1.msra.mxu0 %v416
    %1234 = vmatprep.subr.mxu0 0.0
    %1235 = vmatpush1.msra.mxu0 %v417
    %1236 = vmatprep.subr.mxu0 0.0
    %1237 = vmatpush1.msra.mxu0 %v418
    %1238 = vmatprep.subr.mxu0 0.0
    %1239 = vmatpush1.msra.mxu0 %v419
    %1240 = vmatprep.subr.mxu0 0.0
    %1241 = vmatpush1.msra.mxu0 %v420
    %1242 = vmatprep.subr.mxu0 0.0
    %1243 = vmatpush1.msra.mxu0 %v421
    %1244 = vmatprep.subr.mxu0 0.0
    %1245 = vmatpush1.msra.mxu0 %v422
    %1246 = vmatprep.subr.mxu0 0.0
    %1247 = vmatpush1.msra.mxu0 %v423
    %1248 = vmatprep.subr.mxu0 0.0
    %1249 = vmatpush1.msra.mxu0 %v424
    %1250 = vmatprep.subr.mxu0 0.0
    %1251 = vmatpush1.msra.mxu0 %v425
    %1252 = vmatprep.subr.mxu0 0.0
    %1253 = vmatpush1.msra.mxu0 %v426
    %1254 = vmatprep.subr.mxu0 0.0
    %1255 = vmatpush1.msra.mxu0 %v427
    %1256 = vmatprep.subr.mxu0 0.0
    %1257 = vmatpush1.msra.mxu0 0.0
    %1258 = vmatprep.subr.mxu0 0.0
    %1259 = vmatpush1.msra.mxu0 0.0
    %1260 = vmatprep.subr.mxu0 0.0
    %1261 = vmatpush1.msra.mxu0 0.0
    %1262 = vmatprep.subr.mxu0 0.0
    %1263 = vmatpush1.msra.mxu0 0.0
    %1264 = vmatprep.subr.mxu0 0.0
    %1265 = vmatpush1.msra.mxu0 0.0
    %1266 = vmatprep.subr.mxu0 0.0
    %1267 = vmatpush1.msra.mxu0 0.0
    %1268 = vmatprep.subr.mxu0 0.0
    %1269 = vmatpush1.msra.mxu0 0.0
    %1270 = vmatprep.subr.mxu0 0.0
    %1271 = vmatpush1.msra.mxu0 0.0
    %1272 = vmatprep.subr.mxu0 0.0
    %1273 = vmatpush1.msra.mxu0 0.0
    %1274 = vmatprep.subr.mxu0 0.0
    %1275 = vmatpush1.msra.mxu0 0.0
    %1276 = vmatprep.subr.mxu0 0.0
    %1277 = vmatpush1.msra.mxu0 0.0
    %1278 = vmatprep.subr.mxu0 0.0
    %1279 = vmatpush1.msra.mxu0 0.0
    %1280 = vmatprep.subr.mxu0 0.0
    %1281 = vmatpush1.msra.mxu0 0.0
    %1282 = vmatprep.subr.mxu0 0.0
    %1283 = vmatpush1.msra.mxu0 0.0
    %1284 = vmatprep.subr.mxu0 0.0
    %1285 = vmatpush1.msra.mxu0 0.0
    %1286 = vmatprep.subr.mxu0 0.0
    %1287 = vmatpush1.msra.mxu0 0.0
    %1288 = vmatprep.mubr.f32.mxu0 0.0
    %1289 = vmatmul.mubr.f32.gmra.mrb[0].mxu0 %v1220
    %v1290 = vpop.f32.mrb[0].mxu0
    %v1291 = vadd.f32 0.0, %v1290
    %v1292 = vpop.f32.mrb[0].mxu0
    %1293 = vmatprep.mubr.f32.mxu0 0.0
    %1294 = vmatmul.mubr.f32.gmra.mrb[0].mxu0 %v1221
    %v1295 = vpop.f32.mrb[0].mxu0
    %v1296 = vadd.f32 0.0, %v1295
    %v1297 = vpop.f32.mrb[0].mxu0
    %1298 = vmatprep.mubr.f32.mxu0 0.0
    %1299 = vmatmul.mubr.f32.gmra.mrb[0].mxu0 %v1222
    %v1300 = vpop.f32.mrb[0].mxu0
    %v1301 = vadd.f32 0.0, %v1300
    %v1302 = vpop.f32.mrb[0].mxu0
    %1303 = vmatprep.mubr.f32.mxu0 0.0
    %1304 = vmatmul.mubr.f32.gmra.mrb[0].mxu0 %v1223
    %v1305 = vpop.f32.mrb[0].mxu0
    %v1306 = vadd.f32 0.0, %v1305
    %v1307 = vpop.f32.mrb[0].mxu0
    %1308 = vdwg.mxu0
    %s1309 = scalar_lea.vmem [#allocation8], 256
    %v1310 = vld [vmem:[%s1309] sm:$0xff]
    %v1311 = vld [vmem:[%s1309 + $0x8] sm:$0xff]
    %v1312 = vld [vmem:[%s1309 + $0x10] sm:$0xff]
    %v1313 = vld [vmem:[%s1309 + $0x18] sm:$0xff]
    %v1314 = vld [vmem:[%s1309 + $0x20] sm:$0xff]
    %v1315 = vld [vmem:[%s1309 + $0x28] sm:$0xff]
    %v1316 = vld [vmem:[%s1309 + $0x30] sm:$0xff]
    %v1317 = vld [vmem:[%s1309 + $0x38] sm:$0xff]
    %v1319 = vsel %vm624, %v1291, 0
    %v1322 = vsel %vm624, %v1296, 0
    %v1325 = vsel %vm624, %v1301, 0
    %v1328 = vsel %vm624, %v1306, 0
    %1330 = vmatprep.subr.mxu0 0.0
    %1331 = vmatpush1.msra.mxu0 %v1310
    %1332 = vmatprep.subr.mxu0 0.0
    %1333 = vmatpush1.msra.mxu0 %v1311
    %1334 = vmatprep.subr.mxu0 0.0
    %1335 = vmatpush1.msra.mxu0 %v1312
    %1336 = vmatprep.subr.mxu0 0.0
    %1337 = vmatpush1.msra.mxu0 %v1313
    %1338 = vmatprep.subr.mxu0 0.0
    %1339 = vmatpush1.msra.mxu0 %v1314
    %1340 = vmatprep.subr.mxu0 0.0
    %1341 = vmatpush1.msra.mxu0 %v1315
    %1342 = vmatprep.subr.mxu0 0.0
    %1343 = vmatpush1.msra.mxu0 %v1316
    %1344 = vmatprep.subr.mxu0 0.0
    %1345 = vmatpush1.msra.mxu0 %v1317
    %1346 = vmatprep.subr.mxu0 0.0
    %1347 = vmatpush1.msra.mxu0 0.0
    %1348 = vmatprep.subr.mxu0 0.0
    %1349 = vmatpush1.msra.mxu0 0.0
    %1350 = vmatprep.subr.mxu0 0.0
    %1351 = vmatpush1.msra.mxu0 0.0
    %1352 = vmatprep.subr.mxu0 0.0
    %1353 = vmatpush1.msra.mxu0 0.0
    %1354 = vmatprep.subr.mxu0 0.0
    %1355 = vmatpush1.msra.mxu0 0.0
    %1356 = vmatprep.subr.mxu0 0.0
    %1357 = vmatpush1.msra.mxu0 0.0
    %1358 = vmatprep.subr.mxu0 0.0
    %1359 = vmatpush1.msra.mxu0 0.0
    %1360 = vmatprep.subr.mxu0 0.0
    %1361 = vmatpush1.msra.mxu0 0.0
    %1362 = vmatprep.subr.mxu0 0.0
    %1363 = vmatpush1.msra.mxu0 0.0
    %1364 = vmatprep.subr.mxu0 0.0
    %1365 = vmatpush1.msra.mxu0 0.0
    %1366 = vmatprep.subr.mxu0 0.0
    %1367 = vmatpush1.msra.mxu0 0.0
    %1368 = vmatprep.subr.mxu0 0.0
    %1369 = vmatpush1.msra.mxu0 0.0
    %1370 = vmatprep.subr.mxu0 0.0
    %1371 = vmatpush1.msra.mxu0 0.0
    %1372 = vmatprep.subr.mxu0 0.0
    %1373 = vmatpush1.msra.mxu0 0.0
    %1374 = vmatprep.subr.mxu0 0.0
    %1375 = vmatpush1.msra.mxu0 0.0
    %1376 = vmatprep.subr.mxu0 0.0
    %1377 = vmatpush1.msra.mxu0 0.0
    %1378 = vmatprep.subr.mxu0 0.0
    %1379 = vmatpush1.msra.mxu0 0.0
    %1380 = vmatprep.subr.mxu0 0.0
    %1381 = vmatpush1.msra.mxu0 0.0
    %1382 = vmatprep.subr.mxu0 0.0
    %1383 = vmatpush1.msra.mxu0 0.0
    %1384 = vmatprep.subr.mxu0 0.0
    %1385 = vmatpush1.msra.mxu0 0.0
    %1386 = vmatprep.subr.mxu0 0.0
    %1387 = vmatpush1.msra.mxu0 0.0
    %1388 = vmatprep.subr.mxu0 0.0
    %1389 = vmatpush1.msra.mxu0 0.0
    %1390 = vmatprep.subr.mxu0 0.0
    %1391 = vmatpush1.msra.mxu0 0.0
    %1392 = vmatprep.subr.mxu0 0.0
    %1393 = vmatpush1.msra.mxu0 0.0
    %1394 = vmatprep.mubr.f32.mxu0 0.0
    %1395 = vmatmul.mubr.f32.gmra.mrb[0].mxu0 %v1319
    %v1396 = vpop.f32.mrb[0].mxu0
    %v1397 = vadd.f32 0.0, %v1396
    %v1398 = vpop.f32.mrb[0].mxu0
    %1399 = vmatprep.mubr.f32.mxu0 0.0
    %1400 = vmatmul.mubr.f32.gmra.mrb[0].mxu0 %v1322
    %v1401 = vpop.f32.mrb[0].mxu0
    %v1402 = vadd.f32 0.0, %v1401
    %v1403 = vpop.f32.mrb[0].mxu0
    %1404 = vmatprep.mubr.f32.mxu0 0.0
    %1405 = vmatmul.mubr.f32.gmra.mrb[0].mxu0 %v1325
    %v1406 = vpop.f32.mrb[0].mxu0
    %v1407 = vadd.f32 0.0, %v1406
    %v1408 = vpop.f32.mrb[0].mxu0
    %1409 = vmatprep.mubr.f32.mxu0 0.0
    %1410 = vmatmul.mubr.f32.gmra.mrb[0].mxu0 %v1328
    %v1411 = vpop.f32.mrb[0].mxu0
    %v1412 = vadd.f32 0.0, %v1411
    %v1413 = vpop.f32.mrb[0].mxu0
    %1414 = vdwg.mxu0
    %v1415 = vadd.f32 %v1215, %v1397
    %v1416 = vadd.f32 %v1216, %v1402
    %v1417 = vadd.f32 %v1217, %v1407
    %v1418 = vadd.f32 %v1218, %v1412
    %s1419 = scalar_lea.vmem [#allocation7], 160
    %v1420 = vld [vmem:[%s1419] sm:$0xff]
    %v1421 = vld [vmem:[%s1419 + $0x8] sm:$0xff]
    %v1422 = vld [vmem:[%s1419 + $0x10] sm:$0xff]
    %v1423 = vld [vmem:[%s1419 + $0x18] sm:$0xff]
    %1424 = vmatprep.subr.mxu0 0.0
    %1425 = vmatpush1.msra.mxu0 %v412
    %1426 = vmatprep.subr.mxu0 0.0
    %1427 = vmatpush1.msra.mxu0 %v413
    %1428 = vmatprep.subr.mxu0 0.0
    %1429 = vmatpush1.msra.mxu0 %v414
    %1430 = vmatprep.subr.mxu0 0.0
    %1431 = vmatpush1.msra.mxu0 %v415
    %1432 = vmatprep.subr.mxu0 0.0
    %1433 = vmatpush1.msra.mxu0 %v416
    %1434 = vmatprep.subr.mxu0 0.0
    %1435 = vmatpush1.msra.mxu0 %v417
    %1436 = vmatprep.subr.mxu0 0.0
    %1437 = vmatpush1.msra.mxu0 %v418
    %1438 = vmatprep.subr.mxu0 0.0
    %1439 = vmatpush1.msra.mxu0 %v419
    %1440 = vmatprep.subr.mxu0 0.0
    %1441 = vmatpush1.msra.mxu0 %v420
    %1442 = vmatprep.subr.mxu0 0.0
    %1443 = vmatpush1.msra.mxu0 %v421
    %1444 = vmatprep.subr.mxu0 0.0
    %1445 = vmatpush1.msra.mxu0 %v422
    %1446 = vmatprep.subr.mxu0 0.0
    %1447 = vmatpush1.msra.mxu0 %v423
    %1448 = vmatprep.subr.mxu0 0.0
    %1449 = vmatpush1.msra.mxu0 %v424
    %1450 = vmatprep.subr.mxu0 0.0
    %1451 = vmatpush1.msra.mxu0 %v425
    %1452 = vmatprep.subr.mxu0 0.0
    %1453 = vmatpush1.msra.mxu0 %v426
    %1454 = vmatprep.subr.mxu0 0.0
    %1455 = vmatpush1.msra.mxu0 %v427
    %1456 = vmatprep.subr.mxu0 0.0
    %1457 = vmatpush1.msra.mxu0 0.0
    %1458 = vmatprep.subr.mxu0 0.0
    %1459 = vmatpush1.msra.mxu0 0.0
    %1460 = vmatprep.subr.mxu0 0.0
    %1461 = vmatpush1.msra.mxu0 0.0
    %1462 = vmatprep.subr.mxu0 0.0
    %1463 = vmatpush1.msra.mxu0 0.0
    %1464 = vmatprep.subr.mxu0 0.0
    %1465 = vmatpush1.msra.mxu0 0.0
    %1466 = vmatprep.subr.mxu0 0.0
    %1467 = vmatpush1.msra.mxu0 0.0
    %1468 = vmatprep.subr.mxu0 0.0
    %1469 = vmatpush1.msra.mxu0 0.0
    %1470 = vmatprep.subr.mxu0 0.0
    %1471 = vmatpush1.msra.mxu0 0.0
    %1472 = vmatprep.subr.mxu0 0.0
    %1473 = vmatpush1.msra.mxu0 0.0
    %1474 = vmatprep.subr.mxu0 0.0
    %1475 = vmatpush1.msra.mxu0 0.0
    %1476 = vmatprep.subr.mxu0 0.0
    %1477 = vmatpush1.msra.mxu0 0.0
    %1478 = vmatprep.subr.mxu0 0.0
    %1479 = vmatpush1.msra.mxu0 0.0
    %1480 = vmatprep.subr.mxu0 0.0
    %1481 = vmatpush1.msra.mxu0 0.0
    %1482 = vmatprep.subr.mxu0 0.0
    %1483 = vmatpush1.msra.mxu0 0.0
    %1484 = vmatprep.subr.mxu0 0.0
    %1485 = vmatpush1.msra.mxu0 0.0
    %1486 = vmatprep.subr.mxu0 0.0
    %1487 = vmatpush1.msra.mxu0 0.0
    %1488 = vmatprep.mubr.f32.mxu0 0.0
    %1489 = vmatmul.mubr.f32.gmra.mrb[0].mxu0 %v1420
    %v1490 = vpop.f32.mrb[0].mxu0
    %v1491 = vadd.f32 0.0, %v1490
    %v1492 = vpop.f32.mrb[0].mxu0
    %1493 = vmatprep.mubr.f32.mxu0 0.0
    %1494 = vmatmul.mubr.f32.gmra.mrb[0].mxu0 %v1421
    %v1495 = vpop.f32.mrb[0].mxu0
    %v1496 = vadd.f32 0.0, %v1495
    %v1497 = vpop.f32.mrb[0].mxu0
    %1498 = vmatprep.mubr.f32.mxu0 0.0
    %1499 = vmatmul.mubr.f32.gmra.mrb[0].mxu0 %v1422
    %v1500 = vpop.f32.mrb[0].mxu0
    %v1501 = vadd.f32 0.0, %v1500
    %v1502 = vpop.f32.mrb[0].mxu0
    %1503 = vmatprep.mubr.f32.mxu0 0.0
    %1504 = vmatmul.mubr.f32.gmra.mrb[0].mxu0 %v1423
    %v1505 = vpop.f32.mrb[0].mxu0
    %v1506 = vadd.f32 0.0, %v1505
    %v1507 = vpop.f32.mrb[0].mxu0
    %1508 = vdwg.mxu0
    %s1509 = scalar_lea.vmem [#allocation8], 320
    %v1510 = vld [vmem:[%s1509] sm:$0xff]
    %v1511 = vld [vmem:[%s1509 + $0x8] sm:$0xff]
    %v1512 = vld [vmem:[%s1509 + $0x10] sm:$0xff]
    %v1513 = vld [vmem:[%s1509 + $0x18] sm:$0xff]
    %v1514 = vld [vmem:[%s1509 + $0x20] sm:$0xff]
    %v1515 = vld [vmem:[%s1509 + $0x28] sm:$0xff]
    %v1516 = vld [vmem:[%s1509 + $0x30] sm:$0xff]
    %v1517 = vld [vmem:[%s1509 + $0x38] sm:$0xff]
    %v1519 = vsel %vm624, %v1491, 0
    %v1522 = vsel %vm624, %v1496, 0
    %v1525 = vsel %vm624, %v1501, 0
    %v1528 = vsel %vm624, %v1506, 0
    %1530 = vmatprep.subr.mxu0 0.0
    %1531 = vmatpush1.msra.mxu0 %v1510
    %1532 = vmatprep.subr.mxu0 0.0
    %1533 = vmatpush1.msra.mxu0 %v1511
    %1534 = vmatprep.subr.mxu0 0.0
    %1535 = vmatpush1.msra.mxu0 %v1512
    %1536 = vmatprep.subr.mxu0 0.0
    %1537 = vmatpush1.msra.mxu0 %v1513
    %1538 = vmatprep.subr.mxu0 0.0
    %1539 = vmatpush1.msra.mxu0 %v1514
    %1540 = vmatprep.subr.mxu0 0.0
    %1541 = vmatpush1.msra.mxu0 %v1515
    %1542 = vmatprep.subr.mxu0 0.0
    %1543 = vmatpush1.msra.mxu0 %v1516
    %1544 = vmatprep.subr.mxu0 0.0
    %1545 = vmatpush1.msra.mxu0 %v1517
    %1546 = vmatprep.subr.mxu0 0.0
    %1547 = vmatpush1.msra.mxu0 0.0
    %1548 = vmatprep.subr.mxu0 0.0
    %1549 = vmatpush1.msra.mxu0 0.0
    %1550 = vmatprep.subr.mxu0 0.0
    %1551 = vmatpush1.msra.mxu0 0.0
    %1552 = vmatprep.subr.mxu0 0.0
    %1553 = vmatpush1.msra.mxu0 0.0
    %1554 = vmatprep.subr.mxu0 0.0
    %1555 = vmatpush1.msra.mxu0 0.0
    %1556 = vmatprep.subr.mxu0 0.0
    %1557 = vmatpush1.msra.mxu0 0.0
    %1558 = vmatprep.subr.mxu0 0.0
    %1559 = vmatpush1.msra.mxu0 0.0
    %1560 = vmatprep.subr.mxu0 0.0
    %1561 = vmatpush1.msra.mxu0 0.0
    %1562 = vmatprep.subr.mxu0 0.0
    %1563 = vmatpush1.msra.mxu0 0.0
    %1564 = vmatprep.subr.mxu0 0.0
    %1565 = vmatpush1.msra.mxu0 0.0
    %1566 = vmatprep.subr.mxu0 0.0
    %1567 = vmatpush1.msra.mxu0 0.0
    %1568 = vmatprep.subr.mxu0 0.0
    %1569 = vmatpush1.msra.mxu0 0.0
    %1570 = vmatprep.subr.mxu0 0.0
    %1571 = vmatpush1.msra.mxu0 0.0
    %1572 = vmatprep.subr.mxu0 0.0
    %1573 = vmatpush1.msra.mxu0 0.0
    %1574 = vmatprep.subr.mxu0 0.0
    %1575 = vmatpush1.msra.mxu0 0.0
    %1576 = vmatprep.subr.mxu0 0.0
    %1577 = vmatpush1.msra.mxu0 0.0
    %1578 = vmatprep.subr.mxu0 0.0
    %1579 = vmatpush1.msra.mxu0 0.0
    %1580 = vmatprep.subr.mxu0 0.0
    %1581 = vmatpush1.msra.mxu0 0.0
    %1582 = vmatprep.subr.mxu0 0.0
    %1583 = vmatpush1.msra.mxu0 0.0
    %1584 = vmatprep.subr.mxu0 0.0
    %1585 = vmatpush1.msra.mxu0 0.0
    %1586 = vmatprep.subr.mxu0 0.0
    %1587 = vmatpush1.msra.mxu0 0.0
    %1588 = vmatprep.subr.mxu0 0.0
    %1589 = vmatpush1.msra.mxu0 0.0
    %1590 = vmatprep.subr.mxu0 0.0
    %1591 = vmatpush1.msra.mxu0 0.0
    %1592 = vmatprep.subr.mxu0 0.0
    %1593 = vmatpush1.msra.mxu0 0.0
    %1594 = vmatprep.mubr.f32.mxu0 0.0
    %1595 = vmatmul.mubr.f32.gmra.mrb[0].mxu0 %v1519
    %v1596 = vpop.f32.mrb[0].mxu0
    %v1597 = vadd.f32 0.0, %v1596
    %v1598 = vpop.f32.mrb[0].mxu0
    %1599 = vmatprep.mubr.f32.mxu0 0.0
    %1600 = vmatmul.mubr.f32.gmra.mrb[0].mxu0 %v1522
    %v1601 = vpop.f32.mrb[0].mxu0
    %v1602 = vadd.f32 0.0, %v1601
    %v1603 = vpop.f32.mrb[0].mxu0
    %1604 = vmatprep.mubr.f32.mxu0 0.0
    %1605 = vmatmul.mubr.f32.gmra.mrb[0].mxu0 %v1525
    %v1606 = vpop.f32.mrb[0].mxu0
    %v1607 = vadd.f32 0.0, %v1606
    %v1608 = vpop.f32.mrb[0].mxu0
    %1609 = vmatprep.mubr.f32.mxu0 0.0
    %1610 = vmatmul.mubr.f32.gmra.mrb[0].mxu0 %v1528
    %v1611 = vpop.f32.mrb[0].mxu0
    %v1612 = vadd.f32 0.0, %v1611
    %v1613 = vpop.f32.mrb[0].mxu0
    %1614 = vdwg.mxu0
    %v1615 = vadd.f32 %v1415, %v1597
    %v1616 = vadd.f32 %v1416, %v1602
    %v1617 = vadd.f32 %v1417, %v1607
    %v1618 = vadd.f32 %v1418, %v1612
    %s1619 = scalar_lea.vmem [#allocation7], 192
    %v1620 = vld [vmem:[%s1619] sm:$0xff]
    %v1621 = vld [vmem:[%s1619 + $0x8] sm:$0xff]
    %v1622 = vld [vmem:[%s1619 + $0x10] sm:$0xff]
    %v1623 = vld [vmem:[%s1619 + $0x18] sm:$0xff]
    %1624 = vmatprep.subr.mxu0 0.0
    %1625 = vmatpush1.msra.mxu0 %v412
    %1626 = vmatprep.subr.mxu0 0.0
    %1627 = vmatpush1.msra.mxu0 %v413
    %1628 = vmatprep.subr.mxu0 0.0
    %1629 = vmatpush1.msra.mxu0 %v414
    %1630 = vmatprep.subr.mxu0 0.0
    %1631 = vmatpush1.msra.mxu0 %v415
    %1632 = vmatprep.subr.mxu0 0.0
    %1633 = vmatpush1.msra.mxu0 %v416
    %1634 = vmatprep.subr.mxu0 0.0
    %1635 = vmatpush1.msra.mxu0 %v417
    %1636 = vmatprep.subr.mxu0 0.0
    %1637 = vmatpush1.msra.mxu0 %v418
    %1638 = vmatprep.subr.mxu0 0.0
    %1639 = vmatpush1.msra.mxu0 %v419
    %1640 = vmatprep.subr.mxu0 0.0
    %1641 = vmatpush1.msra.mxu0 %v420
    %1642 = vmatprep.subr.mxu0 0.0
    %1643 = vmatpush1.msra.mxu0 %v421
    %1644 = vmatprep.subr.mxu0 0.0
    %1645 = vmatpush1.msra.mxu0 %v422
    %1646 = vmatprep.subr.mxu0 0.0
    %1647 = vmatpush1.msra.mxu0 %v423
    %1648 = vmatprep.subr.mxu0 0.0
    %1649 = vmatpush1.msra.mxu0 %v424
    %1650 = vmatprep.subr.mxu0 0.0
    %1651 = vmatpush1.msra.mxu0 %v425
    %1652 = vmatprep.subr.mxu0 0.0
    %1653 = vmatpush1.msra.mxu0 %v426
    %1654 = vmatprep.subr.mxu0 0.0
    %1655 = vmatpush1.msra.mxu0 %v427
    %1656 = vmatprep.subr.mxu0 0.0
    %1657 = vmatpush1.msra.mxu0 0.0
    %1658 = vmatprep.subr.mxu0 0.0
    %1659 = vmatpush1.msra.mxu0 0.0
    %1660 = vmatprep.subr.mxu0 0.0
    %1661 = vmatpush1.msra.mxu0 0.0
    %1662 = vmatprep.subr.mxu0 0.0
    %1663 = vmatpush1.msra.mxu0 0.0
    %1664 = vmatprep.subr.mxu0 0.0
    %1665 = vmatpush1.msra.mxu0 0.0
    %1666 = vmatprep.subr.mxu0 0.0
    %1667 = vmatpush1.msra.mxu0 0.0
    %1668 = vmatprep.subr.mxu0 0.0
    %1669 = vmatpush1.msra.mxu0 0.0
    %1670 = vmatprep.subr.mxu0 0.0
    %1671 = vmatpush1.msra.mxu0 0.0
    %1672 = vmatprep.subr.mxu0 0.0
    %1673 = vmatpush1.msra.mxu0 0.0
    %1674 = vmatprep.subr.mxu0 0.0
    %1675 = vmatpush1.msra.mxu0 0.0
    %1676 = vmatprep.subr.mxu0 0.0
    %1677 = vmatpush1.msra.mxu0 0.0
    %1678 = vmatprep.subr.mxu0 0.0
    %1679 = vmatpush1.msra.mxu0 0.0
    %1680 = vmatprep.subr.mxu0 0.0
    %1681 = vmatpush1.msra.mxu0 0.0
    %1682 = vmatprep.subr.mxu0 0.0
    %1683 = vmatpush1.msra.mxu0 0.0
    %1684 = vmatprep.subr.mxu0 0.0
    %1685 = vmatpush1.msra.mxu0 0.0
    %1686 = vmatprep.subr.mxu0 0.0
    %1687 = vmatpush1.msra.mxu0 0.0
    %1688 = vmatprep.mubr.f32.mxu0 0.0
    %1689 = vmatmul.mubr.f32.gmra.mrb[0].mxu0 %v1620
    %v1690 = vpop.f32.mrb[0].mxu0
    %v1691 = vadd.f32 0.0, %v1690
    %v1692 = vpop.f32.mrb[0].mxu0
    %1693 = vmatprep.mubr.f32.mxu0 0.0
    %1694 = vmatmul.mubr.f32.gmra.mrb[0].mxu0 %v1621
    %v1695 = vpop.f32.mrb[0].mxu0
    %v1696 = vadd.f32 0.0, %v1695
    %v1697 = vpop.f32.mrb[0].mxu0
    %1698 = vmatprep.mubr.f32.mxu0 0.0
    %1699 = vmatmul.mubr.f32.gmra.mrb[0].mxu0 %v1622
    %v1700 = vpop.f32.mrb[0].mxu0
    %v1701 = vadd.f32 0.0, %v1700
    %v1702 = vpop.f32.mrb[0].mxu0
    %1703 = vmatprep.mubr.f32.mxu0 0.0
    %1704 = vmatmul.mubr.f32.gmra.mrb[0].mxu0 %v1623
    %v1705 = vpop.f32.mrb[0].mxu0
    %v1706 = vadd.f32 0.0, %v1705
    %v1707 = vpop.f32.mrb[0].mxu0
    %1708 = vdwg.mxu0
    %s1709 = scalar_lea.vmem [#allocation8], 384
    %v1710 = vld [vmem:[%s1709] sm:$0xff]
    %v1711 = vld [vmem:[%s1709 + $0x8] sm:$0xff]
    %v1712 = vld [vmem:[%s1709 + $0x10] sm:$0xff]
    %v1713 = vld [vmem:[%s1709 + $0x18] sm:$0xff]
    %v1714 = vld [vmem:[%s1709 + $0x20] sm:$0xff]
    %v1715 = vld [vmem:[%s1709 + $0x28] sm:$0xff]
    %v1716 = vld [vmem:[%s1709 + $0x30] sm:$0xff]
    %v1717 = vld [vmem:[%s1709 + $0x38] sm:$0xff]
    %v1719 = vsel %vm624, %v1691, 0
    %v1722 = vsel %vm624, %v1696, 0
    %v1725 = vsel %vm624, %v1701, 0
    %v1728 = vsel %vm624, %v1706, 0
    %1730 = vmatprep.subr.mxu0 0.0
    %1731 = vmatpush1.msra.mxu0 %v1710
    %1732 = vmatprep.subr.mxu0 0.0
    %1733 = vmatpush1.msra.mxu0 %v1711
    %1734 = vmatprep.subr.mxu0 0.0
    %1735 = vmatpush1.msra.mxu0 %v1712
    %1736 = vmatprep.subr.mxu0 0.0
    %1737 = vmatpush1.msra.mxu0 %v1713
    %1738 = vmatprep.subr.mxu0 0.0
    %1739 = vmatpush1.msra.mxu0 %v1714
    %1740 = vmatprep.subr.mxu0 0.0
    %1741 = vmatpush1.msra.mxu0 %v1715
    %1742 = vmatprep.subr.mxu0 0.0
    %1743 = vmatpush1.msra.mxu0 %v1716
    %1744 = vmatprep.subr.mxu0 0.0
    %1745 = vmatpush1.msra.mxu0 %v1717
    %1746 = vmatprep.subr.mxu0 0.0
    %1747 = vmatpush1.msra.mxu0 0.0
    %1748 = vmatprep.subr.mxu0 0.0
    %1749 = vmatpush1.msra.mxu0 0.0
    %1750 = vmatprep.subr.mxu0 0.0
    %1751 = vmatpush1.msra.mxu0 0.0
    %1752 = vmatprep.subr.mxu0 0.0
    %1753 = vmatpush1.msra.mxu0 0.0
    %1754 = vmatprep.subr.mxu0 0.0
    %1755 = vmatpush1.msra.mxu0 0.0
    %1756 = vmatprep.subr.mxu0 0.0
    %1757 = vmatpush1.msra.mxu0 0.0
    %1758 = vmatprep.subr.mxu0 0.0
    %1759 = vmatpush1.msra.mxu0 0.0
    %1760 = vmatprep.subr.mxu0 0.0
    %1761 = vmatpush1.msra.mxu0 0.0
    %1762 = vmatprep.subr.mxu0 0.0
    %1763 = vmatpush1.msra.mxu0 0.0
    %1764 = vmatprep.subr.mxu0 0.0
    %1765 = vmatpush1.msra.mxu0 0.0
    %1766 = vmatprep.subr.mxu0 0.0
    %1767 = vmatpush1.msra.mxu0 0.0
    %1768 = vmatprep.subr.mxu0 0.0
    %1769 = vmatpush1.msra.mxu0 0.0
    %1770 = vmatprep.subr.mxu0 0.0
    %1771 = vmatpush1.msra.mxu0 0.0
    %1772 = vmatprep.subr.mxu0 0.0
    %1773 = vmatpush1.msra.mxu0 0.0
    %1774 = vmatprep.subr.mxu0 0.0
    %1775 = vmatpush1.msra.mxu0 0.0
    %1776 = vmatprep.subr.mxu0 0.0
    %1777 = vmatpush1.msra.mxu0 0.0
    %1778 = vmatprep.subr.mxu0 0.0
    %1779 = vmatpush1.msra.mxu0 0.0
    %1780 = vmatprep.subr.mxu0 0.0
    %1781 = vmatpush1.msra.mxu0 0.0
    %1782 = vmatprep.subr.mxu0 0.0
    %1783 = vmatpush1.msra.mxu0 0.0
    %1784 = vmatprep.subr.mxu0 0.0
    %1785 = vmatpush1.msra.mxu0 0.0
    %1786 = vmatprep.subr.mxu0 0.0
    %1787 = vmatpush1.msra.mxu0 0.0
    %1788 = vmatprep.subr.mxu0 0.0
    %1789 = vmatpush1.msra.mxu0 0.0
    %1790 = vmatprep.subr.mxu0 0.0
    %1791 = vmatpush1.msra.mxu0 0.0
    %1792 = vmatprep.subr.mxu0 0.0
    %1793 = vmatpush1.msra.mxu0 0.0
    %1794 = vmatprep.mubr.f32.mxu0 0.0
    %1795 = vmatmul.mubr.f32.gmra.mrb[0].mxu0 %v1719
    %v1796 = vpop.f32.mrb[0].mxu0
    %v1797 = vadd.f32 0.0, %v1796
    %v1798 = vpop.f32.mrb[0].mxu0
    %1799 = vmatprep.mubr.f32.mxu0 0.0
    %1800 = vmatmul.mubr.f32.gmra.mrb[0].mxu0 %v1722
    %v1801 = vpop.f32.mrb[0].mxu0
    %v1802 = vadd.f32 0.0, %v1801
    %v1803 = vpop.f32.mrb[0].mxu0
    %1804 = vmatprep.mubr.f32.mxu0 0.0
    %1805 = vmatmul.mubr.f32.gmra.mrb[0].mxu0 %v1725
    %v1806 = vpop.f32.mrb[0].mxu0
    %v1807 = vadd.f32 0.0, %v1806
    %v1808 = vpop.f32.mrb[0].mxu0
    %1809 = vmatprep.mubr.f32.mxu0 0.0
    %1810 = vmatmul.mubr.f32.gmra.mrb[0].mxu0 %v1728
    %v1811 = vpop.f32.mrb[0].mxu0
    %v1812 = vadd.f32 0.0, %v1811
    %v1813 = vpop.f32.mrb[0].mxu0
    %1814 = vdwg.mxu0
    %v1815 = vadd.f32 %v1615, %v1797
    %v1816 = vadd.f32 %v1616, %v1802
    %v1817 = vadd.f32 %v1617, %v1807
    %v1818 = vadd.f32 %v1618, %v1812
    %s1819 = scalar_lea.vmem [#allocation7], 224
    %v1820 = vld [vmem:[%s1819] sm:$0xff]
    %v1821 = vld [vmem:[%s1819 + $0x8] sm:$0xff]
    %v1822 = vld [vmem:[%s1819 + $0x10] sm:$0xff]
    %v1823 = vld [vmem:[%s1819 + $0x18] sm:$0xff]
    %1824 = vmatprep.subr.mxu0 0.0
    %1825 = vmatpush1.msra.mxu0 %v412
    %1826 = vmatprep.subr.mxu0 0.0
    %1827 = vmatpush1.msra.mxu0 %v413
    %1828 = vmatprep.subr.mxu0 0.0
    %1829 = vmatpush1.msra.mxu0 %v414
    %1830 = vmatprep.subr.mxu0 0.0
    %1831 = vmatpush1.msra.mxu0 %v415
    %1832 = vmatprep.subr.mxu0 0.0
    %1833 = vmatpush1.msra.mxu0 %v416
    %1834 = vmatprep.subr.mxu0 0.0
    %1835 = vmatpush1.msra.mxu0 %v417
    %1836 = vmatprep.subr.mxu0 0.0
    %1837 = vmatpush1.msra.mxu0 %v418
    %1838 = vmatprep.subr.mxu0 0.0
    %1839 = vmatpush1.msra.mxu0 %v419
    %1840 = vmatprep.subr.mxu0 0.0
    %1841 = vmatpush1.msra.mxu0 %v420
    %1842 = vmatprep.subr.mxu0 0.0
    %1843 = vmatpush1.msra.mxu0 %v421
    %1844 = vmatprep.subr.mxu0 0.0
    %1845 = vmatpush1.msra.mxu0 %v422
    %1846 = vmatprep.subr.mxu0 0.0
    %1847 = vmatpush1.msra.mxu0 %v423
    %1848 = vmatprep.subr.mxu0 0.0
    %1849 = vmatpush1.msra.mxu0 %v424
    %1850 = vmatprep.subr.mxu0 0.0
    %1851 = vmatpush1.msra.mxu0 %v425
    %1852 = vmatprep.subr.mxu0 0.0
    %1853 = vmatpush1.msra.mxu0 %v426
    %1854 = vmatprep.subr.mxu0 0.0
    %1855 = vmatpush1.msra.mxu0 %v427
    %1856 = vmatprep.subr.mxu0 0.0
    %1857 = vmatpush1.msra.mxu0 0.0
    %1858 = vmatprep.subr.mxu0 0.0
    %1859 = vmatpush1.msra.mxu0 0.0
    %1860 = vmatprep.subr.mxu0 0.0
    %1861 = vmatpush1.msra.mxu0 0.0
    %1862 = vmatprep.subr.mxu0 0.0
    %1863 = vmatpush1.msra.mxu0 0.0
    %1864 = vmatprep.subr.mxu0 0.0
    %1865 = vmatpush1.msra.mxu0 0.0
    %1866 = vmatprep.subr.mxu0 0.0
    %1867 = vmatpush1.msra.mxu0 0.0
    %1868 = vmatprep.subr.mxu0 0.0
    %1869 = vmatpush1.msra.mxu0 0.0
    %1870 = vmatprep.subr.mxu0 0.0
    %1871 = vmatpush1.msra.mxu0 0.0
    %1872 = vmatprep.subr.mxu0 0.0
    %1873 = vmatpush1.msra.mxu0 0.0
    %1874 = vmatprep.subr.mxu0 0.0
    %1875 = vmatpush1.msra.mxu0 0.0
    %1876 = vmatprep.subr.mxu0 0.0
    %1877 = vmatpush1.msra.mxu0 0.0
    %1878 = vmatprep.subr.mxu0 0.0
    %1879 = vmatpush1.msra.mxu0 0.0
    %1880 = vmatprep.subr.mxu0 0.0
    %1881 = vmatpush1.msra.mxu0 0.0
    %1882 = vmatprep.subr.mxu0 0.0
    %1883 = vmatpush1.msra.mxu0 0.0
    %1884 = vmatprep.subr.mxu0 0.0
    %1885 = vmatpush1.msra.mxu0 0.0
    %1886 = vmatprep.subr.mxu0 0.0
    %1887 = vmatpush1.msra.mxu0 0.0
    %1888 = vmatprep.mubr.f32.mxu0 0.0
    %1889 = vmatmul.mubr.f32.gmra.mrb[0].mxu0 %v1820
    %v1890 = vpop.f32.mrb[0].mxu0
    %v1891 = vadd.f32 0.0, %v1890
    %v1892 = vpop.f32.mrb[0].mxu0
    %1893 = vmatprep.mubr.f32.mxu0 0.0
    %1894 = vmatmul.mubr.f32.gmra.mrb[0].mxu0 %v1821
    %v1895 = vpop.f32.mrb[0].mxu0
    %v1896 = vadd.f32 0.0, %v1895
    %v1897 = vpop.f32.mrb[0].mxu0
    %1898 = vmatprep.mubr.f32.mxu0 0.0
    %1899 = vmatmul.mubr.f32.gmra.mrb[0].mxu0 %v1822
    %v1900 = vpop.f32.mrb[0].mxu0
    %v1901 = vadd.f32 0.0, %v1900
    %v1902 = vpop.f32.mrb[0].mxu0
    %1903 = vmatprep.mubr.f32.mxu0 0.0
    %1904 = vmatmul.mubr.f32.gmra.mrb[0].mxu0 %v1823
    %v1905 = vpop.f32.mrb[0].mxu0
    %v1906 = vadd.f32 0.0, %v1905
    %v1907 = vpop.f32.mrb[0].mxu0
    %1908 = vdwg.mxu0
    %s1909 = scalar_lea.vmem [#allocation8], 448
    %v1910 = vld [vmem:[%s1909] sm:$0xff]
    %v1911 = vld [vmem:[%s1909 + $0x8] sm:$0xff]
    %v1912 = vld [vmem:[%s1909 + $0x10] sm:$0xff]
    %v1913 = vld [vmem:[%s1909 + $0x18] sm:$0xff]
    %v1914 = vld [vmem:[%s1909 + $0x20] sm:$0xff]
    %v1915 = vld [vmem:[%s1909 + $0x28] sm:$0xff]
    %v1916 = vld [vmem:[%s1909 + $0x30] sm:$0xff]
    %v1917 = vld [vmem:[%s1909 + $0x38] sm:$0xff]
    %v1919 = vsel %vm624, %v1891, 0
    %v1922 = vsel %vm624, %v1896, 0
    %v1925 = vsel %vm624, %v1901, 0
    %v1928 = vsel %vm624, %v1906, 0
    %1930 = vmatprep.subr.mxu0 0.0
    %1931 = vmatpush1.msra.mxu0 %v1910
    %1932 = vmatprep.subr.mxu0 0.0
    %1933 = vmatpush1.msra.mxu0 %v1911
    %1934 = vmatprep.subr.mxu0 0.0
    %1935 = vmatpush1.msra.mxu0 %v1912
    %1936 = vmatprep.subr.mxu0 0.0
    %1937 = vmatpush1.msra.mxu0 %v1913
    %1938 = vmatprep.subr.mxu0 0.0
    %1939 = vmatpush1.msra.mxu0 %v1914
    %1940 = vmatprep.subr.mxu0 0.0
    %1941 = vmatpush1.msra.mxu0 %v1915
    %1942 = vmatprep.subr.mxu0 0.0
    %1943 = vmatpush1.msra.mxu0 %v1916
    %1944 = vmatprep.subr.mxu0 0.0
    %1945 = vmatpush1.msra.mxu0 %v1917
    %1946 = vmatprep.subr.mxu0 0.0
    %1947 = vmatpush1.msra.mxu0 0.0
    %1948 = vmatprep.subr.mxu0 0.0
    %1949 = vmatpush1.msra.mxu0 0.0
    %1950 = vmatprep.subr.mxu0 0.0
    %1951 = vmatpush1.msra.mxu0 0.0
    %1952 = vmatprep.subr.mxu0 0.0
    %1953 = vmatpush1.msra.mxu0 0.0
    %1954 = vmatprep.subr.mxu0 0.0
    %1955 = vmatpush1.msra.mxu0 0.0
    %1956 = vmatprep.subr.mxu0 0.0
    %1957 = vmatpush1.msra.mxu0 0.0
    %1958 = vmatprep.subr.mxu0 0.0
    %1959 = vmatpush1.msra.mxu0 0.0
    %1960 = vmatprep.subr.mxu0 0.0
    %1961 = vmatpush1.msra.mxu0 0.0
    %1962 = vmatprep.subr.mxu0 0.0
    %1963 = vmatpush1.msra.mxu0 0.0
    %1964 = vmatprep.subr.mxu0 0.0
    %1965 = vmatpush1.msra.mxu0 0.0
    %1966 = vmatprep.subr.mxu0 0.0
    %1967 = vmatpush1.msra.mxu0 0.0
    %1968 = vmatprep.subr.mxu0 0.0
    %1969 = vmatpush1.msra.mxu0 0.0
    %1970 = vmatprep.subr.mxu0 0.0
    %1971 = vmatpush1.msra.mxu0 0.0
    %1972 = vmatprep.subr.mxu0 0.0
    %1973 = vmatpush1.msra.mxu0 0.0
    %1974 = vmatprep.subr.mxu0 0.0
    %1975 = vmatpush1.msra.mxu0 0.0
    %1976 = vmatprep.subr.mxu0 0.0
    %1977 = vmatpush1.msra.mxu0 0.0
    %1978 = vmatprep.subr.mxu0 0.0
    %1979 = vmatpush1.msra.mxu0 0.0
    %1980 = vmatprep.subr.mxu0 0.0
    %1981 = vmatpush1.msra.mxu0 0.0
    %1982 = vmatprep.subr.mxu0 0.0
    %1983 = vmatpush1.msra.mxu0 0.0
    %1984 = vmatprep.subr.mxu0 0.0
    %1985 = vmatpush1.msra.mxu0 0.0
    %1986 = vmatprep.subr.mxu0 0.0
    %1987 = vmatpush1.msra.mxu0 0.0
    %1988 = vmatprep.subr.mxu0 0.0
    %1989 = vmatpush1.msra.mxu0 0.0
    %1990 = vmatprep.subr.mxu0 0.0
    %1991 = vmatpush1.msra.mxu0 0.0
    %1992 = vmatprep.subr.mxu0 0.0
    %1993 = vmatpush1.msra.mxu0 0.0
    %1994 = vmatprep.mubr.f32.mxu0 0.0
    %1995 = vmatmul.mubr.f32.gmra.mrb[0].mxu0 %v1919
    %v1996 = vpop.f32.mrb[0].mxu0
    %v1997 = vadd.f32 0.0, %v1996
    %v1998 = vpop.f32.mrb[0].mxu0
    %1999 = vmatprep.mubr.f32.mxu0 0.0
    %2000 = vmatmul.mubr.f32.gmra.mrb[0].mxu0 %v1922
    %v2001 = vpop.f32.mrb[0].mxu0
    %v2002 = vadd.f32 0.0, %v2001
    %v2003 = vpop.f32.mrb[0].mxu0
    %2004 = vmatprep.mubr.f32.mxu0 0.0
    %2005 = vmatmul.mubr.f32.gmra.mrb[0].mxu0 %v1925
    %v2006 = vpop.f32.mrb[0].mxu0
    %v2007 = vadd.f32 0.0, %v2006
    %v2008 = vpop.f32.mrb[0].mxu0
    %2009 = vmatprep.mubr.f32.mxu0 0.0
    %2010 = vmatmul.mubr.f32.gmra.mrb[0].mxu0 %v1928
    %v2011 = vpop.f32.mrb[0].mxu0
    %v2012 = vadd.f32 0.0, %v2011
    %v2013 = vpop.f32.mrb[0].mxu0
    %2014 = vdwg.mxu0
    %v2015 = vadd.f32 %v1815, %v1997
    %v2016 = vadd.f32 %v1816, %v2002
    %v2017 = vadd.f32 %v1817, %v2007
    %v2018 = vadd.f32 %v1818, %v2012
    %s2019 = scalar_lea.vmem [#allocation7], 256
    %v2020 = vld [vmem:[%s2019] sm:$0xff]
    %v2021 = vld [vmem:[%s2019 + $0x8] sm:$0xff]
    %v2022 = vld [vmem:[%s2019 + $0x10] sm:$0xff]
    %v2023 = vld [vmem:[%s2019 + $0x18] sm:$0xff]
    %2024 = vmatprep.subr.mxu0 0.0
    %2025 = vmatpush1.msra.mxu0 %v412
    %2026 = vmatprep.subr.mxu0 0.0
    %2027 = vmatpush1.msra.mxu0 %v413
    %2028 = vmatprep.subr.mxu0 0.0
    %2029 = vmatpush1.msra.mxu0 %v414
    %2030 = vmatprep.subr.mxu0 0.0
    %2031 = vmatpush1.msra.mxu0 %v415
    %2032 = vmatprep.subr.mxu0 0.0
    %2033 = vmatpush1.msra.mxu0 %v416
    %2034 = vmatprep.subr.mxu0 0.0
    %2035 = vmatpush1.msra.mxu0 %v417
    %2036 = vmatprep.subr.mxu0 0.0
    %2037 = vmatpush1.msra.mxu0 %v418
    %2038 = vmatprep.subr.mxu0 0.0
    %2039 = vmatpush1.msra.mxu0 %v419
    %2040 = vmatprep.subr.mxu0 0.0
    %2041 = vmatpush1.msra.mxu0 %v420
    %2042 = vmatprep.subr.mxu0 0.0
    %2043 = vmatpush1.msra.mxu0 %v421
    %2044 = vmatprep.subr.mxu0 0.0
    %2045 = vmatpush1.msra.mxu0 %v422
    %2046 = vmatprep.subr.mxu0 0.0
    %2047 = vmatpush1.msra.mxu0 %v423
    %2048 = vmatprep.subr.mxu0 0.0
    %2049 = vmatpush1.msra.mxu0 %v424
    %2050 = vmatprep.subr.mxu0 0.0
    %2051 = vmatpush1.msra.mxu0 %v425
    %2052 = vmatprep.subr.mxu0 0.0
    %2053 = vmatpush1.msra.mxu0 %v426
    %2054 = vmatprep.subr.mxu0 0.0
    %2055 = vmatpush1.msra.mxu0 %v427
    %2056 = vmatprep.subr.mxu0 0.0
    %2057 = vmatpush1.msra.mxu0 0.0
    %2058 = vmatprep.subr.mxu0 0.0
    %2059 = vmatpush1.msra.mxu0 0.0
    %2060 = vmatprep.subr.mxu0 0.0
    %2061 = vmatpush1.msra.mxu0 0.0
    %2062 = vmatprep.subr.mxu0 0.0
    %2063 = vmatpush1.msra.mxu0 0.0
    %2064 = vmatprep.subr.mxu0 0.0
    %2065 = vmatpush1.msra.mxu0 0.0
    %2066 = vmatprep.subr.mxu0 0.0
    %2067 = vmatpush1.msra.mxu0 0.0
    %2068 = vmatprep.subr.mxu0 0.0
    %2069 = vmatpush1.msra.mxu0 0.0
    %2070 = vmatprep.subr.mxu0 0.0
    %2071 = vmatpush1.msra.mxu0 0.0
    %2072 = vmatprep.subr.mxu0 0.0
    %2073 = vmatpush1.msra.mxu0 0.0
    %2074 = vmatprep.subr.mxu0 0.0
    %2075 = vmatpush1.msra.mxu0 0.0
    %2076 = vmatprep.subr.mxu0 0.0
    %2077 = vmatpush1.msra.mxu0 0.0
    %2078 = vmatprep.subr.mxu0 0.0
    %2079 = vmatpush1.msra.mxu0 0.0
    %2080 = vmatprep.subr.mxu0 0.0
    %2081 = vmatpush1.msra.mxu0 0.0
    %2082 = vmatprep.subr.mxu0 0.0
    %2083 = vmatpush1.msra.mxu0 0.0
    %2084 = vmatprep.subr.mxu0 0.0
    %2085 = vmatpush1.msra.mxu0 0.0
    %2086 = vmatprep.subr.mxu0 0.0
    %2087 = vmatpush1.msra.mxu0 0.0
    %2088 = vmatprep.mubr.f32.mxu0 0.0
    %2089 = vmatmul.mubr.f32.gmra.mrb[0].mxu0 %v2020
    %v2090 = vpop.f32.mrb[0].mxu0
    %v2091 = vadd.f32 0.0, %v2090
    %v2092 = vpop.f32.mrb[0].mxu0
    %2093 = vmatprep.mubr.f32.mxu0 0.0
    %2094 = vmatmul.mubr.f32.gmra.mrb[0].mxu0 %v2021
    %v2095 = vpop.f32.mrb[0].mxu0
    %v2096 = vadd.f32 0.0, %v2095
    %v2097 = vpop.f32.mrb[0].mxu0
    %2098 = vmatprep.mubr.f32.mxu0 0.0
    %2099 = vmatmul.mubr.f32.gmra.mrb[0].mxu0 %v2022
    %v2100 = vpop.f32.mrb[0].mxu0
    %v2101 = vadd.f32 0.0, %v2100
    %v2102 = vpop.f32.mrb[0].mxu0
    %2103 = vmatprep.mubr.f32.mxu0 0.0
    %2104 = vmatmul.mubr.f32.gmra.mrb[0].mxu0 %v2023
    %v2105 = vpop.f32.mrb[0].mxu0
    %v2106 = vadd.f32 0.0, %v2105
    %v2107 = vpop.f32.mrb[0].mxu0
    %2108 = vdwg.mxu0
    %s2109 = scalar_lea.vmem [#allocation8], 512
    %v2110 = vld [vmem:[%s2109] sm:$0xff]
    %v2111 = vld [vmem:[%s2109 + $0x8] sm:$0xff]
    %v2112 = vld [vmem:[%s2109 + $0x10] sm:$0xff]
    %v2113 = vld [vmem:[%s2109 + $0x18] sm:$0xff]
    %v2114 = vld [vmem:[%s2109 + $0x20] sm:$0xff]
    %v2115 = vld [vmem:[%s2109 + $0x28] sm:$0xff]
    %v2116 = vld [vmem:[%s2109 + $0x30] sm:$0xff]
    %v2117 = vld [vmem:[%s2109 + $0x38] sm:$0xff]
    %v2119 = vsel %vm624, %v2091, 0
    %v2122 = vsel %vm624, %v2096, 0
    %v2125 = vsel %vm624, %v2101, 0
    %v2128 = vsel %vm624, %v2106, 0
    %2130 = vmatprep.subr.mxu0 0.0
    %2131 = vmatpush1.msra.mxu0 %v2110
    %2132 = vmatprep.subr.mxu0 0.0
    %2133 = vmatpush1.msra.mxu0 %v2111
    %2134 = vmatprep.subr.mxu0 0.0
    %2135 = vmatpush1.msra.mxu0 %v2112
    %2136 = vmatprep.subr.mxu0 0.0
    %2137 = vmatpush1.msra.mxu0 %v2113
    %2138 = vmatprep.subr.mxu0 0.0
    %2139 = vmatpush1.msra.mxu0 %v2114
    %2140 = vmatprep.subr.mxu0 0.0
    %2141 = vmatpush1.msra.mxu0 %v2115
    %2142 = vmatprep.subr.mxu0 0.0
    %2143 = vmatpush1.msra.mxu0 %v2116
    %2144 = vmatprep.subr.mxu0 0.0
    %2145 = vmatpush1.msra.mxu0 %v2117
    %2146 = vmatprep.subr.mxu0 0.0
    %2147 = vmatpush1.msra.mxu0 0.0
    %2148 = vmatprep.subr.mxu0 0.0
    %2149 = vmatpush1.msra.mxu0 0.0
    %2150 = vmatprep.subr.mxu0 0.0
    %2151 = vmatpush1.msra.mxu0 0.0
    %2152 = vmatprep.subr.mxu0 0.0
    %2153 = vmatpush1.msra.mxu0 0.0
    %2154 = vmatprep.subr.mxu0 0.0
    %2155 = vmatpush1.msra.mxu0 0.0
    %2156 = vmatprep.subr.mxu0 0.0
    %2157 = vmatpush1.msra.mxu0 0.0
    %2158 = vmatprep.subr.mxu0 0.0
    %2159 = vmatpush1.msra.mxu0 0.0
    %2160 = vmatprep.subr.mxu0 0.0
    %2161 = vmatpush1.msra.mxu0 0.0
    %2162 = vmatprep.subr.mxu0 0.0
    %2163 = vmatpush1.msra.mxu0 0.0
    %2164 = vmatprep.subr.mxu0 0.0
    %2165 = vmatpush1.msra.mxu0 0.0
    %2166 = vmatprep.subr.mxu0 0.0
    %2167 = vmatpush1.msra.mxu0 0.0
    %2168 = vmatprep.subr.mxu0 0.0
    %2169 = vmatpush1.msra.mxu0 0.0
    %2170 = vmatprep.subr.mxu0 0.0
    %2171 = vmatpush1.msra.mxu0 0.0
    %2172 = vmatprep.subr.mxu0 0.0
    %2173 = vmatpush1.msra.mxu0 0.0
    %2174 = vmatprep.subr.mxu0 0.0
    %2175 = vmatpush1.msra.mxu0 0.0
    %2176 = vmatprep.subr.mxu0 0.0
    %2177 = vmatpush1.msra.mxu0 0.0
    %2178 = vmatprep.subr.mxu0 0.0
    %2179 = vmatpush1.msra.mxu0 0.0
    %2180 = vmatprep.subr.mxu0 0.0
    %2181 = vmatpush1.msra.mxu0 0.0
    %2182 = vmatprep.subr.mxu0 0.0
    %2183 = vmatpush1.msra.mxu0 0.0
    %2184 = vmatprep.subr.mxu0 0.0
    %2185 = vmatpush1.msra.mxu0 0.0
    %2186 = vmatprep.subr.mxu0 0.0
    %2187 = vmatpush1.msra.mxu0 0.0
    %2188 = vmatprep.subr.mxu0 0.0
    %2189 = vmatpush1.msra.mxu0 0.0
    %2190 = vmatprep.subr.mxu0 0.0
    %2191 = vmatpush1.msra.mxu0 0.0
    %2192 = vmatprep.subr.mxu0 0.0
    %2193 = vmatpush1.msra.mxu0 0.0
    %2194 = vmatprep.mubr.f32.mxu0 0.0
    %2195 = vmatmul.mubr.f32.gmra.mrb[0].mxu0 %v2119
    %v2196 = vpop.f32.mrb[0].mxu0
    %v2197 = vadd.f32 0.0, %v2196
    %v2198 = vpop.f32.mrb[0].mxu0
    %2199 = vmatprep.mubr.f32.mxu0 0.0
    %2200 = vmatmul.mubr.f32.gmra.mrb[0].mxu0 %v2122
    %v2201 = vpop.f32.mrb[0].mxu0
    %v2202 = vadd.f32 0.0, %v2201
    %v2203 = vpop.f32.mrb[0].mxu0
    %2204 = vmatprep.mubr.f32.mxu0 0.0
    %2205 = vmatmul.mubr.f32.gmra.mrb[0].mxu0 %v2125
    %v2206 = vpop.f32.mrb[0].mxu0
    %v2207 = vadd.f32 0.0, %v2206
    %v2208 = vpop.f32.mrb[0].mxu0
    %2209 = vmatprep.mubr.f32.mxu0 0.0
    %2210 = vmatmul.mubr.f32.gmra.mrb[0].mxu0 %v2128
    %v2211 = vpop.f32.mrb[0].mxu0
    %v2212 = vadd.f32 0.0, %v2211
    %v2213 = vpop.f32.mrb[0].mxu0
    %2214 = vdwg.mxu0
    %v2215 = vadd.f32 %v2015, %v2197
    %v2216 = vadd.f32 %v2016, %v2202
    %v2217 = vadd.f32 %v2017, %v2207
    %v2218 = vadd.f32 %v2018, %v2212
    %v2219 = vld [vmem:[#allocation10] sm:$0x1]
    %v2221 = vlaneseq
    %v2222 = vshrl.u32 %v2221, 7
    %v2223 = vsub.s32 0, %v2222
    %v2224 = vrot.slane %v2219, %v2223
    %v2226 = vadd.f32 %v2215, %v2224
    %v2227 = vadd.f32 %v2216, %v2224
    %v2228 = vadd.f32 %v2217, %v2224
    %v2229 = vadd.f32 %v2218, %v2224
    %vm2230 = vcmp.ge.f32.partialorder %v2226, 0.0
    %vm2231 = vcmp.ge.f32.partialorder %v2227, 0.0
    %vm2232 = vcmp.ge.f32.partialorder %v2228, 0.0
    %vm2233 = vcmp.ge.f32.partialorder %v2229, 0.0
    %v2234 = vmul.f32 %v2226, 0.01
    %v2235 = vmul.f32 %v2227, 0.01
    %v2236 = vmul.f32 %v2228, 0.01
    %v2237 = vmul.f32 %v2229, 0.01
    %v2238 = vsel %vm2230, %v2226, %v2234
    %v2239 = vsel %vm2231, %v2227, %v2235
    %v2240 = vsel %vm2232, %v2228, %v2236
    %v2241 = vsel %vm2233, %v2229, %v2237
    %v2242 = vld [vmem:[#allocation11] sm:$0xff]
    %vm2243 = vcmask 261120
    %v2245 = vsel %vm2243, %v2242, 0
    %2247 = vmatprep.subr.mxu0 0.0
    %2248 = vmatpush1.msra.mxu0 %v2238
    %2249 = vmatprep.subr.mxu0 0.0
    %2250 = vmatpush1.msra.mxu0 %v2239
    %2251 = vmatprep.subr.mxu0 0.0
    %2252 = vmatpush1.msra.mxu0 %v2240
    %2253 = vmatprep.subr.mxu0 0.0
    %2254 = vmatpush1.msra.mxu0 %v2241
    %2255 = vmatprep.subr.mxu0 0.0
    %2256 = vmatpush1.msra.mxu0 0.0
    %2257 = vmatprep.subr.mxu0 0.0
    %2258 = vmatpush1.msra.mxu0 0.0
    %2259 = vmatprep.subr.mxu0 0.0
    %2260 = vmatpush1.msra.mxu0 0.0
    %2261 = vmatprep.subr.mxu0 0.0
    %2262 = vmatpush1.msra.mxu0 0.0
    %2263 = vmatprep.subr.mxu0 0.0
    %2264 = vmatpush1.msra.mxu0 0.0
    %2265 = vmatprep.subr.mxu0 0.0
    %2266 = vmatpush1.msra.mxu0 0.0
    %2267 = vmatprep.subr.mxu0 0.0
    %2268 = vmatpush1.msra.mxu0 0.0
    %2269 = vmatprep.subr.mxu0 0.0
    %2270 = vmatpush1.msra.mxu0 0.0
    %2271 = vmatprep.subr.mxu0 0.0
    %2272 = vmatpush1.msra.mxu0 0.0
    %2273 = vmatprep.subr.mxu0 0.0
    %2274 = vmatpush1.msra.mxu0 0.0
    %2275 = vmatprep.subr.mxu0 0.0
    %2276 = vmatpush1.msra.mxu0 0.0
    %2277 = vmatprep.subr.mxu0 0.0
    %2278 = vmatpush1.msra.mxu0 0.0
    %2279 = vmatprep.subr.mxu0 0.0
    %2280 = vmatpush1.msra.mxu0 0.0
    %2281 = vmatprep.subr.mxu0 0.0
    %2282 = vmatpush1.msra.mxu0 0.0
    %2283 = vmatprep.subr.mxu0 0.0
    %2284 = vmatpush1.msra.mxu0 0.0
    %2285 = vmatprep.subr.mxu0 0.0
    %2286 = vmatpush1.msra.mxu0 0.0
    %2287 = vmatprep.subr.mxu0 0.0
    %2288 = vmatpush1.msra.mxu0 0.0
    %2289 = vmatprep.subr.mxu0 0.0
    %2290 = vmatpush1.msra.mxu0 0.0
    %2291 = vmatprep.subr.mxu0 0.0
    %2292 = vmatpush1.msra.mxu0 0.0
    %2293 = vmatprep.subr.mxu0 0.0
    %2294 = vmatpush1.msra.mxu0 0.0
    %2295 = vmatprep.subr.mxu0 0.0
    %2296 = vmatpush1.msra.mxu0 0.0
    %2297 = vmatprep.subr.mxu0 0.0
    %2298 = vmatpush1.msra.mxu0 0.0
    %2299 = vmatprep.subr.mxu0 0.0
    %2300 = vmatpush1.msra.mxu0 0.0
    %2301 = vmatprep.subr.mxu0 0.0
    %2302 = vmatpush1.msra.mxu0 0.0
    %2303 = vmatprep.subr.mxu0 0.0
    %2304 = vmatpush1.msra.mxu0 0.0
    %2305 = vmatprep.subr.mxu0 0.0
    %2306 = vmatpush1.msra.mxu0 0.0
    %2307 = vmatprep.subr.mxu0 0.0
    %2308 = vmatpush1.msra.mxu0 0.0
    %2309 = vmatprep.subr.mxu0 0.0
    %2310 = vmatpush1.msra.mxu0 0.0
    %2311 = vmatprep.mubr.f32.mxu0 0.0
    %2312 = vmatmul.mubr.f32.gmra.mrb[0].mxu0 %v2245
    %v2313 = vpop.f32.mrb[0].mxu0
    %v2314 = vadd.f32 0.0, %v2313
    %v2315 = vpop.f32.mrb[0].mxu0
    %2316 = vdwg.mxu0
    %v2317 = vld [vmem:[#allocation13] sm:$0xff]
    %v2318 = vld [vmem:[#allocation13 + $0x8] sm:$0xff]
    %v2319 = vld [vmem:[#allocation13 + $0x10] sm:$0xff]
    %v2320 = vld [vmem:[#allocation13 + $0x18] sm:$0xff]
    %v2321 = vld [vmem:[#allocation13 + $0x20] sm:$0xff]
    %v2322 = vld [vmem:[#allocation13 + $0x28] sm:$0xff]
    %v2323 = vld [vmem:[#allocation13 + $0x30] sm:$0xff]
    %v2324 = vld [vmem:[#allocation13 + $0x38] sm:$0xff]
    %v2325 = vld [vmem:[#allocation13 + $0x40] sm:$0xff]
    %v2326 = vld [vmem:[#allocation13 + $0x48] sm:$0xff]
    %v2327 = vld [vmem:[#allocation13 + $0x50] sm:$0xff]
    %v2328 = vld [vmem:[#allocation13 + $0x58] sm:$0xff]
    %v2329 = vld [vmem:[#allocation13 + $0x60] sm:$0xff]
    %v2330 = vld [vmem:[#allocation13 + $0x68] sm:$0xff]
    %v2331 = vld [vmem:[#allocation13 + $0x70] sm:$0xff]
    %v2332 = vld [vmem:[#allocation13 + $0x78] sm:$0xff]
    %v2333 = vld [vmem:[#allocation13 + $0x80] sm:$0xff]
    %v2334 = vld [vmem:[#allocation13 + $0x88] sm:$0xff]
    %v2335 = vld [vmem:[#allocation13 + $0x90] sm:$0xff]
    %v2336 = vld [vmem:[#allocation13 + $0x98] sm:$0xff]
    %v2337 = vld [vmem:[#allocation13 + $0xa0] sm:$0xff]
    %v2338 = vld [vmem:[#allocation13 + $0xa8] sm:$0xff]
    %v2339 = vld [vmem:[#allocation13 + $0xb0] sm:$0xff]
    %v2340 = vld [vmem:[#allocation13 + $0xb8] sm:$0xff]
    %v2341 = vld [vmem:[#allocation13 + $0xc0] sm:$0xff]
    %v2342 = vld [vmem:[#allocation13 + $0xc8] sm:$0xff]
    %v2343 = vld [vmem:[#allocation13 + $0xd0] sm:$0xff]
    %v2344 = vld [vmem:[#allocation13 + $0xd8] sm:$0xff]
    %v2345 = vld [vmem:[#allocation13 + $0xe0] sm:$0xff]
    %v2346 = vld [vmem:[#allocation13 + $0xe8] sm:$0xff]
    %v2347 = vld [vmem:[#allocation13 + $0xf0] sm:$0xff]
    %v2348 = vld [vmem:[#allocation13 + $0xf8] sm:$0xff]
    %s2349 = scalar_lea.vmem [#allocation11], 8
    %v2350 = vld [vmem:[%s2349] sm:$0xff]
    %v2352 = vsel %vm2243, %v2350, 0
    %2354 = vmatprep.subr.mxu0 0.0
    %2355 = vmatpush1.msra.mxu0 %v2238
    %2356 = vmatprep.subr.mxu0 0.0
    %2357 = vmatpush1.msra.mxu0 %v2239
    %2358 = vmatprep.subr.mxu0 0.0
    %2359 = vmatpush1.msra.mxu0 %v2240
    %2360 = vmatprep.subr.mxu0 0.0
    %2361 = vmatpush1.msra.mxu0 %v2241
    %2362 = vmatprep.subr.mxu0 0.0
    %2363 = vmatpush1.msra.mxu0 0.0
    %2364 = vmatprep.subr.mxu0 0.0
    %2365 = vmatpush1.msra.mxu0 0.0
    %2366 = vmatprep.subr.mxu0 0.0
    %2367 = vmatpush1.msra.mxu0 0.0
    %2368 = vmatprep.subr.mxu0 0.0
    %2369 = vmatpush1.msra.mxu0 0.0
    %2370 = vmatprep.subr.mxu0 0.0
    %2371 = vmatpush1.msra.mxu0 0.0
    %2372 = vmatprep.subr.mxu0 0.0
    %2373 = vmatpush1.msra.mxu0 0.0
    %2374 = vmatprep.subr.mxu0 0.0
    %2375 = vmatpush1.msra.mxu0 0.0
    %2376 = vmatprep.subr.mxu0 0.0
    %2377 = vmatpush1.msra.mxu0 0.0
    %2378 = vmatprep.subr.mxu0 0.0
    %2379 = vmatpush1.msra.mxu0 0.0
    %2380 = vmatprep.subr.mxu0 0.0
    %2381 = vmatpush1.msra.mxu0 0.0
    %2382 = vmatprep.subr.mxu0 0.0
    %2383 = vmatpush1.msra.mxu0 0.0
    %2384 = vmatprep.subr.mxu0 0.0
    %2385 = vmatpush1.msra.mxu0 0.0
    %2386 = vmatprep.subr.mxu0 0.0
    %2387 = vmatpush1.msra.mxu0 0.0
    %2388 = vmatprep.subr.mxu0 0.0
    %2389 = vmatpush1.msra.mxu0 0.0
    %2390 = vmatprep.subr.mxu0 0.0
    %2391 = vmatpush1.msra.mxu0 0.0
    %2392 = vmatprep.subr.mxu0 0.0
    %2393 = vmatpush1.msra.mxu0 0.0
    %2394 = vmatprep.subr.mxu0 0.0
    %2395 = vmatpush1.msra.mxu0 0.0
    %2396 = vmatprep.subr.mxu0 0.0
    %2397 = vmatpush1.msra.mxu0 0.0
    %2398 = vmatprep.subr.mxu0 0.0
    %2399 = vmatpush1.msra.mxu0 0.0
    %2400 = vmatprep.subr.mxu0 0.0
    %2401 = vmatpush1.msra.mxu0 0.0
    %2402 = vmatprep.subr.mxu0 0.0
    %2403 = vmatpush1.msra.mxu0 0.0
    %2404 = vmatprep.subr.mxu0 0.0
    %2405 = vmatpush1.msra.mxu0 0.0
    %2406 = vmatprep.subr.mxu0 0.0
    %2407 = vmatpush1.msra.mxu0 0.0
    %2408 = vmatprep.subr.mxu0 0.0
    %2409 = vmatpush1.msra.mxu0 0.0
    %2410 = vmatprep.subr.mxu0 0.0
    %2411 = vmatpush1.msra.mxu0 0.0
    %2412 = vmatprep.subr.mxu0 0.0
    %2413 = vmatpush1.msra.mxu0 0.0
    %2414 = vmatprep.subr.mxu0 0.0
    %2415 = vmatpush1.msra.mxu0 0.0
    %2416 = vmatprep.subr.mxu0 0.0
    %2417 = vmatpush1.msra.mxu0 0.0
    %2418 = vmatprep.mubr.f32.mxu0 0.0
    %2419 = vmatmul.mubr.f32.gmra.mrb[0].mxu0 %v2352
    %v2420 = vpop.f32.mrb[0].mxu0
    %v2421 = vadd.f32 0.0, %v2420
    %v2422 = vpop.f32.mrb[0].mxu0
    %2423 = vdwg.mxu0
    %s2424 = scalar_lea.vmem [#allocation13], 256
    %v2425 = vld [vmem:[%s2424] sm:$0xff]
    %v2426 = vld [vmem:[%s2424 + $0x8] sm:$0xff]
    %v2427 = vld [vmem:[%s2424 + $0x10] sm:$0xff]
    %v2428 = vld [vmem:[%s2424 + $0x18] sm:$0xff]
    %v2429 = vld [vmem:[%s2424 + $0x20] sm:$0xff]
    %v2430 = vld [vmem:[%s2424 + $0x28] sm:$0xff]
    %v2431 = vld [vmem:[%s2424 + $0x30] sm:$0xff]
    %v2432 = vld [vmem:[%s2424 + $0x38] sm:$0xff]
    %v2433 = vld [vmem:[%s2424 + $0x40] sm:$0xff]
    %v2434 = vld [vmem:[%s2424 + $0x48] sm:$0xff]
    %v2435 = vld [vmem:[%s2424 + $0x50] sm:$0xff]
    %v2436 = vld [vmem:[%s2424 + $0x58] sm:$0xff]
    %v2437 = vld [vmem:[%s2424 + $0x60] sm:$0xff]
    %v2438 = vld [vmem:[%s2424 + $0x68] sm:$0xff]
    %v2439 = vld [vmem:[%s2424 + $0x70] sm:$0xff]
    %v2440 = vld [vmem:[%s2424 + $0x78] sm:$0xff]
    %v2441 = vld [vmem:[%s2424 + $0x80] sm:$0xff]
    %v2442 = vld [vmem:[%s2424 + $0x88] sm:$0xff]
    %v2443 = vld [vmem:[%s2424 + $0x90] sm:$0xff]
    %v2444 = vld [vmem:[%s2424 + $0x98] sm:$0xff]
    %v2445 = vld [vmem:[%s2424 + $0xa0] sm:$0xff]
    %v2446 = vld [vmem:[%s2424 + $0xa8] sm:$0xff]
    %v2447 = vld [vmem:[%s2424 + $0xb0] sm:$0xff]
    %v2448 = vld [vmem:[%s2424 + $0xb8] sm:$0xff]
    %v2449 = vld [vmem:[%s2424 + $0xc0] sm:$0xff]
    %v2450 = vld [vmem:[%s2424 + $0xc8] sm:$0xff]
    %v2451 = vld [vmem:[%s2424 + $0xd0] sm:$0xff]
    %v2452 = vld [vmem:[%s2424 + $0xd8] sm:$0xff]
    %v2453 = vld [vmem:[%s2424 + $0xe0] sm:$0xff]
    %v2454 = vld [vmem:[%s2424 + $0xe8] sm:$0xff]
    %v2455 = vld [vmem:[%s2424 + $0xf0] sm:$0xff]
    %v2456 = vld [vmem:[%s2424 + $0xf8] sm:$0xff]
    %2457 = vmatprep.subr.mxu0 %v2426
    %2458 = vmatpush1.msra.mxu0 %v2425
    %2459 = vmatprep.subr.mxu0 %v2428
    %2460 = vmatpush1.msra.mxu0 %v2427
    %2461 = vmatprep.subr.mxu0 %v2430
    %2462 = vmatpush1.msra.mxu0 %v2429
    %2463 = vmatprep.subr.mxu0 %v2432
    %2464 = vmatpush1.msra.mxu0 %v2431
    %2465 = vmatprep.subr.mxu0 %v2434
    %2466 = vmatpush1.msra.mxu0 %v2433
    %2467 = vmatprep.subr.mxu0 %v2436
    %2468 = vmatpush1.msra.mxu0 %v2435
    %2469 = vmatprep.subr.mxu0 %v2438
    %2470 = vmatpush1.msra.mxu0 %v2437
    %2471 = vmatprep.subr.mxu0 %v2440
    %2472 = vmatpush1.msra.mxu0 %v2439
    %2473 = vmatprep.subr.mxu0 %v2442
    %2474 = vmatpush1.msra.mxu0 %v2441
    %2475 = vmatprep.subr.mxu0 %v2444
    %2476 = vmatpush1.msra.mxu0 %v2443
    %2477 = vmatprep.subr.mxu0 %v2446
    %2478 = vmatpush1.msra.mxu0 %v2445
    %2479 = vmatprep.subr.mxu0 %v2448
    %2480 = vmatpush1.msra.mxu0 %v2447
    %2481 = vmatprep.subr.mxu0 %v2450
    %2482 = vmatpush1.msra.mxu0 %v2449
    %2483 = vmatprep.subr.mxu0 %v2452
    %2484 = vmatpush1.msra.mxu0 %v2451
    %2485 = vmatprep.subr.mxu0 %v2454
    %2486 = vmatpush1.msra.mxu0 %v2453
    %2487 = vmatprep.subr.mxu0 %v2456
    %2488 = vmatpush1.msra.mxu0 %v2455
    %2489 = vmatprep.subr.mxu0 0.0
    %2490 = vmatpush1.msra.mxu0 0.0
    %2491 = vmatprep.subr.mxu0 0.0
    %2492 = vmatpush1.msra.mxu0 0.0
    %2493 = vmatprep.subr.mxu0 0.0
    %2494 = vmatpush1.msra.mxu0 0.0
    %2495 = vmatprep.subr.mxu0 0.0
    %2496 = vmatpush1.msra.mxu0 0.0
    %2497 = vmatprep.subr.mxu0 0.0
    %2498 = vmatpush1.msra.mxu0 0.0
    %2499 = vmatprep.subr.mxu0 0.0
    %2500 = vmatpush1.msra.mxu0 0.0
    %2501 = vmatprep.subr.mxu0 0.0
    %2502 = vmatpush1.msra.mxu0 0.0
    %2503 = vmatprep.subr.mxu0 0.0
    %2504 = vmatpush1.msra.mxu0 0.0
    %2505 = vmatprep.subr.mxu0 0.0
    %2506 = vmatpush1.msra.mxu0 0.0
    %2507 = vmatprep.subr.mxu0 0.0
    %2508 = vmatpush1.msra.mxu0 0.0
    %2509 = vmatprep.subr.mxu0 0.0
    %2510 = vmatpush1.msra.mxu0 0.0
    %2511 = vmatprep.subr.mxu0 0.0
    %2512 = vmatpush1.msra.mxu0 0.0
    %2513 = vmatprep.subr.mxu0 0.0
    %2514 = vmatpush1.msra.mxu0 0.0
    %2515 = vmatprep.subr.mxu0 0.0
    %2516 = vmatpush1.msra.mxu0 0.0
    %2517 = vmatprep.subr.mxu0 0.0
    %2518 = vmatpush1.msra.mxu0 0.0
    %2519 = vmatprep.subr.mxu0 0.0
    %2520 = vmatpush1.msra.mxu0 0.0
    %2521 = vmatprep.mubr.f32.mxu0 0.0
    %2522 = vmatmul.mubr.f32.gmra.mrb[0].mxu0 %v2421
    %v2523 = vpop.f32.mrb[0].mxu0
    %v2524 = vadd.f32 0.0, %v2523
    %v2525 = vpop.f32.mrb[0].mxu0
    %v2526 = vadd.f32 0.0, %v2525
    %2527 = vdwg.mxu0
    %2528 = vmatprep.subr.mxu0 %v2318
    %2529 = vmatpush1.msra.mxu0 %v2317
    %2530 = vmatprep.subr.mxu0 %v2320
    %2531 = vmatpush1.msra.mxu0 %v2319
    %2532 = vmatprep.subr.mxu0 %v2322
    %2533 = vmatpush1.msra.mxu0 %v2321
    %2534 = vmatprep.subr.mxu0 %v2324
    %2535 = vmatpush1.msra.mxu0 %v2323
    %2536 = vmatprep.subr.mxu0 %v2326
    %2537 = vmatpush1.msra.mxu0 %v2325
    %2538 = vmatprep.subr.mxu0 %v2328
    %2539 = vmatpush1.msra.mxu0 %v2327
    %2540 = vmatprep.subr.mxu0 %v2330
    %2541 = vmatpush1.msra.mxu0 %v2329
    %2542 = vmatprep.subr.mxu0 %v2332
    %2543 = vmatpush1.msra.mxu0 %v2331
    %2544 = vmatprep.subr.mxu0 %v2334
    %2545 = vmatpush1.msra.mxu0 %v2333
    %2546 = vmatprep.subr.mxu0 %v2336
    %2547 = vmatpush1.msra.mxu0 %v2335
    %2548 = vmatprep.subr.mxu0 %v2338
    %2549 = vmatpush1.msra.mxu0 %v2337
    %2550 = vmatprep.subr.mxu0 %v2340
    %2551 = vmatpush1.msra.mxu0 %v2339
    %2552 = vmatprep.subr.mxu0 %v2342
    %2553 = vmatpush1.msra.mxu0 %v2341
    %2554 = vmatprep.subr.mxu0 %v2344
    %2555 = vmatpush1.msra.mxu0 %v2343
    %2556 = vmatprep.subr.mxu0 %v2346
    %2557 = vmatpush1.msra.mxu0 %v2345
    %2558 = vmatprep.subr.mxu0 %v2348
    %2559 = vmatpush1.msra.mxu0 %v2347
    %2560 = vmatprep.subr.mxu0 0.0
    %2561 = vmatpush1.msra.mxu0 0.0
    %2562 = vmatprep.subr.mxu0 0.0
    %2563 = vmatpush1.msra.mxu0 0.0
    %2564 = vmatprep.subr.mxu0 0.0
    %2565 = vmatpush1.msra.mxu0 0.0
    %2566 = vmatprep.subr.mxu0 0.0
    %2567 = vmatpush1.msra.mxu0 0.0
    %2568 = vmatprep.subr.mxu0 0.0
    %2569 = vmatpush1.msra.mxu0 0.0
    %2570 = vmatprep.subr.mxu0 0.0
    %2571 = vmatpush1.msra.mxu0 0.0
    %2572 = vmatprep.subr.mxu0 0.0
    %2573 = vmatpush1.msra.mxu0 0.0
    %2574 = vmatprep.subr.mxu0 0.0
    %2575 = vmatpush1.msra.mxu0 0.0
    %2576 = vmatprep.subr.mxu0 0.0
    %2577 = vmatpush1.msra.mxu0 0.0
    %2578 = vmatprep.subr.mxu0 0.0
    %2579 = vmatpush1.msra.mxu0 0.0
    %2580 = vmatprep.subr.mxu0 0.0
    %2581 = vmatpush1.msra.mxu0 0.0
    %2582 = vmatprep.subr.mxu0 0.0
    %2583 = vmatpush1.msra.mxu0 0.0
    %2584 = vmatprep.subr.mxu0 0.0
    %2585 = vmatpush1.msra.mxu0 0.0
    %2586 = vmatprep.subr.mxu0 0.0
    %2587 = vmatpush1.msra.mxu0 0.0
    %2588 = vmatprep.subr.mxu0 0.0
    %2589 = vmatpush1.msra.mxu0 0.0
    %2590 = vmatprep.subr.mxu0 0.0
    %2591 = vmatpush1.msra.mxu0 0.0
    %2592 = vmatprep.mubr.f32.mxu0 0.0
    %2593 = vmatmul.mubr.f32.gmra.mrb[0].mxu0 %v2314
    %v2594 = vpop.f32.mrb[0].mxu0
    %v2595 = vadd.f32 %v2524, %v2594
    %v2596 = vpop.f32.mrb[0].mxu0
    %v2597 = vadd.f32 %v2526, %v2596
    %2598 = vdwg.mxu0
    %s2599 = scalar_lea.vmem [#allocation11], 16
    %v2600 = vld [vmem:[%s2599] sm:$0xff]
    %v2602 = vsel %vm2243, %v2600, 0
    %2604 = vmatprep.subr.mxu0 0.0
    %2605 = vmatpush1.msra.mxu0 %v2238
    %2606 = vmatprep.subr.mxu0 0.0
    %2607 = vmatpush1.msra.mxu0 %v2239
    %2608 = vmatprep.subr.mxu0 0.0
    %2609 = vmatpush1.msra.mxu0 %v2240
    %2610 = vmatprep.subr.mxu0 0.0
    %2611 = vmatpush1.msra.mxu0 %v2241
    %2612 = vmatprep.subr.mxu0 0.0
    %2613 = vmatpush1.msra.mxu0 0.0
    %2614 = vmatprep.subr.mxu0 0.0
    %2615 = vmatpush1.msra.mxu0 0.0
    %2616 = vmatprep.subr.mxu0 0.0
    %2617 = vmatpush1.msra.mxu0 0.0
    %2618 = vmatprep.subr.mxu0 0.0
    %2619 = vmatpush1.msra.mxu0 0.0
    %2620 = vmatprep.subr.mxu0 0.0
    %2621 = vmatpush1.msra.mxu0 0.0
    %2622 = vmatprep.subr.mxu0 0.0
    %2623 = vmatpush1.msra.mxu0 0.0
    %2624 = vmatprep.subr.mxu0 0.0
    %2625 = vmatpush1.msra.mxu0 0.0
    %2626 = vmatprep.subr.mxu0 0.0
    %2627 = vmatpush1.msra.mxu0 0.0
    %2628 = vmatprep.subr.mxu0 0.0
    %2629 = vmatpush1.msra.mxu0 0.0
    %2630 = vmatprep.subr.mxu0 0.0
    %2631 = vmatpush1.msra.mxu0 0.0
    %2632 = vmatprep.subr.mxu0 0.0
    %2633 = vmatpush1.msra.mxu0 0.0
    %2634 = vmatprep.subr.mxu0 0.0
    %2635 = vmatpush1.msra.mxu0 0.0
    %2636 = vmatprep.subr.mxu0 0.0
    %2637 = vmatpush1.msra.mxu0 0.0
    %2638 = vmatprep.subr.mxu0 0.0
    %2639 = vmatpush1.msra.mxu0 0.0
    %2640 = vmatprep.subr.mxu0 0.0
    %2641 = vmatpush1.msra.mxu0 0.0
    %2642 = vmatprep.subr.mxu0 0.0
    %2643 = vmatpush1.msra.mxu0 0.0
    %2644 = vmatprep.subr.mxu0 0.0
    %2645 = vmatpush1.msra.mxu0 0.0
    %2646 = vmatprep.subr.mxu0 0.0
    %2647 = vmatpush1.msra.mxu0 0.0
    %2648 = vmatprep.subr.mxu0 0.0
    %2649 = vmatpush1.msra.mxu0 0.0
    %2650 = vmatprep.subr.mxu0 0.0
    %2651 = vmatpush1.msra.mxu0 0.0
    %2652 = vmatprep.subr.mxu0 0.0
    %2653 = vmatpush1.msra.mxu0 0.0
    %2654 = vmatprep.subr.mxu0 0.0
    %2655 = vmatpush1.msra.mxu0 0.0
    %2656 = vmatprep.subr.mxu0 0.0
    %2657 = vmatpush1.msra.mxu0 0.0
    %2658 = vmatprep.subr.mxu0 0.0
    %2659 = vmatpush1.msra.mxu0 0.0
    %2660 = vmatprep.subr.mxu0 0.0
    %2661 = vmatpush1.msra.mxu0 0.0
    %2662 = vmatprep.subr.mxu0 0.0
    %2663 = vmatpush1.msra.mxu0 0.0
    %2664 = vmatprep.subr.mxu0 0.0
    %2665 = vmatpush1.msra.mxu0 0.0
    %2666 = vmatprep.subr.mxu0 0.0
    %2667 = vmatpush1.msra.mxu0 0.0
    %2668 = vmatprep.mubr.f32.mxu0 0.0
    %2669 = vmatmul.mubr.f32.gmra.mrb[0].mxu0 %v2602
    %v2670 = vpop.f32.mrb[0].mxu0
    %v2671 = vadd.f32 0.0, %v2670
    %v2672 = vpop.f32.mrb[0].mxu0
    %2673 = vdwg.mxu0
    %s2674 = scalar_lea.vmem [#allocation13], 512
    %v2675 = vld [vmem:[%s2674] sm:$0xff]
    %v2676 = vld [vmem:[%s2674 + $0x8] sm:$0xff]
    %v2677 = vld [vmem:[%s2674 + $0x10] sm:$0xff]
    %v2678 = vld [vmem:[%s2674 + $0x18] sm:$0xff]
    %v2679 = vld [vmem:[%s2674 + $0x20] sm:$0xff]
    %v2680 = vld [vmem:[%s2674 + $0x28] sm:$0xff]
    %v2681 = vld [vmem:[%s2674 + $0x30] sm:$0xff]
    %v2682 = vld [vmem:[%s2674 + $0x38] sm:$0xff]
    %v2683 = vld [vmem:[%s2674 + $0x40] sm:$0xff]
    %v2684 = vld [vmem:[%s2674 + $0x48] sm:$0xff]
    %v2685 = vld [vmem:[%s2674 + $0x50] sm:$0xff]
    %v2686 = vld [vmem:[%s2674 + $0x58] sm:$0xff]
    %v2687 = vld [vmem:[%s2674 + $0x60] sm:$0xff]
    %v2688 = vld [vmem:[%s2674 + $0x68] sm:$0xff]
    %v2689 = vld [vmem:[%s2674 + $0x70] sm:$0xff]
    %v2690 = vld [vmem:[%s2674 + $0x78] sm:$0xff]
    %v2691 = vld [vmem:[%s2674 + $0x80] sm:$0xff]
    %v2692 = vld [vmem:[%s2674 + $0x88] sm:$0xff]
    %v2693 = vld [vmem:[%s2674 + $0x90] sm:$0xff]
    %v2694 = vld [vmem:[%s2674 + $0x98] sm:$0xff]
    %v2695 = vld [vmem:[%s2674 + $0xa0] sm:$0xff]
    %v2696 = vld [vmem:[%s2674 + $0xa8] sm:$0xff]
    %v2697 = vld [vmem:[%s2674 + $0xb0] sm:$0xff]
    %v2698 = vld [vmem:[%s2674 + $0xb8] sm:$0xff]
    %v2699 = vld [vmem:[%s2674 + $0xc0] sm:$0xff]
    %v2700 = vld [vmem:[%s2674 + $0xc8] sm:$0xff]
    %v2701 = vld [vmem:[%s2674 + $0xd0] sm:$0xff]
    %v2702 = vld [vmem:[%s2674 + $0xd8] sm:$0xff]
    %v2703 = vld [vmem:[%s2674 + $0xe0] sm:$0xff]
    %v2704 = vld [vmem:[%s2674 + $0xe8] sm:$0xff]
    %v2705 = vld [vmem:[%s2674 + $0xf0] sm:$0xff]
    %v2706 = vld [vmem:[%s2674 + $0xf8] sm:$0xff]
    %2707 = vmatprep.subr.mxu0 %v2676
    %2708 = vmatpush1.msra.mxu0 %v2675
    %2709 = vmatprep.subr.mxu0 %v2678
    %2710 = vmatpush1.msra.mxu0 %v2677
    %2711 = vmatprep.subr.mxu0 %v2680
    %2712 = vmatpush1.msra.mxu0 %v2679
    %2713 = vmatprep.subr.mxu0 %v2682
    %2714 = vmatpush1.msra.mxu0 %v2681
    %2715 = vmatprep.subr.mxu0 %v2684
    %2716 = vmatpush1.msra.mxu0 %v2683
    %2717 = vmatprep.subr.mxu0 %v2686
    %2718 = vmatpush1.msra.mxu0 %v2685
    %2719 = vmatprep.subr.mxu0 %v2688
    %2720 = vmatpush1.msra.mxu0 %v2687
    %2721 = vmatprep.subr.mxu0 %v2690
    %2722 = vmatpush1.msra.mxu0 %v2689
    %2723 = vmatprep.subr.mxu0 %v2692
    %2724 = vmatpush1.msra.mxu0 %v2691
    %2725 = vmatprep.subr.mxu0 %v2694
    %2726 = vmatpush1.msra.mxu0 %v2693
    %2727 = vmatprep.subr.mxu0 %v2696
    %2728 = vmatpush1.msra.mxu0 %v2695
    %2729 = vmatprep.subr.mxu0 %v2698
    %2730 = vmatpush1.msra.mxu0 %v2697
    %2731 = vmatprep.subr.mxu0 %v2700
    %2732 = vmatpush1.msra.mxu0 %v2699
    %2733 = vmatprep.subr.mxu0 %v2702
    %2734 = vmatpush1.msra.mxu0 %v2701
    %2735 = vmatprep.subr.mxu0 %v2704
    %2736 = vmatpush1.msra.mxu0 %v2703
    %2737 = vmatprep.subr.mxu0 %v2706
    %2738 = vmatpush1.msra.mxu0 %v2705
    %2739 = vmatprep.subr.mxu0 0.0
    %2740 = vmatpush1.msra.mxu0 0.0
    %2741 = vmatprep.subr.mxu0 0.0
    %2742 = vmatpush1.msra.mxu0 0.0
    %2743 = vmatprep.subr.mxu0 0.0
    %2744 = vmatpush1.msra.mxu0 0.0
    %2745 = vmatprep.subr.mxu0 0.0
    %2746 = vmatpush1.msra.mxu0 0.0
    %2747 = vmatprep.subr.mxu0 0.0
    %2748 = vmatpush1.msra.mxu0 0.0
    %2749 = vmatprep.subr.mxu0 0.0
    %2750 = vmatpush1.msra.mxu0 0.0
    %2751 = vmatprep.subr.mxu0 0.0
    %2752 = vmatpush1.msra.mxu0 0.0
    %2753 = vmatprep.subr.mxu0 0.0
    %2754 = vmatpush1.msra.mxu0 0.0
    %2755 = vmatprep.subr.mxu0 0.0
    %2756 = vmatpush1.msra.mxu0 0.0
    %2757 = vmatprep.subr.mxu0 0.0
    %2758 = vmatpush1.msra.mxu0 0.0
    %2759 = vmatprep.subr.mxu0 0.0
    %2760 = vmatpush1.msra.mxu0 0.0
    %2761 = vmatprep.subr.mxu0 0.0
    %2762 = vmatpush1.msra.mxu0 0.0
    %2763 = vmatprep.subr.mxu0 0.0
    %2764 = vmatpush1.msra.mxu0 0.0
    %2765 = vmatprep.subr.mxu0 0.0
    %2766 = vmatpush1.msra.mxu0 0.0
    %2767 = vmatprep.subr.mxu0 0.0
    %2768 = vmatpush1.msra.mxu0 0.0
    %2769 = vmatprep.subr.mxu0 0.0
    %2770 = vmatpush1.msra.mxu0 0.0
    %2771 = vmatprep.mubr.f32.mxu0 0.0
    %2772 = vmatmul.mubr.f32.gmra.mrb[0].mxu0 %v2671
    %v2773 = vpop.f32.mrb[0].mxu0
    %v2774 = vadd.f32 0.0, %v2773
    %v2775 = vpop.f32.mrb[0].mxu0
    %v2776 = vadd.f32 0.0, %v2775
    %2777 = vdwg.mxu0
    %v2778 = vadd.f32 %v2595, %v2774
    %v2779 = vadd.f32 %v2597, %v2776
    %s2780 = scalar_lea.vmem [#allocation11], 24
    %v2781 = vld [vmem:[%s2780] sm:$0xff]
    %v2783 = vsel %vm2243, %v2781, 0
    %2785 = vmatprep.subr.mxu0 0.0
    %2786 = vmatpush1.msra.mxu0 %v2238
    %2787 = vmatprep.subr.mxu0 0.0
    %2788 = vmatpush1.msra.mxu0 %v2239
    %2789 = vmatprep.subr.mxu0 0.0
    %2790 = vmatpush1.msra.mxu0 %v2240
    %2791 = vmatprep.subr.mxu0 0.0
    %2792 = vmatpush1.msra.mxu0 %v2241
    %2793 = vmatprep.subr.mxu0 0.0
    %2794 = vmatpush1.msra.mxu0 0.0
    %2795 = vmatprep.subr.mxu0 0.0
    %2796 = vmatpush1.msra.mxu0 0.0
    %2797 = vmatprep.subr.mxu0 0.0
    %2798 = vmatpush1.msra.mxu0 0.0
    %2799 = vmatprep.subr.mxu0 0.0
    %2800 = vmatpush1.msra.mxu0 0.0
    %2801 = vmatprep.subr.mxu0 0.0
    %2802 = vmatpush1.msra.mxu0 0.0
    %2803 = vmatprep.subr.mxu0 0.0
    %2804 = vmatpush1.msra.mxu0 0.0
    %2805 = vmatprep.subr.mxu0 0.0
    %2806 = vmatpush1.msra.mxu0 0.0
    %2807 = vmatprep.subr.mxu0 0.0
    %2808 = vmatpush1.msra.mxu0 0.0
    %2809 = vmatprep.subr.mxu0 0.0
    %2810 = vmatpush1.msra.mxu0 0.0
    %2811 = vmatprep.subr.mxu0 0.0
    %2812 = vmatpush1.msra.mxu0 0.0
    %2813 = vmatprep.subr.mxu0 0.0
    %2814 = vmatpush1.msra.mxu0 0.0
    %2815 = vmatprep.subr.mxu0 0.0
    %2816 = vmatpush1.msra.mxu0 0.0
    %2817 = vmatprep.subr.mxu0 0.0
    %2818 = vmatpush1.msra.mxu0 0.0
    %2819 = vmatprep.subr.mxu0 0.0
    %2820 = vmatpush1.msra.mxu0 0.0
    %2821 = vmatprep.subr.mxu0 0.0
    %2822 = vmatpush1.msra.mxu0 0.0
    %2823 = vmatprep.subr.mxu0 0.0
    %2824 = vmatpush1.msra.mxu0 0.0
    %2825 = vmatprep.subr.mxu0 0.0
    %2826 = vmatpush1.msra.mxu0 0.0
    %2827 = vmatprep.subr.mxu0 0.0
    %2828 = vmatpush1.msra.mxu0 0.0
    %2829 = vmatprep.subr.mxu0 0.0
    %2830 = vmatpush1.msra.mxu0 0.0
    %2831 = vmatprep.subr.mxu0 0.0
    %2832 = vmatpush1.msra.mxu0 0.0
    %2833 = vmatprep.subr.mxu0 0.0
    %2834 = vmatpush1.msra.mxu0 0.0
    %2835 = vmatprep.subr.mxu0 0.0
    %2836 = vmatpush1.msra.mxu0 0.0
    %2837 = vmatprep.subr.mxu0 0.0
    %2838 = vmatpush1.msra.mxu0 0.0
    %2839 = vmatprep.subr.mxu0 0.0
    %2840 = vmatpush1.msra.mxu0 0.0
    %2841 = vmatprep.subr.mxu0 0.0
    %2842 = vmatpush1.msra.mxu0 0.0
    %2843 = vmatprep.subr.mxu0 0.0
    %2844 = vmatpush1.msra.mxu0 0.0
    %2845 = vmatprep.subr.mxu0 0.0
    %2846 = vmatpush1.msra.mxu0 0.0
    %2847 = vmatprep.subr.mxu0 0.0
    %2848 = vmatpush1.msra.mxu0 0.0
    %2849 = vmatprep.mubr.f32.mxu0 0.0
    %2850 = vmatmul.mubr.f32.gmra.mrb[0].mxu0 %v2783
    %v2851 = vpop.f32.mrb[0].mxu0
    %v2852 = vadd.f32 0.0, %v2851
    %v2853 = vpop.f32.mrb[0].mxu0
    %2854 = vdwg.mxu0
    %s2855 = scalar_lea.vmem [#allocation13], 768
    %v2856 = vld [vmem:[%s2855] sm:$0xff]
    %v2857 = vld [vmem:[%s2855 + $0x8] sm:$0xff]
    %v2858 = vld [vmem:[%s2855 + $0x10] sm:$0xff]
    %v2859 = vld [vmem:[%s2855 + $0x18] sm:$0xff]
    %v2860 = vld [vmem:[%s2855 + $0x20] sm:$0xff]
    %v2861 = vld [vmem:[%s2855 + $0x28] sm:$0xff]
    %v2862 = vld [vmem:[%s2855 + $0x30] sm:$0xff]
    %v2863 = vld [vmem:[%s2855 + $0x38] sm:$0xff]
    %v2864 = vld [vmem:[%s2855 + $0x40] sm:$0xff]
    %v2865 = vld [vmem:[%s2855 + $0x48] sm:$0xff]
    %v2866 = vld [vmem:[%s2855 + $0x50] sm:$0xff]
    %v2867 = vld [vmem:[%s2855 + $0x58] sm:$0xff]
    %v2868 = vld [vmem:[%s2855 + $0x60] sm:$0xff]
    %v2869 = vld [vmem:[%s2855 + $0x68] sm:$0xff]
    %v2870 = vld [vmem:[%s2855 + $0x70] sm:$0xff]
    %v2871 = vld [vmem:[%s2855 + $0x78] sm:$0xff]
    %v2872 = vld [vmem:[%s2855 + $0x80] sm:$0xff]
    %v2873 = vld [vmem:[%s2855 + $0x88] sm:$0xff]
    %v2874 = vld [vmem:[%s2855 + $0x90] sm:$0xff]
    %v2875 = vld [vmem:[%s2855 + $0x98] sm:$0xff]
    %v2876 = vld [vmem:[%s2855 + $0xa0] sm:$0xff]
    %v2877 = vld [vmem:[%s2855 + $0xa8] sm:$0xff]
    %v2878 = vld [vmem:[%s2855 + $0xb0] sm:$0xff]
    %v2879 = vld [vmem:[%s2855 + $0xb8] sm:$0xff]
    %v2880 = vld [vmem:[%s2855 + $0xc0] sm:$0xff]
    %v2881 = vld [vmem:[%s2855 + $0xc8] sm:$0xff]
    %v2882 = vld [vmem:[%s2855 + $0xd0] sm:$0xff]
    %v2883 = vld [vmem:[%s2855 + $0xd8] sm:$0xff]
    %v2884 = vld [vmem:[%s2855 + $0xe0] sm:$0xff]
    %v2885 = vld [vmem:[%s2855 + $0xe8] sm:$0xff]
    %v2886 = vld [vmem:[%s2855 + $0xf0] sm:$0xff]
    %v2887 = vld [vmem:[%s2855 + $0xf8] sm:$0xff]
    %2888 = vmatprep.subr.mxu0 %v2857
    %2889 = vmatpush1.msra.mxu0 %v2856
    %2890 = vmatprep.subr.mxu0 %v2859
    %2891 = vmatpush1.msra.mxu0 %v2858
    %2892 = vmatprep.subr.mxu0 %v2861
    %2893 = vmatpush1.msra.mxu0 %v2860
    %2894 = vmatprep.subr.mxu0 %v2863
    %2895 = vmatpush1.msra.mxu0 %v2862
    %2896 = vmatprep.subr.mxu0 %v2865
    %2897 = vmatpush1.msra.mxu0 %v2864
    %2898 = vmatprep.subr.mxu0 %v2867
    %2899 = vmatpush1.msra.mxu0 %v2866
    %2900 = vmatprep.subr.mxu0 %v2869
    %2901 = vmatpush1.msra.mxu0 %v2868
    %2902 = vmatprep.subr.mxu0 %v2871
    %2903 = vmatpush1.msra.mxu0 %v2870
    %2904 = vmatprep.subr.mxu0 %v2873
    %2905 = vmatpush1.msra.mxu0 %v2872
    %2906 = vmatprep.subr.mxu0 %v2875
    %2907 = vmatpush1.msra.mxu0 %v2874
    %2908 = vmatprep.subr.mxu0 %v2877
    %2909 = vmatpush1.msra.mxu0 %v2876
    %2910 = vmatprep.subr.mxu0 %v2879
    %2911 = vmatpush1.msra.mxu0 %v2878
    %2912 = vmatprep.subr.mxu0 %v2881
    %2913 = vmatpush1.msra.mxu0 %v2880
    %2914 = vmatprep.subr.mxu0 %v2883
    %2915 = vmatpush1.msra.mxu0 %v2882
    %2916 = vmatprep.subr.mxu0 %v2885
    %2917 = vmatpush1.msra.mxu0 %v2884
    %2918 = vmatprep.subr.mxu0 %v2887
    %2919 = vmatpush1.msra.mxu0 %v2886
    %2920 = vmatprep.subr.mxu0 0.0
    %2921 = vmatpush1.msra.mxu0 0.0
    %2922 = vmatprep.subr.mxu0 0.0
    %2923 = vmatpush1.msra.mxu0 0.0
    %2924 = vmatprep.subr.mxu0 0.0
    %2925 = vmatpush1.msra.mxu0 0.0
    %2926 = vmatprep.subr.mxu0 0.0
    %2927 = vmatpush1.msra.mxu0 0.0
    %2928 = vmatprep.subr.mxu0 0.0
    %2929 = vmatpush1.msra.mxu0 0.0
    %2930 = vmatprep.subr.mxu0 0.0
    %2931 = vmatpush1.msra.mxu0 0.0
    %2932 = vmatprep.subr.mxu0 0.0
    %2933 = vmatpush1.msra.mxu0 0.0
    %2934 = vmatprep.subr.mxu0 0.0
    %2935 = vmatpush1.msra.mxu0 0.0
    %2936 = vmatprep.subr.mxu0 0.0
    %2937 = vmatpush1.msra.mxu0 0.0
    %2938 = vmatprep.subr.mxu0 0.0
    %2939 = vmatpush1.msra.mxu0 0.0
    %2940 = vmatprep.subr.mxu0 0.0
    %2941 = vmatpush1.msra.mxu0 0.0
    %2942 = vmatprep.subr.mxu0 0.0
    %2943 = vmatpush1.msra.mxu0 0.0
    %2944 = vmatprep.subr.mxu0 0.0
    %2945 = vmatpush1.msra.mxu0 0.0
    %2946 = vmatprep.subr.mxu0 0.0
    %2947 = vmatpush1.msra.mxu0 0.0
    %2948 = vmatprep.subr.mxu0 0.0
    %2949 = vmatpush1.msra.mxu0 0.0
    %2950 = vmatprep.subr.mxu0 0.0
    %2951 = vmatpush1.msra.mxu0 0.0
    %2952 = vmatprep.mubr.f32.mxu0 0.0
    %2953 = vmatmul.mubr.f32.gmra.mrb[0].mxu0 %v2852
    %v2954 = vpop.f32.mrb[0].mxu0
    %v2955 = vadd.f32 0.0, %v2954
    %v2956 = vpop.f32.mrb[0].mxu0
    %v2957 = vadd.f32 0.0, %v2956
    %2958 = vdwg.mxu0
    %v2959 = vadd.f32 %v2778, %v2955
    %v2960 = vadd.f32 %v2779, %v2957
    %s2961 = scalar_lea.vmem [#allocation11], 32
    %v2962 = vld [vmem:[%s2961] sm:$0xff]
    %v2964 = vsel %vm2243, %v2962, 0
    %2966 = vmatprep.subr.mxu0 0.0
    %2967 = vmatpush1.msra.mxu0 %v2238
    %2968 = vmatprep.subr.mxu0 0.0
    %2969 = vmatpush1.msra.mxu0 %v2239
    %2970 = vmatprep.subr.mxu0 0.0
    %2971 = vmatpush1.msra.mxu0 %v2240
    %2972 = vmatprep.subr.mxu0 0.0
    %2973 = vmatpush1.msra.mxu0 %v2241
    %2974 = vmatprep.subr.mxu0 0.0
    %2975 = vmatpush1.msra.mxu0 0.0
    %2976 = vmatprep.subr.mxu0 0.0
    %2977 = vmatpush1.msra.mxu0 0.0
    %2978 = vmatprep.subr.mxu0 0.0
    %2979 = vmatpush1.msra.mxu0 0.0
    %2980 = vmatprep.subr.mxu0 0.0
    %2981 = vmatpush1.msra.mxu0 0.0
    %2982 = vmatprep.subr.mxu0 0.0
    %2983 = vmatpush1.msra.mxu0 0.0
    %2984 = vmatprep.subr.mxu0 0.0
    %2985 = vmatpush1.msra.mxu0 0.0
    %2986 = vmatprep.subr.mxu0 0.0
    %2987 = vmatpush1.msra.mxu0 0.0
    %2988 = vmatprep.subr.mxu0 0.0
    %2989 = vmatpush1.msra.mxu0 0.0
    %2990 = vmatprep.subr.mxu0 0.0
    %2991 = vmatpush1.msra.mxu0 0.0
    %2992 = vmatprep.subr.mxu0 0.0
    %2993 = vmatpush1.msra.mxu0 0.0
    %2994 = vmatprep.subr.mxu0 0.0
    %2995 = vmatpush1.msra.mxu0 0.0
    %2996 = vmatprep.subr.mxu0 0.0
    %2997 = vmatpush1.msra.mxu0 0.0
    %2998 = vmatprep.subr.mxu0 0.0
    %2999 = vmatpush1.msra.mxu0 0.0
    %3000 = vmatprep.subr.mxu0 0.0
    %3001 = vmatpush1.msra.mxu0 0.0
    %3002 = vmatprep.subr.mxu0 0.0
    %3003 = vmatpush1.msra.mxu0 0.0
    %3004 = vmatprep.subr.mxu0 0.0
    %3005 = vmatpush1.msra.mxu0 0.0
    %3006 = vmatprep.subr.mxu0 0.0
    %3007 = vmatpush1.msra.mxu0 0.0
    %3008 = vmatprep.subr.mxu0 0.0
    %3009 = vmatpush1.msra.mxu0 0.0
    %3010 = vmatprep.subr.mxu0 0.0
    %3011 = vmatpush1.msra.mxu0 0.0
    %3012 = vmatprep.subr.mxu0 0.0
    %3013 = vmatpush1.msra.mxu0 0.0
    %3014 = vmatprep.subr.mxu0 0.0
    %3015 = vmatpush1.msra.mxu0 0.0
    %3016 = vmatprep.subr.mxu0 0.0
    %3017 = vmatpush1.msra.mxu0 0.0
    %3018 = vmatprep.subr.mxu0 0.0
    %3019 = vmatpush1.msra.mxu0 0.0
    %3020 = vmatprep.subr.mxu0 0.0
    %3021 = vmatpush1.msra.mxu0 0.0
    %3022 = vmatprep.subr.mxu0 0.0
    %3023 = vmatpush1.msra.mxu0 0.0
    %3024 = vmatprep.subr.mxu0 0.0
    %3025 = vmatpush1.msra.mxu0 0.0
    %3026 = vmatprep.subr.mxu0 0.0
    %3027 = vmatpush1.msra.mxu0 0.0
    %3028 = vmatprep.subr.mxu0 0.0
    %3029 = vmatpush1.msra.mxu0 0.0
    %3030 = vmatprep.mubr.f32.mxu0 0.0
    %3031 = vmatmul.mubr.f32.gmra.mrb[0].mxu0 %v2964
    %v3032 = vpop.f32.mrb[0].mxu0
    %v3033 = vadd.f32 0.0, %v3032
    %v3034 = vpop.f32.mrb[0].mxu0
    %3035 = vdwg.mxu0
    %s3036 = scalar_lea.vmem [#allocation13], 1024
    %v3037 = vld [vmem:[%s3036] sm:$0xff]
    %v3038 = vld [vmem:[%s3036 + $0x8] sm:$0xff]
    %v3039 = vld [vmem:[%s3036 + $0x10] sm:$0xff]
    %v3040 = vld [vmem:[%s3036 + $0x18] sm:$0xff]
    %v3041 = vld [vmem:[%s3036 + $0x20] sm:$0xff]
    %v3042 = vld [vmem:[%s3036 + $0x28] sm:$0xff]
    %v3043 = vld [vmem:[%s3036 + $0x30] sm:$0xff]
    %v3044 = vld [vmem:[%s3036 + $0x38] sm:$0xff]
    %v3045 = vld [vmem:[%s3036 + $0x40] sm:$0xff]
    %v3046 = vld [vmem:[%s3036 + $0x48] sm:$0xff]
    %v3047 = vld [vmem:[%s3036 + $0x50] sm:$0xff]
    %v3048 = vld [vmem:[%s3036 + $0x58] sm:$0xff]
    %v3049 = vld [vmem:[%s3036 + $0x60] sm:$0xff]
    %v3050 = vld [vmem:[%s3036 + $0x68] sm:$0xff]
    %v3051 = vld [vmem:[%s3036 + $0x70] sm:$0xff]
    %v3052 = vld [vmem:[%s3036 + $0x78] sm:$0xff]
    %v3053 = vld [vmem:[%s3036 + $0x80] sm:$0xff]
    %v3054 = vld [vmem:[%s3036 + $0x88] sm:$0xff]
    %v3055 = vld [vmem:[%s3036 + $0x90] sm:$0xff]
    %v3056 = vld [vmem:[%s3036 + $0x98] sm:$0xff]
    %v3057 = vld [vmem:[%s3036 + $0xa0] sm:$0xff]
    %v3058 = vld [vmem:[%s3036 + $0xa8] sm:$0xff]
    %v3059 = vld [vmem:[%s3036 + $0xb0] sm:$0xff]
    %v3060 = vld [vmem:[%s3036 + $0xb8] sm:$0xff]
    %v3061 = vld [vmem:[%s3036 + $0xc0] sm:$0xff]
    %v3062 = vld [vmem:[%s3036 + $0xc8] sm:$0xff]
    %v3063 = vld [vmem:[%s3036 + $0xd0] sm:$0xff]
    %v3064 = vld [vmem:[%s3036 + $0xd8] sm:$0xff]
    %v3065 = vld [vmem:[%s3036 + $0xe0] sm:$0xff]
    %v3066 = vld [vmem:[%s3036 + $0xe8] sm:$0xff]
    %v3067 = vld [vmem:[%s3036 + $0xf0] sm:$0xff]
    %v3068 = vld [vmem:[%s3036 + $0xf8] sm:$0xff]
    %3069 = vmatprep.subr.mxu0 %v3038
    %3070 = vmatpush1.msra.mxu0 %v3037
    %3071 = vmatprep.subr.mxu0 %v3040
    %3072 = vmatpush1.msra.mxu0 %v3039
    %3073 = vmatprep.subr.mxu0 %v3042
    %3074 = vmatpush1.msra.mxu0 %v3041
    %3075 = vmatprep.subr.mxu0 %v3044
    %3076 = vmatpush1.msra.mxu0 %v3043
    %3077 = vmatprep.subr.mxu0 %v3046
    %3078 = vmatpush1.msra.mxu0 %v3045
    %3079 = vmatprep.subr.mxu0 %v3048
    %3080 = vmatpush1.msra.mxu0 %v3047
    %3081 = vmatprep.subr.mxu0 %v3050
    %3082 = vmatpush1.msra.mxu0 %v3049
    %3083 = vmatprep.subr.mxu0 %v3052
    %3084 = vmatpush1.msra.mxu0 %v3051
    %3085 = vmatprep.subr.mxu0 %v3054
    %3086 = vmatpush1.msra.mxu0 %v3053
    %3087 = vmatprep.subr.mxu0 %v3056
    %3088 = vmatpush1.msra.mxu0 %v3055
    %3089 = vmatprep.subr.mxu0 %v3058
    %3090 = vmatpush1.msra.mxu0 %v3057
    %3091 = vmatprep.subr.mxu0 %v3060
    %3092 = vmatpush1.msra.mxu0 %v3059
    %3093 = vmatprep.subr.mxu0 %v3062
    %3094 = vmatpush1.msra.mxu0 %v3061
    %3095 = vmatprep.subr.mxu0 %v3064
    %3096 = vmatpush1.msra.mxu0 %v3063
    %3097 = vmatprep.subr.mxu0 %v3066
    %3098 = vmatpush1.msra.mxu0 %v3065
    %3099 = vmatprep.subr.mxu0 %v3068
    %3100 = vmatpush1.msra.mxu0 %v3067
    %3101 = vmatprep.subr.mxu0 0.0
    %3102 = vmatpush1.msra.mxu0 0.0
    %3103 = vmatprep.subr.mxu0 0.0
    %3104 = vmatpush1.msra.mxu0 0.0
    %3105 = vmatprep.subr.mxu0 0.0
    %3106 = vmatpush1.msra.mxu0 0.0
    %3107 = vmatprep.subr.mxu0 0.0
    %3108 = vmatpush1.msra.mxu0 0.0
    %3109 = vmatprep.subr.mxu0 0.0
    %3110 = vmatpush1.msra.mxu0 0.0
    %3111 = vmatprep.subr.mxu0 0.0
    %3112 = vmatpush1.msra.mxu0 0.0
    %3113 = vmatprep.subr.mxu0 0.0
    %3114 = vmatpush1.msra.mxu0 0.0
    %3115 = vmatprep.subr.mxu0 0.0
    %3116 = vmatpush1.msra.mxu0 0.0
    %3117 = vmatprep.subr.mxu0 0.0
    %3118 = vmatpush1.msra.mxu0 0.0
    %3119 = vmatprep.subr.mxu0 0.0
    %3120 = vmatpush1.msra.mxu0 0.0
    %3121 = vmatprep.subr.mxu0 0.0
    %3122 = vmatpush1.msra.mxu0 0.0
    %3123 = vmatprep.subr.mxu0 0.0
    %3124 = vmatpush1.msra.mxu0 0.0
    %3125 = vmatprep.subr.mxu0 0.0
    %3126 = vmatpush1.msra.mxu0 0.0
    %3127 = vmatprep.subr.mxu0 0.0
    %3128 = vmatpush1.msra.mxu0 0.0
    %3129 = vmatprep.subr.mxu0 0.0
    %3130 = vmatpush1.msra.mxu0 0.0
    %3131 = vmatprep.subr.mxu0 0.0
    %3132 = vmatpush1.msra.mxu0 0.0
    %3133 = vmatprep.mubr.f32.mxu0 0.0
    %3134 = vmatmul.mubr.f32.gmra.mrb[0].mxu0 %v3033
    %v3135 = vpop.f32.mrb[0].mxu0
    %v3136 = vadd.f32 0.0, %v3135
    %v3137 = vpop.f32.mrb[0].mxu0
    %v3138 = vadd.f32 0.0, %v3137
    %3139 = vdwg.mxu0
    %v3140 = vadd.f32 %v2959, %v3136
    %v3141 = vadd.f32 %v2960, %v3138
    %s3142 = scalar_lea.vmem [#allocation11], 40
    %v3143 = vld [vmem:[%s3142] sm:$0xff]
    %v3145 = vsel %vm2243, %v3143, 0
    %3147 = vmatprep.subr.mxu0 0.0
    %3148 = vmatpush1.msra.mxu0 %v2238
    %3149 = vmatprep.subr.mxu0 0.0
    %3150 = vmatpush1.msra.mxu0 %v2239
    %3151 = vmatprep.subr.mxu0 0.0
    %3152 = vmatpush1.msra.mxu0 %v2240
    %3153 = vmatprep.subr.mxu0 0.0
    %3154 = vmatpush1.msra.mxu0 %v2241
    %3155 = vmatprep.subr.mxu0 0.0
    %3156 = vmatpush1.msra.mxu0 0.0
    %3157 = vmatprep.subr.mxu0 0.0
    %3158 = vmatpush1.msra.mxu0 0.0
    %3159 = vmatprep.subr.mxu0 0.0
    %3160 = vmatpush1.msra.mxu0 0.0
    %3161 = vmatprep.subr.mxu0 0.0
    %3162 = vmatpush1.msra.mxu0 0.0
    %3163 = vmatprep.subr.mxu0 0.0
    %3164 = vmatpush1.msra.mxu0 0.0
    %3165 = vmatprep.subr.mxu0 0.0
    %3166 = vmatpush1.msra.mxu0 0.0
    %3167 = vmatprep.subr.mxu0 0.0
    %3168 = vmatpush1.msra.mxu0 0.0
    %3169 = vmatprep.subr.mxu0 0.0
    %3170 = vmatpush1.msra.mxu0 0.0
    %3171 = vmatprep.subr.mxu0 0.0
    %3172 = vmatpush1.msra.mxu0 0.0
    %3173 = vmatprep.subr.mxu0 0.0
    %3174 = vmatpush1.msra.mxu0 0.0
    %3175 = vmatprep.subr.mxu0 0.0
    %3176 = vmatpush1.msra.mxu0 0.0
    %3177 = vmatprep.subr.mxu0 0.0
    %3178 = vmatpush1.msra.mxu0 0.0
    %3179 = vmatprep.subr.mxu0 0.0
    %3180 = vmatpush1.msra.mxu0 0.0
    %3181 = vmatprep.subr.mxu0 0.0
    %3182 = vmatpush1.msra.mxu0 0.0
    %3183 = vmatprep.subr.mxu0 0.0
    %3184 = vmatpush1.msra.mxu0 0.0
    %3185 = vmatprep.subr.mxu0 0.0
    %3186 = vmatpush1.msra.mxu0 0.0
    %3187 = vmatprep.subr.mxu0 0.0
    %3188 = vmatpush1.msra.mxu0 0.0
    %3189 = vmatprep.subr.mxu0 0.0
    %3190 = vmatpush1.msra.mxu0 0.0
    %3191 = vmatprep.subr.mxu0 0.0
    %3192 = vmatpush1.msra.mxu0 0.0
    %3193 = vmatprep.subr.mxu0 0.0
    %3194 = vmatpush1.msra.mxu0 0.0
    %3195 = vmatprep.subr.mxu0 0.0
    %3196 = vmatpush1.msra.mxu0 0.0
    %3197 = vmatprep.subr.mxu0 0.0
    %3198 = vmatpush1.msra.mxu0 0.0
    %3199 = vmatprep.subr.mxu0 0.0
    %3200 = vmatpush1.msra.mxu0 0.0
    %3201 = vmatprep.subr.mxu0 0.0
    %3202 = vmatpush1.msra.mxu0 0.0
    %3203 = vmatprep.subr.mxu0 0.0
    %3204 = vmatpush1.msra.mxu0 0.0
    %3205 = vmatprep.subr.mxu0 0.0
    %3206 = vmatpush1.msra.mxu0 0.0
    %3207 = vmatprep.subr.mxu0 0.0
    %3208 = vmatpush1.msra.mxu0 0.0
    %3209 = vmatprep.subr.mxu0 0.0
    %3210 = vmatpush1.msra.mxu0 0.0
    %3211 = vmatprep.mubr.f32.mxu0 0.0
    %3212 = vmatmul.mubr.f32.gmra.mrb[0].mxu0 %v3145
    %v3213 = vpop.f32.mrb[0].mxu0
    %v3214 = vadd.f32 0.0, %v3213
    %v3215 = vpop.f32.mrb[0].mxu0
    %3216 = vdwg.mxu0
    %s3217 = scalar_lea.vmem [#allocation13], 1280
    %v3218 = vld [vmem:[%s3217] sm:$0xff]
    %v3219 = vld [vmem:[%s3217 + $0x8] sm:$0xff]
    %v3220 = vld [vmem:[%s3217 + $0x10] sm:$0xff]
    %v3221 = vld [vmem:[%s3217 + $0x18] sm:$0xff]
    %v3222 = vld [vmem:[%s3217 + $0x20] sm:$0xff]
    %v3223 = vld [vmem:[%s3217 + $0x28] sm:$0xff]
    %v3224 = vld [vmem:[%s3217 + $0x30] sm:$0xff]
    %v3225 = vld [vmem:[%s3217 + $0x38] sm:$0xff]
    %v3226 = vld [vmem:[%s3217 + $0x40] sm:$0xff]
    %v3227 = vld [vmem:[%s3217 + $0x48] sm:$0xff]
    %v3228 = vld [vmem:[%s3217 + $0x50] sm:$0xff]
    %v3229 = vld [vmem:[%s3217 + $0x58] sm:$0xff]
    %v3230 = vld [vmem:[%s3217 + $0x60] sm:$0xff]
    %v3231 = vld [vmem:[%s3217 + $0x68] sm:$0xff]
    %v3232 = vld [vmem:[%s3217 + $0x70] sm:$0xff]
    %v3233 = vld [vmem:[%s3217 + $0x78] sm:$0xff]
    %v3234 = vld [vmem:[%s3217 + $0x80] sm:$0xff]
    %v3235 = vld [vmem:[%s3217 + $0x88] sm:$0xff]
    %v3236 = vld [vmem:[%s3217 + $0x90] sm:$0xff]
    %v3237 = vld [vmem:[%s3217 + $0x98] sm:$0xff]
    %v3238 = vld [vmem:[%s3217 + $0xa0] sm:$0xff]
    %v3239 = vld [vmem:[%s3217 + $0xa8] sm:$0xff]
    %v3240 = vld [vmem:[%s3217 + $0xb0] sm:$0xff]
    %v3241 = vld [vmem:[%s3217 + $0xb8] sm:$0xff]
    %v3242 = vld [vmem:[%s3217 + $0xc0] sm:$0xff]
    %v3243 = vld [vmem:[%s3217 + $0xc8] sm:$0xff]
    %v3244 = vld [vmem:[%s3217 + $0xd0] sm:$0xff]
    %v3245 = vld [vmem:[%s3217 + $0xd8] sm:$0xff]
    %v3246 = vld [vmem:[%s3217 + $0xe0] sm:$0xff]
    %v3247 = vld [vmem:[%s3217 + $0xe8] sm:$0xff]
    %v3248 = vld [vmem:[%s3217 + $0xf0] sm:$0xff]
    %v3249 = vld [vmem:[%s3217 + $0xf8] sm:$0xff]
    %3250 = vmatprep.subr.mxu0 %v3219
    %3251 = vmatpush1.msra.mxu0 %v3218
    %3252 = vmatprep.subr.mxu0 %v3221
    %3253 = vmatpush1.msra.mxu0 %v3220
    %3254 = vmatprep.subr.mxu0 %v3223
    %3255 = vmatpush1.msra.mxu0 %v3222
    %3256 = vmatprep.subr.mxu0 %v3225
    %3257 = vmatpush1.msra.mxu0 %v3224
    %3258 = vmatprep.subr.mxu0 %v3227
    %3259 = vmatpush1.msra.mxu0 %v3226
    %3260 = vmatprep.subr.mxu0 %v3229
    %3261 = vmatpush1.msra.mxu0 %v3228
    %3262 = vmatprep.subr.mxu0 %v3231
    %3263 = vmatpush1.msra.mxu0 %v3230
    %3264 = vmatprep.subr.mxu0 %v3233
    %3265 = vmatpush1.msra.mxu0 %v3232
    %3266 = vmatprep.subr.mxu0 %v3235
    %3267 = vmatpush1.msra.mxu0 %v3234
    %3268 = vmatprep.subr.mxu0 %v3237
    %3269 = vmatpush1.msra.mxu0 %v3236
    %3270 = vmatprep.subr.mxu0 %v3239
    %3271 = vmatpush1.msra.mxu0 %v3238
    %3272 = vmatprep.subr.mxu0 %v3241
    %3273 = vmatpush1.msra.mxu0 %v3240
    %3274 = vmatprep.subr.mxu0 %v3243
    %3275 = vmatpush1.msra.mxu0 %v3242
    %3276 = vmatprep.subr.mxu0 %v3245
    %3277 = vmatpush1.msra.mxu0 %v3244
    %3278 = vmatprep.subr.mxu0 %v3247
    %3279 = vmatpush1.msra.mxu0 %v3246
    %3280 = vmatprep.subr.mxu0 %v3249
    %3281 = vmatpush1.msra.mxu0 %v3248
    %3282 = vmatprep.subr.mxu0 0.0
    %3283 = vmatpush1.msra.mxu0 0.0
    %3284 = vmatprep.subr.mxu0 0.0
    %3285 = vmatpush1.msra.mxu0 0.0
    %3286 = vmatprep.subr.mxu0 0.0
    %3287 = vmatpush1.msra.mxu0 0.0
    %3288 = vmatprep.subr.mxu0 0.0
    %3289 = vmatpush1.msra.mxu0 0.0
    %3290 = vmatprep.subr.mxu0 0.0
    %3291 = vmatpush1.msra.mxu0 0.0
    %3292 = vmatprep.subr.mxu0 0.0
    %3293 = vmatpush1.msra.mxu0 0.0
    %3294 = vmatprep.subr.mxu0 0.0
    %3295 = vmatpush1.msra.mxu0 0.0
    %3296 = vmatprep.subr.mxu0 0.0
    %3297 = vmatpush1.msra.mxu0 0.0
    %3298 = vmatprep.subr.mxu0 0.0
    %3299 = vmatpush1.msra.mxu0 0.0
    %3300 = vmatprep.subr.mxu0 0.0
    %3301 = vmatpush1.msra.mxu0 0.0
    %3302 = vmatprep.subr.mxu0 0.0
    %3303 = vmatpush1.msra.mxu0 0.0
    %3304 = vmatprep.subr.mxu0 0.0
    %3305 = vmatpush1.msra.mxu0 0.0
    %3306 = vmatprep.subr.mxu0 0.0
    %3307 = vmatpush1.msra.mxu0 0.0
    %3308 = vmatprep.subr.mxu0 0.0
    %3309 = vmatpush1.msra.mxu0 0.0
    %3310 = vmatprep.subr.mxu0 0.0
    %3311 = vmatpush1.msra.mxu0 0.0
    %3312 = vmatprep.subr.mxu0 0.0
    %3313 = vmatpush1.msra.mxu0 0.0
    %3314 = vmatprep.mubr.f32.mxu0 0.0
    %3315 = vmatmul.mubr.f32.gmra.mrb[0].mxu0 %v3214
    %v3316 = vpop.f32.mrb[0].mxu0
    %v3317 = vadd.f32 0.0, %v3316
    %v3318 = vpop.f32.mrb[0].mxu0
    %v3319 = vadd.f32 0.0, %v3318
    %3320 = vdwg.mxu0
    %v3321 = vadd.f32 %v3140, %v3317
    %v3322 = vadd.f32 %v3141, %v3319
    %s3323 = scalar_lea.vmem [#allocation11], 48
    %v3324 = vld [vmem:[%s3323] sm:$0xff]
    %v3326 = vsel %vm2243, %v3324, 0
    %3328 = vmatprep.subr.mxu0 0.0
    %3329 = vmatpush1.msra.mxu0 %v2238
    %3330 = vmatprep.subr.mxu0 0.0
    %3331 = vmatpush1.msra.mxu0 %v2239
    %3332 = vmatprep.subr.mxu0 0.0
    %3333 = vmatpush1.msra.mxu0 %v2240
    %3334 = vmatprep.subr.mxu0 0.0
    %3335 = vmatpush1.msra.mxu0 %v2241
    %3336 = vmatprep.subr.mxu0 0.0
    %3337 = vmatpush1.msra.mxu0 0.0
    %3338 = vmatprep.subr.mxu0 0.0
    %3339 = vmatpush1.msra.mxu0 0.0
    %3340 = vmatprep.subr.mxu0 0.0
    %3341 = vmatpush1.msra.mxu0 0.0
    %3342 = vmatprep.subr.mxu0 0.0
    %3343 = vmatpush1.msra.mxu0 0.0
    %3344 = vmatprep.subr.mxu0 0.0
    %3345 = vmatpush1.msra.mxu0 0.0
    %3346 = vmatprep.subr.mxu0 0.0
    %3347 = vmatpush1.msra.mxu0 0.0
    %3348 = vmatprep.subr.mxu0 0.0
    %3349 = vmatpush1.msra.mxu0 0.0
    %3350 = vmatprep.subr.mxu0 0.0
    %3351 = vmatpush1.msra.mxu0 0.0
    %3352 = vmatprep.subr.mxu0 0.0
    %3353 = vmatpush1.msra.mxu0 0.0
    %3354 = vmatprep.subr.mxu0 0.0
    %3355 = vmatpush1.msra.mxu0 0.0
    %3356 = vmatprep.subr.mxu0 0.0
    %3357 = vmatpush1.msra.mxu0 0.0
    %3358 = vmatprep.subr.mxu0 0.0
    %3359 = vmatpush1.msra.mxu0 0.0
    %3360 = vmatprep.subr.mxu0 0.0
    %3361 = vmatpush1.msra.mxu0 0.0
    %3362 = vmatprep.subr.mxu0 0.0
    %3363 = vmatpush1.msra.mxu0 0.0
    %3364 = vmatprep.subr.mxu0 0.0
    %3365 = vmatpush1.msra.mxu0 0.0
    %3366 = vmatprep.subr.mxu0 0.0
    %3367 = vmatpush1.msra.mxu0 0.0
    %3368 = vmatprep.subr.mxu0 0.0
    %3369 = vmatpush1.msra.mxu0 0.0
    %3370 = vmatprep.subr.mxu0 0.0
    %3371 = vmatpush1.msra.mxu0 0.0
    %3372 = vmatprep.subr.mxu0 0.0
    %3373 = vmatpush1.msra.mxu0 0.0
    %3374 = vmatprep.subr.mxu0 0.0
    %3375 = vmatpush1.msra.mxu0 0.0
    %3376 = vmatprep.subr.mxu0 0.0
    %3377 = vmatpush1.msra.mxu0 0.0
    %3378 = vmatprep.subr.mxu0 0.0
    %3379 = vmatpush1.msra.mxu0 0.0
    %3380 = vmatprep.subr.mxu0 0.0
    %3381 = vmatpush1.msra.mxu0 0.0
    %3382 = vmatprep.subr.mxu0 0.0
    %3383 = vmatpush1.msra.mxu0 0.0
    %3384 = vmatprep.subr.mxu0 0.0
    %3385 = vmatpush1.msra.mxu0 0.0
    %3386 = vmatprep.subr.mxu0 0.0
    %3387 = vmatpush1.msra.mxu0 0.0
    %3388 = vmatprep.subr.mxu0 0.0
    %3389 = vmatpush1.msra.mxu0 0.0
    %3390 = vmatprep.subr.mxu0 0.0
    %3391 = vmatpush1.msra.mxu0 0.0
    %3392 = vmatprep.mubr.f32.mxu0 0.0
    %3393 = vmatmul.mubr.f32.gmra.mrb[0].mxu0 %v3326
    %v3394 = vpop.f32.mrb[0].mxu0
    %v3395 = vadd.f32 0.0, %v3394
    %v3396 = vpop.f32.mrb[0].mxu0
    %3397 = vdwg.mxu0
    %s3398 = scalar_lea.vmem [#allocation13], 1536
    %v3399 = vld [vmem:[%s3398] sm:$0xff]
    %v3400 = vld [vmem:[%s3398 + $0x8] sm:$0xff]
    %v3401 = vld [vmem:[%s3398 + $0x10] sm:$0xff]
    %v3402 = vld [vmem:[%s3398 + $0x18] sm:$0xff]
    %v3403 = vld [vmem:[%s3398 + $0x20] sm:$0xff]
    %v3404 = vld [vmem:[%s3398 + $0x28] sm:$0xff]
    %v3405 = vld [vmem:[%s3398 + $0x30] sm:$0xff]
    %v3406 = vld [vmem:[%s3398 + $0x38] sm:$0xff]
    %v3407 = vld [vmem:[%s3398 + $0x40] sm:$0xff]
    %v3408 = vld [vmem:[%s3398 + $0x48] sm:$0xff]
    %v3409 = vld [vmem:[%s3398 + $0x50] sm:$0xff]
    %v3410 = vld [vmem:[%s3398 + $0x58] sm:$0xff]
    %v3411 = vld [vmem:[%s3398 + $0x60] sm:$0xff]
    %v3412 = vld [vmem:[%s3398 + $0x68] sm:$0xff]
    %v3413 = vld [vmem:[%s3398 + $0x70] sm:$0xff]
    %v3414 = vld [vmem:[%s3398 + $0x78] sm:$0xff]
    %v3415 = vld [vmem:[%s3398 + $0x80] sm:$0xff]
    %v3416 = vld [vmem:[%s3398 + $0x88] sm:$0xff]
    %v3417 = vld [vmem:[%s3398 + $0x90] sm:$0xff]
    %v3418 = vld [vmem:[%s3398 + $0x98] sm:$0xff]
    %v3419 = vld [vmem:[%s3398 + $0xa0] sm:$0xff]
    %v3420 = vld [vmem:[%s3398 + $0xa8] sm:$0xff]
    %v3421 = vld [vmem:[%s3398 + $0xb0] sm:$0xff]
    %v3422 = vld [vmem:[%s3398 + $0xb8] sm:$0xff]
    %v3423 = vld [vmem:[%s3398 + $0xc0] sm:$0xff]
    %v3424 = vld [vmem:[%s3398 + $0xc8] sm:$0xff]
    %v3425 = vld [vmem:[%s3398 + $0xd0] sm:$0xff]
    %v3426 = vld [vmem:[%s3398 + $0xd8] sm:$0xff]
    %v3427 = vld [vmem:[%s3398 + $0xe0] sm:$0xff]
    %v3428 = vld [vmem:[%s3398 + $0xe8] sm:$0xff]
    %v3429 = vld [vmem:[%s3398 + $0xf0] sm:$0xff]
    %v3430 = vld [vmem:[%s3398 + $0xf8] sm:$0xff]
    %3431 = vmatprep.subr.mxu0 %v3400
    %3432 = vmatpush1.msra.mxu0 %v3399
    %3433 = vmatprep.subr.mxu0 %v3402
    %3434 = vmatpush1.msra.mxu0 %v3401
    %3435 = vmatprep.subr.mxu0 %v3404
    %3436 = vmatpush1.msra.mxu0 %v3403
    %3437 = vmatprep.subr.mxu0 %v3406
    %3438 = vmatpush1.msra.mxu0 %v3405
    %3439 = vmatprep.subr.mxu0 %v3408
    %3440 = vmatpush1.msra.mxu0 %v3407
    %3441 = vmatprep.subr.mxu0 %v3410
    %3442 = vmatpush1.msra.mxu0 %v3409
    %3443 = vmatprep.subr.mxu0 %v3412
    %3444 = vmatpush1.msra.mxu0 %v3411
    %3445 = vmatprep.subr.mxu0 %v3414
    %3446 = vmatpush1.msra.mxu0 %v3413
    %3447 = vmatprep.subr.mxu0 %v3416
    %3448 = vmatpush1.msra.mxu0 %v3415
    %3449 = vmatprep.subr.mxu0 %v3418
    %3450 = vmatpush1.msra.mxu0 %v3417
    %3451 = vmatprep.subr.mxu0 %v3420
    %3452 = vmatpush1.msra.mxu0 %v3419
    %3453 = vmatprep.subr.mxu0 %v3422
    %3454 = vmatpush1.msra.mxu0 %v3421
    %3455 = vmatprep.subr.mxu0 %v3424
    %3456 = vmatpush1.msra.mxu0 %v3423
    %3457 = vmatprep.subr.mxu0 %v3426
    %3458 = vmatpush1.msra.mxu0 %v3425
    %3459 = vmatprep.subr.mxu0 %v3428
    %3460 = vmatpush1.msra.mxu0 %v3427
    %3461 = vmatprep.subr.mxu0 %v3430
    %3462 = vmatpush1.msra.mxu0 %v3429
    %3463 = vmatprep.subr.mxu0 0.0
    %3464 = vmatpush1.msra.mxu0 0.0
    %3465 = vmatprep.subr.mxu0 0.0
    %3466 = vmatpush1.msra.mxu0 0.0
    %3467 = vmatprep.subr.mxu0 0.0
    %3468 = vmatpush1.msra.mxu0 0.0
    %3469 = vmatprep.subr.mxu0 0.0
    %3470 = vmatpush1.msra.mxu0 0.0
    %3471 = vmatprep.subr.mxu0 0.0
    %3472 = vmatpush1.msra.mxu0 0.0
    %3473 = vmatprep.subr.mxu0 0.0
    %3474 = vmatpush1.msra.mxu0 0.0
    %3475 = vmatprep.subr.mxu0 0.0
    %3476 = vmatpush1.msra.mxu0 0.0
    %3477 = vmatprep.subr.mxu0 0.0
    %3478 = vmatpush1.msra.mxu0 0.0
    %3479 = vmatprep.subr.mxu0 0.0
    %3480 = vmatpush1.msra.mxu0 0.0
    %3481 = vmatprep.subr.mxu0 0.0
    %3482 = vmatpush1.msra.mxu0 0.0
    %3483 = vmatprep.subr.mxu0 0.0
    %3484 = vmatpush1.msra.mxu0 0.0
    %3485 = vmatprep.subr.mxu0 0.0
    %3486 = vmatpush1.msra.mxu0 0.0
    %3487 = vmatprep.subr.mxu0 0.0
    %3488 = vmatpush1.msra.mxu0 0.0
    %3489 = vmatprep.subr.mxu0 0.0
    %3490 = vmatpush1.msra.mxu0 0.0
    %3491 = vmatprep.subr.mxu0 0.0
    %3492 = vmatpush1.msra.mxu0 0.0
    %3493 = vmatprep.subr.mxu0 0.0
    %3494 = vmatpush1.msra.mxu0 0.0
    %3495 = vmatprep.mubr.f32.mxu0 0.0
    %3496 = vmatmul.mubr.f32.gmra.mrb[0].mxu0 %v3395
    %v3497 = vpop.f32.mrb[0].mxu0
    %v3498 = vadd.f32 0.0, %v3497
    %v3499 = vpop.f32.mrb[0].mxu0
    %v3500 = vadd.f32 0.0, %v3499
    %3501 = vdwg.mxu0
    %v3502 = vadd.f32 %v3321, %v3498
    %v3503 = vadd.f32 %v3322, %v3500
    %s3504 = scalar_lea.vmem [#allocation11], 56
    %v3505 = vld [vmem:[%s3504] sm:$0xff]
    %v3507 = vsel %vm2243, %v3505, 0
    %3509 = vmatprep.subr.mxu0 0.0
    %3510 = vmatpush1.msra.mxu0 %v2238
    %3511 = vmatprep.subr.mxu0 0.0
    %3512 = vmatpush1.msra.mxu0 %v2239
    %3513 = vmatprep.subr.mxu0 0.0
    %3514 = vmatpush1.msra.mxu0 %v2240
    %3515 = vmatprep.subr.mxu0 0.0
    %3516 = vmatpush1.msra.mxu0 %v2241
    %3517 = vmatprep.subr.mxu0 0.0
    %3518 = vmatpush1.msra.mxu0 0.0
    %3519 = vmatprep.subr.mxu0 0.0
    %3520 = vmatpush1.msra.mxu0 0.0
    %3521 = vmatprep.subr.mxu0 0.0
    %3522 = vmatpush1.msra.mxu0 0.0
    %3523 = vmatprep.subr.mxu0 0.0
    %3524 = vmatpush1.msra.mxu0 0.0
    %3525 = vmatprep.subr.mxu0 0.0
    %3526 = vmatpush1.msra.mxu0 0.0
    %3527 = vmatprep.subr.mxu0 0.0
    %3528 = vmatpush1.msra.mxu0 0.0
    %3529 = vmatprep.subr.mxu0 0.0
    %3530 = vmatpush1.msra.mxu0 0.0
    %3531 = vmatprep.subr.mxu0 0.0
    %3532 = vmatpush1.msra.mxu0 0.0
    %3533 = vmatprep.subr.mxu0 0.0
    %3534 = vmatpush1.msra.mxu0 0.0
    %3535 = vmatprep.subr.mxu0 0.0
    %3536 = vmatpush1.msra.mxu0 0.0
    %3537 = vmatprep.subr.mxu0 0.0
    %3538 = vmatpush1.msra.mxu0 0.0
    %3539 = vmatprep.subr.mxu0 0.0
    %3540 = vmatpush1.msra.mxu0 0.0
    %3541 = vmatprep.subr.mxu0 0.0
    %3542 = vmatpush1.msra.mxu0 0.0
    %3543 = vmatprep.subr.mxu0 0.0
    %3544 = vmatpush1.msra.mxu0 0.0
    %3545 = vmatprep.subr.mxu0 0.0
    %3546 = vmatpush1.msra.mxu0 0.0
    %3547 = vmatprep.subr.mxu0 0.0
    %3548 = vmatpush1.msra.mxu0 0.0
    %3549 = vmatprep.subr.mxu0 0.0
    %3550 = vmatpush1.msra.mxu0 0.0
    %3551 = vmatprep.subr.mxu0 0.0
    %3552 = vmatpush1.msra.mxu0 0.0
    %3553 = vmatprep.subr.mxu0 0.0
    %3554 = vmatpush1.msra.mxu0 0.0
    %3555 = vmatprep.subr.mxu0 0.0
    %3556 = vmatpush1.msra.mxu0 0.0
    %3557 = vmatprep.subr.mxu0 0.0
    %3558 = vmatpush1.msra.mxu0 0.0
    %3559 = vmatprep.subr.mxu0 0.0
    %3560 = vmatpush1.msra.mxu0 0.0
    %3561 = vmatprep.subr.mxu0 0.0
    %3562 = vmatpush1.msra.mxu0 0.0
    %3563 = vmatprep.subr.mxu0 0.0
    %3564 = vmatpush1.msra.mxu0 0.0
    %3565 = vmatprep.subr.mxu0 0.0
    %3566 = vmatpush1.msra.mxu0 0.0
    %3567 = vmatprep.subr.mxu0 0.0
    %3568 = vmatpush1.msra.mxu0 0.0
    %3569 = vmatprep.subr.mxu0 0.0
    %3570 = vmatpush1.msra.mxu0 0.0
    %3571 = vmatprep.subr.mxu0 0.0
    %3572 = vmatpush1.msra.mxu0 0.0
    %3573 = vmatprep.mubr.f32.mxu0 0.0
    %3574 = vmatmul.mubr.f32.gmra.mrb[0].mxu0 %v3507
    %v3575 = vpop.f32.mrb[0].mxu0
    %v3576 = vadd.f32 0.0, %v3575
    %v3577 = vpop.f32.mrb[0].mxu0
    %3578 = vdwg.mxu0
    %s3579 = scalar_lea.vmem [#allocation13], 1792
    %v3580 = vld [vmem:[%s3579] sm:$0xff]
    %v3581 = vld [vmem:[%s3579 + $0x8] sm:$0xff]
    %v3582 = vld [vmem:[%s3579 + $0x10] sm:$0xff]
    %v3583 = vld [vmem:[%s3579 + $0x18] sm:$0xff]
    %v3584 = vld [vmem:[%s3579 + $0x20] sm:$0xff]
    %v3585 = vld [vmem:[%s3579 + $0x28] sm:$0xff]
    %v3586 = vld [vmem:[%s3579 + $0x30] sm:$0xff]
    %v3587 = vld [vmem:[%s3579 + $0x38] sm:$0xff]
    %v3588 = vld [vmem:[%s3579 + $0x40] sm:$0xff]
    %v3589 = vld [vmem:[%s3579 + $0x48] sm:$0xff]
    %v3590 = vld [vmem:[%s3579 + $0x50] sm:$0xff]
    %v3591 = vld [vmem:[%s3579 + $0x58] sm:$0xff]
    %v3592 = vld [vmem:[%s3579 + $0x60] sm:$0xff]
    %v3593 = vld [vmem:[%s3579 + $0x68] sm:$0xff]
    %v3594 = vld [vmem:[%s3579 + $0x70] sm:$0xff]
    %v3595 = vld [vmem:[%s3579 + $0x78] sm:$0xff]
    %v3596 = vld [vmem:[%s3579 + $0x80] sm:$0xff]
    %v3597 = vld [vmem:[%s3579 + $0x88] sm:$0xff]
    %v3598 = vld [vmem:[%s3579 + $0x90] sm:$0xff]
    %v3599 = vld [vmem:[%s3579 + $0x98] sm:$0xff]
    %v3600 = vld [vmem:[%s3579 + $0xa0] sm:$0xff]
    %v3601 = vld [vmem:[%s3579 + $0xa8] sm:$0xff]
    %v3602 = vld [vmem:[%s3579 + $0xb0] sm:$0xff]
    %v3603 = vld [vmem:[%s3579 + $0xb8] sm:$0xff]
    %v3604 = vld [vmem:[%s3579 + $0xc0] sm:$0xff]
    %v3605 = vld [vmem:[%s3579 + $0xc8] sm:$0xff]
    %v3606 = vld [vmem:[%s3579 + $0xd0] sm:$0xff]
    %v3607 = vld [vmem:[%s3579 + $0xd8] sm:$0xff]
    %v3608 = vld [vmem:[%s3579 + $0xe0] sm:$0xff]
    %v3609 = vld [vmem:[%s3579 + $0xe8] sm:$0xff]
    %v3610 = vld [vmem:[%s3579 + $0xf0] sm:$0xff]
    %v3611 = vld [vmem:[%s3579 + $0xf8] sm:$0xff]
    %3612 = vmatprep.subr.mxu0 %v3581
    %3613 = vmatpush1.msra.mxu0 %v3580
    %3614 = vmatprep.subr.mxu0 %v3583
    %3615 = vmatpush1.msra.mxu0 %v3582
    %3616 = vmatprep.subr.mxu0 %v3585
    %3617 = vmatpush1.msra.mxu0 %v3584
    %3618 = vmatprep.subr.mxu0 %v3587
    %3619 = vmatpush1.msra.mxu0 %v3586
    %3620 = vmatprep.subr.mxu0 %v3589
    %3621 = vmatpush1.msra.mxu0 %v3588
    %3622 = vmatprep.subr.mxu0 %v3591
    %3623 = vmatpush1.msra.mxu0 %v3590
    %3624 = vmatprep.subr.mxu0 %v3593
    %3625 = vmatpush1.msra.mxu0 %v3592
    %3626 = vmatprep.subr.mxu0 %v3595
    %3627 = vmatpush1.msra.mxu0 %v3594
    %3628 = vmatprep.subr.mxu0 %v3597
    %3629 = vmatpush1.msra.mxu0 %v3596
    %3630 = vmatprep.subr.mxu0 %v3599
    %3631 = vmatpush1.msra.mxu0 %v3598
    %3632 = vmatprep.subr.mxu0 %v3601
    %3633 = vmatpush1.msra.mxu0 %v3600
    %3634 = vmatprep.subr.mxu0 %v3603
    %3635 = vmatpush1.msra.mxu0 %v3602
    %3636 = vmatprep.subr.mxu0 %v3605
    %3637 = vmatpush1.msra.mxu0 %v3604
    %3638 = vmatprep.subr.mxu0 %v3607
    %3639 = vmatpush1.msra.mxu0 %v3606
    %3640 = vmatprep.subr.mxu0 %v3609
    %3641 = vmatpush1.msra.mxu0 %v3608
    %3642 = vmatprep.subr.mxu0 %v3611
    %3643 = vmatpush1.msra.mxu0 %v3610
    %3644 = vmatprep.subr.mxu0 0.0
    %3645 = vmatpush1.msra.mxu0 0.0
    %3646 = vmatprep.subr.mxu0 0.0
    %3647 = vmatpush1.msra.mxu0 0.0
    %3648 = vmatprep.subr.mxu0 0.0
    %3649 = vmatpush1.msra.mxu0 0.0
    %3650 = vmatprep.subr.mxu0 0.0
    %3651 = vmatpush1.msra.mxu0 0.0
    %3652 = vmatprep.subr.mxu0 0.0
    %3653 = vmatpush1.msra.mxu0 0.0
    %3654 = vmatprep.subr.mxu0 0.0
    %3655 = vmatpush1.msra.mxu0 0.0
    %3656 = vmatprep.subr.mxu0 0.0
    %3657 = vmatpush1.msra.mxu0 0.0
    %3658 = vmatprep.subr.mxu0 0.0
    %3659 = vmatpush1.msra.mxu0 0.0
    %3660 = vmatprep.subr.mxu0 0.0
    %3661 = vmatpush1.msra.mxu0 0.0
    %3662 = vmatprep.subr.mxu0 0.0
    %3663 = vmatpush1.msra.mxu0 0.0
    %3664 = vmatprep.subr.mxu0 0.0
    %3665 = vmatpush1.msra.mxu0 0.0
    %3666 = vmatprep.subr.mxu0 0.0
    %3667 = vmatpush1.msra.mxu0 0.0
    %3668 = vmatprep.subr.mxu0 0.0
    %3669 = vmatpush1.msra.mxu0 0.0
    %3670 = vmatprep.subr.mxu0 0.0
    %3671 = vmatpush1.msra.mxu0 0.0
    %3672 = vmatprep.subr.mxu0 0.0
    %3673 = vmatpush1.msra.mxu0 0.0
    %3674 = vmatprep.subr.mxu0 0.0
    %3675 = vmatpush1.msra.mxu0 0.0
    %3676 = vmatprep.mubr.f32.mxu0 0.0
    %3677 = vmatmul.mubr.f32.gmra.mrb[0].mxu0 %v3576
    %v3678 = vpop.f32.mrb[0].mxu0
    %v3679 = vadd.f32 0.0, %v3678
    %v3680 = vpop.f32.mrb[0].mxu0
    %v3681 = vadd.f32 0.0, %v3680
    %3682 = vdwg.mxu0
    %v3683 = vadd.f32 %v3502, %v3679
    %v3684 = vadd.f32 %v3503, %v3681
    %s3685 = scalar_lea.vmem [#allocation11], 64
    %v3686 = vld [vmem:[%s3685] sm:$0xff]
    %v3688 = vsel %vm2243, %v3686, 0
    %3690 = vmatprep.subr.mxu0 0.0
    %3691 = vmatpush1.msra.mxu0 %v2238
    %3692 = vmatprep.subr.mxu0 0.0
    %3693 = vmatpush1.msra.mxu0 %v2239
    %3694 = vmatprep.subr.mxu0 0.0
    %3695 = vmatpush1.msra.mxu0 %v2240
    %3696 = vmatprep.subr.mxu0 0.0
    %3697 = vmatpush1.msra.mxu0 %v2241
    %3698 = vmatprep.subr.mxu0 0.0
    %3699 = vmatpush1.msra.mxu0 0.0
    %3700 = vmatprep.subr.mxu0 0.0
    %3701 = vmatpush1.msra.mxu0 0.0
    %3702 = vmatprep.subr.mxu0 0.0
    %3703 = vmatpush1.msra.mxu0 0.0
    %3704 = vmatprep.subr.mxu0 0.0
    %3705 = vmatpush1.msra.mxu0 0.0
    %3706 = vmatprep.subr.mxu0 0.0
    %3707 = vmatpush1.msra.mxu0 0.0
    %3708 = vmatprep.subr.mxu0 0.0
    %3709 = vmatpush1.msra.mxu0 0.0
    %3710 = vmatprep.subr.mxu0 0.0
    %3711 = vmatpush1.msra.mxu0 0.0
    %3712 = vmatprep.subr.mxu0 0.0
    %3713 = vmatpush1.msra.mxu0 0.0
    %3714 = vmatprep.subr.mxu0 0.0
    %3715 = vmatpush1.msra.mxu0 0.0
    %3716 = vmatprep.subr.mxu0 0.0
    %3717 = vmatpush1.msra.mxu0 0.0
    %3718 = vmatprep.subr.mxu0 0.0
    %3719 = vmatpush1.msra.mxu0 0.0
    %3720 = vmatprep.subr.mxu0 0.0
    %3721 = vmatpush1.msra.mxu0 0.0
    %3722 = vmatprep.subr.mxu0 0.0
    %3723 = vmatpush1.msra.mxu0 0.0
    %3724 = vmatprep.subr.mxu0 0.0
    %3725 = vmatpush1.msra.mxu0 0.0
    %3726 = vmatprep.subr.mxu0 0.0
    %3727 = vmatpush1.msra.mxu0 0.0
    %3728 = vmatprep.subr.mxu0 0.0
    %3729 = vmatpush1.msra.mxu0 0.0
    %3730 = vmatprep.subr.mxu0 0.0
    %3731 = vmatpush1.msra.mxu0 0.0
    %3732 = vmatprep.subr.mxu0 0.0
    %3733 = vmatpush1.msra.mxu0 0.0
    %3734 = vmatprep.subr.mxu0 0.0
    %3735 = vmatpush1.msra.mxu0 0.0
    %3736 = vmatprep.subr.mxu0 0.0
    %3737 = vmatpush1.msra.mxu0 0.0
    %3738 = vmatprep.subr.mxu0 0.0
    %3739 = vmatpush1.msra.mxu0 0.0
    %3740 = vmatprep.subr.mxu0 0.0
    %3741 = vmatpush1.msra.mxu0 0.0
    %3742 = vmatprep.subr.mxu0 0.0
    %3743 = vmatpush1.msra.mxu0 0.0
    %3744 = vmatprep.subr.mxu0 0.0
    %3745 = vmatpush1.msra.mxu0 0.0
    %3746 = vmatprep.subr.mxu0 0.0
    %3747 = vmatpush1.msra.mxu0 0.0
    %3748 = vmatprep.subr.mxu0 0.0
    %3749 = vmatpush1.msra.mxu0 0.0
    %3750 = vmatprep.subr.mxu0 0.0
    %3751 = vmatpush1.msra.mxu0 0.0
    %3752 = vmatprep.subr.mxu0 0.0
    %3753 = vmatpush1.msra.mxu0 0.0
    %3754 = vmatprep.mubr.f32.mxu0 0.0
    %3755 = vmatmul.mubr.f32.gmra.mrb[0].mxu0 %v3688
    %v3756 = vpop.f32.mrb[0].mxu0
    %v3757 = vadd.f32 0.0, %v3756
    %v3758 = vpop.f32.mrb[0].mxu0
    %3759 = vdwg.mxu0
    %s3760 = scalar_lea.vmem [#allocation13], 2048
    %v3761 = vld [vmem:[%s3760] sm:$0xff]
    %v3762 = vld [vmem:[%s3760 + $0x8] sm:$0xff]
    %v3763 = vld [vmem:[%s3760 + $0x10] sm:$0xff]
    %v3764 = vld [vmem:[%s3760 + $0x18] sm:$0xff]
    %v3765 = vld [vmem:[%s3760 + $0x20] sm:$0xff]
    %v3766 = vld [vmem:[%s3760 + $0x28] sm:$0xff]
    %v3767 = vld [vmem:[%s3760 + $0x30] sm:$0xff]
    %v3768 = vld [vmem:[%s3760 + $0x38] sm:$0xff]
    %v3769 = vld [vmem:[%s3760 + $0x40] sm:$0xff]
    %v3770 = vld [vmem:[%s3760 + $0x48] sm:$0xff]
    %v3771 = vld [vmem:[%s3760 + $0x50] sm:$0xff]
    %v3772 = vld [vmem:[%s3760 + $0x58] sm:$0xff]
    %v3773 = vld [vmem:[%s3760 + $0x60] sm:$0xff]
    %v3774 = vld [vmem:[%s3760 + $0x68] sm:$0xff]
    %v3775 = vld [vmem:[%s3760 + $0x70] sm:$0xff]
    %v3776 = vld [vmem:[%s3760 + $0x78] sm:$0xff]
    %v3777 = vld [vmem:[%s3760 + $0x80] sm:$0xff]
    %v3778 = vld [vmem:[%s3760 + $0x88] sm:$0xff]
    %v3779 = vld [vmem:[%s3760 + $0x90] sm:$0xff]
    %v3780 = vld [vmem:[%s3760 + $0x98] sm:$0xff]
    %v3781 = vld [vmem:[%s3760 + $0xa0] sm:$0xff]
    %v3782 = vld [vmem:[%s3760 + $0xa8] sm:$0xff]
    %v3783 = vld [vmem:[%s3760 + $0xb0] sm:$0xff]
    %v3784 = vld [vmem:[%s3760 + $0xb8] sm:$0xff]
    %v3785 = vld [vmem:[%s3760 + $0xc0] sm:$0xff]
    %v3786 = vld [vmem:[%s3760 + $0xc8] sm:$0xff]
    %v3787 = vld [vmem:[%s3760 + $0xd0] sm:$0xff]
    %v3788 = vld [vmem:[%s3760 + $0xd8] sm:$0xff]
    %v3789 = vld [vmem:[%s3760 + $0xe0] sm:$0xff]
    %v3790 = vld [vmem:[%s3760 + $0xe8] sm:$0xff]
    %v3791 = vld [vmem:[%s3760 + $0xf0] sm:$0xff]
    %v3792 = vld [vmem:[%s3760 + $0xf8] sm:$0xff]
    %3793 = vmatprep.subr.mxu0 %v3762
    %3794 = vmatpush1.msra.mxu0 %v3761
    %3795 = vmatprep.subr.mxu0 %v3764
    %3796 = vmatpush1.msra.mxu0 %v3763
    %3797 = vmatprep.subr.mxu0 %v3766
    %3798 = vmatpush1.msra.mxu0 %v3765
    %3799 = vmatprep.subr.mxu0 %v3768
    %3800 = vmatpush1.msra.mxu0 %v3767
    %3801 = vmatprep.subr.mxu0 %v3770
    %3802 = vmatpush1.msra.mxu0 %v3769
    %3803 = vmatprep.subr.mxu0 %v3772
    %3804 = vmatpush1.msra.mxu0 %v3771
    %3805 = vmatprep.subr.mxu0 %v3774
    %3806 = vmatpush1.msra.mxu0 %v3773
    %3807 = vmatprep.subr.mxu0 %v3776
    %3808 = vmatpush1.msra.mxu0 %v3775
    %3809 = vmatprep.subr.mxu0 %v3778
    %3810 = vmatpush1.msra.mxu0 %v3777
    %3811 = vmatprep.subr.mxu0 %v3780
    %3812 = vmatpush1.msra.mxu0 %v3779
    %3813 = vmatprep.subr.mxu0 %v3782
    %3814 = vmatpush1.msra.mxu0 %v3781
    %3815 = vmatprep.subr.mxu0 %v3784
    %3816 = vmatpush1.msra.mxu0 %v3783
    %3817 = vmatprep.subr.mxu0 %v3786
    %3818 = vmatpush1.msra.mxu0 %v3785
    %3819 = vmatprep.subr.mxu0 %v3788
    %3820 = vmatpush1.msra.mxu0 %v3787
    %3821 = vmatprep.subr.mxu0 %v3790
    %3822 = vmatpush1.msra.mxu0 %v3789
    %3823 = vmatprep.subr.mxu0 %v3792
    %3824 = vmatpush1.msra.mxu0 %v3791
    %3825 = vmatprep.subr.mxu0 0.0
    %3826 = vmatpush1.msra.mxu0 0.0
    %3827 = vmatprep.subr.mxu0 0.0
    %3828 = vmatpush1.msra.mxu0 0.0
    %3829 = vmatprep.subr.mxu0 0.0
    %3830 = vmatpush1.msra.mxu0 0.0
    %3831 = vmatprep.subr.mxu0 0.0
    %3832 = vmatpush1.msra.mxu0 0.0
    %3833 = vmatprep.subr.mxu0 0.0
    %3834 = vmatpush1.msra.mxu0 0.0
    %3835 = vmatprep.subr.mxu0 0.0
    %3836 = vmatpush1.msra.mxu0 0.0
    %3837 = vmatprep.subr.mxu0 0.0
    %3838 = vmatpush1.msra.mxu0 0.0
    %3839 = vmatprep.subr.mxu0 0.0
    %3840 = vmatpush1.msra.mxu0 0.0
    %3841 = vmatprep.subr.mxu0 0.0
    %3842 = vmatpush1.msra.mxu0 0.0
    %3843 = vmatprep.subr.mxu0 0.0
    %3844 = vmatpush1.msra.mxu0 0.0
    %3845 = vmatprep.subr.mxu0 0.0
    %3846 = vmatpush1.msra.mxu0 0.0
    %3847 = vmatprep.subr.mxu0 0.0
    %3848 = vmatpush1.msra.mxu0 0.0
    %3849 = vmatprep.subr.mxu0 0.0
    %3850 = vmatpush1.msra.mxu0 0.0
    %3851 = vmatprep.subr.mxu0 0.0
    %3852 = vmatpush1.msra.mxu0 0.0
    %3853 = vmatprep.subr.mxu0 0.0
    %3854 = vmatpush1.msra.mxu0 0.0
    %3855 = vmatprep.subr.mxu0 0.0
    %3856 = vmatpush1.msra.mxu0 0.0
    %3857 = vmatprep.mubr.f32.mxu0 0.0
    %3858 = vmatmul.mubr.f32.gmra.mrb[0].mxu0 %v3757
    %v3859 = vpop.f32.mrb[0].mxu0
    %v3860 = vadd.f32 0.0, %v3859
    %v3861 = vpop.f32.mrb[0].mxu0
    %v3862 = vadd.f32 0.0, %v3861
    %3863 = vdwg.mxu0
    %v3864 = vadd.f32 %v3683, %v3860
    %v3865 = vadd.f32 %v3684, %v3862
    %v3866 = vld [vmem:[#allocation14] sm:$0x3]
    %v3868 = vlaneseq
    %v3869 = vshrl.u32 %v3868, 7
    %v3870 = vsub.s32 0, %v3869
    %v3871 = vrot.slane %v3866, %v3870
    %v3872 = vlaneseq
    %v3873 = vshrl.u32 %v3872, 7
    %v3874 = vsub.s32 1, %v3873
    %v3875 = vrot.slane %v3866, %v3874
    %v3878 = vadd.f32 %v3864, %v3871
    %v3879 = vadd.f32 %v3865, %v3875
    %vm3880 = vcmp.ge.f32.partialorder %v3878, 0.0
    %vm3881 = vcmp.ge.f32.partialorder %v3879, 0.0
    %v3882 = vmul.f32 %v3878, 0.01
    %v3883 = vmul.f32 %v3879, 0.01
    %v3884 = vsel %vm3880, %v3878, %v3882
    %v3885 = vsel %vm3881, %v3879, %v3883
    %v3886 = vld [vmem:[%s9] sm:$0xff]
    %v3887 = vld [vmem:[%s9 + $0x8] sm:$0xff]
    %v3888 = vmul.f32 %v3884, %v3886
    %v3889 = vmul.f32 %v3885, %v3887
    %v3890 = vld [vmem:[#allocation16] sm:$0x3]
    %vm3891 = vcmask 64512
    %v3893 = vsel %vm3891, %v3890, 0
    %3895 = vmatprep.subr.mxu0 %v3889
    %3896 = vmatpush1.msra.mxu0 %v3888
    %3897 = vmatprep.subr.mxu0 0.0
    %3898 = vmatpush1.msra.mxu0 0.0
    %3899 = vmatprep.subr.mxu0 0.0
    %3900 = vmatpush1.msra.mxu0 0.0
    %3901 = vmatprep.subr.mxu0 0.0
    %3902 = vmatpush1.msra.mxu0 0.0
    %3903 = vmatprep.subr.mxu0 0.0
    %3904 = vmatpush1.msra.mxu0 0.0
    %3905 = vmatprep.subr.mxu0 0.0
    %3906 = vmatpush1.msra.mxu0 0.0
    %3907 = vmatprep.subr.mxu0 0.0
    %3908 = vmatpush1.msra.mxu0 0.0
    %3909 = vmatprep.subr.mxu0 0.0
    %3910 = vmatpush1.msra.mxu0 0.0
    %3911 = vmatprep.subr.mxu0 0.0
    %3912 = vmatpush1.msra.mxu0 0.0
    %3913 = vmatprep.subr.mxu0 0.0
    %3914 = vmatpush1.msra.mxu0 0.0
    %3915 = vmatprep.subr.mxu0 0.0
    %3916 = vmatpush1.msra.mxu0 0.0
    %3917 = vmatprep.subr.mxu0 0.0
    %3918 = vmatpush1.msra.mxu0 0.0
    %3919 = vmatprep.subr.mxu0 0.0
    %3920 = vmatpush1.msra.mxu0 0.0
    %3921 = vmatprep.subr.mxu0 0.0
    %3922 = vmatpush1.msra.mxu0 0.0
    %3923 = vmatprep.subr.mxu0 0.0
    %3924 = vmatpush1.msra.mxu0 0.0
    %3925 = vmatprep.subr.mxu0 0.0
    %3926 = vmatpush1.msra.mxu0 0.0
    %3927 = vmatprep.subr.mxu0 0.0
    %3928 = vmatpush1.msra.mxu0 0.0
    %3929 = vmatprep.subr.mxu0 0.0
    %3930 = vmatpush1.msra.mxu0 0.0
    %3931 = vmatprep.subr.mxu0 0.0
    %3932 = vmatpush1.msra.mxu0 0.0
    %3933 = vmatprep.subr.mxu0 0.0
    %3934 = vmatpush1.msra.mxu0 0.0
    %3935 = vmatprep.subr.mxu0 0.0
    %3936 = vmatpush1.msra.mxu0 0.0
    %3937 = vmatprep.subr.mxu0 0.0
    %3938 = vmatpush1.msra.mxu0 0.0
    %3939 = vmatprep.subr.mxu0 0.0
    %3940 = vmatpush1.msra.mxu0 0.0
    %3941 = vmatprep.subr.mxu0 0.0
    %3942 = vmatpush1.msra.mxu0 0.0
    %3943 = vmatprep.subr.mxu0 0.0
    %3944 = vmatpush1.msra.mxu0 0.0
    %3945 = vmatprep.subr.mxu0 0.0
    %3946 = vmatpush1.msra.mxu0 0.0
    %3947 = vmatprep.subr.mxu0 0.0
    %3948 = vmatpush1.msra.mxu0 0.0
    %3949 = vmatprep.subr.mxu0 0.0
    %3950 = vmatpush1.msra.mxu0 0.0
    %3951 = vmatprep.subr.mxu0 0.0
    %3952 = vmatpush1.msra.mxu0 0.0
    %3953 = vmatprep.subr.mxu0 0.0
    %3954 = vmatpush1.msra.mxu0 0.0
    %3955 = vmatprep.subr.mxu0 0.0
    %3956 = vmatpush1.msra.mxu0 0.0
    %3957 = vmatprep.subr.mxu0 0.0
    %3958 = vmatpush1.msra.mxu0 0.0
    %3959 = vmatprep.mubr.f32.mxu0 0.0
    %3960 = vmatmul.mubr.f32.gmra.mrb[0].mxu0 %v3893
    %v3961 = vpop.f32.mrb[0].mxu0
    %v3962 = vadd.f32 0.0, %v3961
    %v3963 = vpop.f32.mrb[0].mxu0
    %v3964 = vadd.f32 0.0, %v3963
    %3965 = vdwg.mxu0
    %vm3966 = vcmask 1041408
    %v3967 = vsel %vm3966, %v3962, 0.0
    %v3968 = vsel %vm3966, %v3964, 0.0
    %v3969 = vadd.f32 %v3967, %v3968
    %3970 = vadd.xlane.f32.xlu0 %v3969
    %v3971 = vpop.xlane.xlu0 %3970
    %v3972 = vld [vmem:[#allocation2] sm:$0x1]
    %v3974 = vlaneseq
    %v3975 = vshrl.u32 %v3974, 7
    %v3976 = vsub.s32 0, %v3975
    %v3977 = vrot.slane %v3972, %v3976
    %v3979 = vadd.f32 %v3971, %v3977
    %vm3980 = vcmask 1024
    %3981 = vst.msk [vmem:[%s12] sm:$0x3] %vm3980, %v3979
    // Predicated region
    $region86: #{conv_discriminator.1} parent=1 // pred_check
      _
    $region87: #{conv_discriminator.1} parent=1 // pred_check_branch
      %3983 = sbr.rel (0) target = $region89
    $region88: #{conv_discriminator.1} parent=1 // pred_region
      _
    $region89: #{conv_discriminator.1} parent=1 // pred_fallthru
      _
    // Predicated region
    $region90: #{conv_discriminator.1} parent=1 // pred_check
      _
    $region91: #{conv_discriminator.1} parent=1 // pred_check_branch
      %3985 = sbr.rel (0) target = $region93
    $region92: #{conv_discriminator.1} parent=1 // pred_region
      _
    $region93: #{conv_discriminator.1} parent=1 // pred_fallthru
      _
    %3986 = vsyncpa [#allocation4], 1
    %3987 = vsyncpa [#allocation6], 1
    %3988 = vsyncpa [#allocation9], 1
    %3989 = vsyncpa [#allocation12], 1
    %3990 = vsyncpa [#allocation15], 1

</llo_original>
